<compile_context>
chip_gen: v7x
topology: tpu7x:2x2x1
jax: 0.10.0
libtpu: 0.0.40
codegen_flags: <defaults>
</compile_context>

<pallas_src>
import functools

import numpy as np
import jax
import jax.numpy as jnp
from jax import lax
from jax.experimental import pallas as pl
from jax.experimental.pallas import tpu as pltpu


def _gaussian_kernel(kernel_size, sigma):
    kh, kw = kernel_size
    assert kh % 2 == 1 and kw % 2 == 1, "must be odd"
    hs = np.arange(kh, dtype=np.float32) - kh // 2
    ws = np.arange(kw, dtype=np.float32) - kw // 2
    pdist = hs[:, None] ** 2 + ws[None, :] ** 2
    k = np.exp(-pdist / (2.0 * sigma ** 2)).astype(np.float32)
    k = k / k.sum()
    return k.astype(np.float32)


_BIG = 1e30      # finite "invalid depth" sentinel (keeps multiplicative masking finite)
_EXCL = 3.0e38   # per-round argmin init (comparisons only, never accumulated)


def _knn_kernel(depth_ref, label_ref, out_ref, dist_sc, lab_sc, *,
                H, W, Tw, KH, KW, k_sel, dist_kernel, cutoff, top, left):
    ph, pw = KH // 2, KW // 2
    K = KH * KW

    dp = depth_ref[0, 0]            # (HS, WS) f32, zero padded, image origin at (top, left)
    lp = label_ref[0, 0]            # (HS, WS) i32, zero padded, same geometry

    # invalid returns -> big finite sentinel, computed ONCE (hoisted out of all loops)
    dpm = jnp.where(dp < 0.0, jnp.float32(_BIG), dp)

    # global column offset of this W tile (conv zero-pad mask sits at the *image* border)
    x0 = pl.program_id(1) * Tw
    row = lax.broadcasted_iota(jnp.int32, (H, Tw), 0)
    col = lax.broadcasted_iota(jnp.int32, (H, Tw), 1) + x0

    # Shifted views, each (H, Tw). Center offsets start at (top, left) = (8, 128), so the
    # sy=0 / sx=0 (most used) views are sublane/lane aligned: no XLU rotate, no partial vreg.
    Dv = {}
    for sy in range(-2 * ph, 2 * ph + 1):
        for sx in range(-2 * pw, 2 * pw + 1):
            Dv[(sy, sx)] = dpm[top + sy: top + sy + H, left + sx: left + sx + Tw]
    Cv = {}
    for py in range(-ph, ph + 1):
        for px in range(-pw, pw + 1):
            Cv[(py, px)] = dp[top + py: top + py + H, left + px: left + px + Tw]

    # Factored border masks (== conv2d zero padding): KH row masks + KW column masks.
    row_ok = {py: (row + py >= 0) & (row + py < H) for py in range(-ph, ph + 1)}
    col_ok = {px: (col + px >= 0) & (col + px < W) for px in range(-pw, pw + 1)}
    WFv = {}
    for py in range(-ph, ph + 1):
        for px in range(-pw, pw + 1):
            WFv[(py, px)] = jnp.where(
                row_ok[py] & col_ok[px],
                jnp.float32(dist_kernel[py + ph][px + pw]), 0.0)

    # Phase 1: per-neighbor gaussian-weighted depth jump -> (K, H, Tw) scratch.
    #   dist_k(y,x) = sum_p wf[p](y,x) * | D(y + p + k) - C(y + p) |
    kk_i = 0
    for ky in range(-ph, ph + 1):
        for kx in range(-pw, pw + 1):
            d = jnp.zeros((H, Tw), jnp.float32)
            for py in range(-ph, ph + 1):
                for px in range(-pw, pw + 1):
                    d = d + WFv[(py, px)] * jnp.abs(
                        Dv[(py + ky, px + kx)] - Cv[(py, px)])
            dist_sc[kk_i] = d
            lab_sc[kk_i] = lp[top + ky: top + ky + H, left + kx: left + kx + Tw]
            kk_i += 1

    # Phase 2: top-k smallest. k_sel rounds; each round is ONE fused fori_loop scan over the
    # K scratch maps carrying (min_val, min_idx, min_lab). Instead of mutating the work maps,
    # round r only admits candidates lexicographically greater than round r-1's (val, idx)
    # pair — identical first-occurrence k-smallest semantics, zero extra full-map passes.
    prev_val = jnp.full((H, Tw), -1.0, jnp.float32)     # all distances are >= 0
    prev_idx = jnp.full((H, Tw), -1, jnp.int32)
    sel_lab, sel_ok = [], []
    for _ in range(k_sel):
        def round_body(kk, carry, _pv=prev_val, _pi=prev_idx):
            mv, mi, ml = carry
            w = dist_sc[kk]
            lab = lab_sc[kk]
            qual = (w > _pv) | ((w == _pv) & (kk > _pi))
            take = qual & (w < mv)
            mv = jnp.where(take, w, mv)
            mi = jnp.where(take, kk, mi)
            ml = jnp.where(take, lab, ml)
            return mv, mi, ml

        mv, mi, ml = lax.fori_loop(
            0, K, round_body,
            (jnp.full((H, Tw), jnp.float32(_EXCL), jnp.float32),
             jnp.zeros((H, Tw), jnp.int32),
             jnp.zeros((H, Tw), jnp.int32)),
            unroll=True)
        sel_lab.append(ml)
        if cutoff > 0:
            sel_ok.append(mv <= cutoff)      # too-far picks vote "invalid" -> ignored
        else:
            sel_ok.append(jnp.ones((H, Tw), jnp.bool_))
        prev_val, prev_idx = mv, mi

    # Phase 3: majority vote among the k selected labels (k^2 integer compares).
    # torch semantics: invalid picks land in the excluded bin; argmax over real bins picks
    # the smallest class index on ties; all-invalid pixels fall back to class 0.
    best_cnt = jnp.zeros((H, Tw), jnp.int32)
    best_cls = jnp.zeros((H, Tw), jnp.int32)
    for i in range(k_sel):
        cnt = jnp.zeros((H, Tw), jnp.int32)
        for j in range(k_sel):
            cnt = cnt + ((sel_lab[j] == sel_lab[i]) & sel_ok[j]).astype(jnp.int32)
        cnt = jnp.where(sel_ok[i], cnt, 0)
        take = (cnt > best_cnt) | ((cnt == best_cnt) & (sel_lab[i] < best_cls))
        best_cnt = jnp.where(take, cnt, best_cnt)
        best_cls = jnp.where(take, sel_lab[i], best_cls)
    out_ref[0] = best_cls


def knn_filter(depth, label, *, num_classes, k=3, kernel_size=3, sigma=1.0,
               cutoff=1.0, tile_w=512):
    """depth: (B, 1, H, W) float32, label: (B, H, W) int -> (B, H, W) int32.

    tile_w=512 is safe on v5e/v6e/v7x; on v6e/v5e (128 MiB VMEM) tile_w=1024 pays for
    W >= 2048, do NOT raise it on v7x (64 MiB per-TC VMEM).
    """
    # num_classes kept for API parity; the vote-counting kernel doesn't need it.
    B, C, H, W = depth.shape
    assert C == 1, "kNN refinement expects a single-channel range image"
    kh = kw = kernel_size
    ph, pw = kh // 2, kw // 2
    gauss = _gaussian_kernel((kh, kw), sigma)
    dist_kernel = [[float(1.0 - gauss[i, j]) for j in range(kw)] for i in range(kh)]

    LANE, SUB = 128, 8
    assert tile_w % LANE == 0

    def rup(a, m):
        return -(-a // m) * m

    W_pad = rup(W, LANE)                      # lane-dense output blocks (unmasked stores)
    if W_pad <= tile_w:
        Tw = W_pad
        # v7x megacore guard: keep >= 2 parallel grid steps when B == 1 and W allows it.
        if B == 1 and W_pad >= 2 * LANE:
            Tw = rup(W_pad // 2, LANE)
            W_pad = rup(W_pad, Tw)
    else:
        Tw = tile_w
        W_pad = rup(W_pad, Tw)
    n_t = W_pad // Tw

    # Sublane/lane-aligned halo'd slab layout: image row 0 at slab row `top` (multiple of 8),
    # tile column 0 at slab column `left` (multiple of 128); slab dims multiples of (8, 128).
    top, left = SUB, LANE
    assert 2 * ph <= top and 2 * pw <= left, "kernel_size too large for fixed halo layout"
    right = rup(2 * pw, LANE)
    HS = rup(top + H + 2 * ph, SUB)
    WS = left + Tw + right

    d = depth[:, 0].astype(jnp.float32)
    lbl = label.astype(jnp.int32)
    dpad = jnp.pad(d, ((0, 0), (top, HS - top - H), (left, (W_pad - W) + right)))
    lpad = jnp.pad(lbl, ((0, 0), (top, HS - top - H), (left, (W_pad - W) + right)))

    # Pre-materialized overlapping W slabs (halo already inside each slab) so plain Blocked
    # BlockSpecs cover the overlap; duplication is only the aligned halo columns per tile.
    # TODO(synk): replace with pl.ANY + manual halo DMA to drop the extra host-side HBM pass.
    d_tiles = jnp.stack([dpad[:, :, t * Tw: t * Tw + WS] for t in range(n_t)], axis=1)
    l_tiles = jnp.stack([lpad[:, :, t * Tw: t * Tw + WS] for t in range(n_t)], axis=1)

    K = kh * kw
    kernel_fn = functools.partial(
        _knn_kernel, H=H, W=W, Tw=Tw, KH=kh, KW=kw, k_sel=k,
        dist_kernel=dist_kernel, cutoff=float(cutoff), top=top, left=left)

    out = pl.pallas_call(
        kernel_fn,
        out_shape=jax.ShapeDtypeStruct((B, H, W_pad), jnp.int32),
        grid_spec=pltpu.PrefetchScalarGridSpec(
            num_scalar_prefetch=0,
            grid=(B, n_t),
            in_specs=[
                pl.BlockSpec((1, 1, HS, WS), lambda b, t: (b, t, 0, 0)),
                pl.BlockSpec((1, 1, HS, WS), lambda b, t: (b, t, 0, 0)),
            ],
            out_specs=pl.BlockSpec((1, H, Tw), lambda b, t: (b, 0, t)),
            scratch_shapes=[
                pltpu.VMEM((K, H, Tw), jnp.float32),   # per-neighbor distance maps
                pltpu.VMEM((K, H, Tw), jnp.int32),     # per-neighbor label maps
            ],
        ),
        compiler_params=pltpu.CompilerParams(
            dimension_semantics=("parallel", "parallel"),
            vmem_limit_bytes=40 * 1024 * 1024),
    )(d_tiles, l_tiles)
    return out[:, :, :W]


def _reference_numpy(depth, label, *, num_classes, k_sel, kernel, cutoff):
    """Pure-numpy re-implementation of the torch forward (for validation only)."""
    depth = np.asarray(depth, np.float32)[:, 0]
    label = np.asarray(label, np.float32)
    B, H, W = depth.shape
    KH, KW = kernel.shape
    ph, pw = KH // 2, KW // 2
    dzp = np.pad(depth, ((0, 0), (ph, ph), (pw, pw)))
    neigh = np.stack([dzp[:, ky:ky + H, kx:kx + W]
                      for ky in range(KH) for kx in range(KW)], axis=1)
    neigh = neigh.copy()
    neigh[neigh < 0] = np.inf
    jump = np.abs(neigh - depth[:, None])                     # (B, K, H, W)
    jzp = np.pad(jump, ((0, 0), (0, 0), (ph, ph), (pw, pw)))
    dist = np.zeros_like(jump)
    for ky in range(KH):
        for kx in range(KW):
            dist += kernel[ky, kx] * jzp[:, :, ky:ky + H, kx:kx + W]
    lzp = np.pad(label, ((0, 0), (ph, ph), (pw, pw)))
    labn = np.stack([lzp[:, ky:ky + H, kx:kx + W]
                     for ky in range(KH) for kx in range(KW)], axis=1)
    ids = np.argsort(dist, axis=1, kind="stable")[:, :k_sel]
    dist_topk = np.take_along_axis(dist, ids, axis=1)
    lab_topk = np.take_along_axis(labn, ids, axis=1)
    if cutoff > 0:
        lab_topk = np.where(dist_topk > cutoff, float(num_classes), lab_topk)
    counts = np.zeros((B, num_classes, H, W), np.float32)
    for c in range(num_classes):
        counts[:, c] = (lab_topk == c).sum(axis=1)
    return counts.argmax(axis=1).astype(np.int32)


if __name__ == "__main__":
    num_classes = 8
    B, C, H, W = 2, 1, 16, 16
    key = jax.random.PRNGKey(0)
    kd, kl = jax.random.split(key)
    # range image with a few negative (invalid) returns
    depth = jax.random.uniform(kd, (B, C, H, W), jnp.float32, minval=-0.5, maxval=9.5)
    label = jax.random.randint(kl, (B, H, W), 0, num_classes, jnp.int32)

    out = jax.block_until_ready(
        knn_filter(depth, label, num_classes=num_classes,
                   k=3, kernel_size=3, sigma=1.0, cutoff=1.0))

    ref = _reference_numpy(np.asarray(depth), np.asarray(label),
                           num_classes=num_classes, k_sel=3,
                           kernel=(1.0 - _gaussian_kernel((3, 3), 1.0)),
                           cutoff=1.0)
    agree = float(np.mean(np.asarray(out) == ref))
    assert out.shape == (B, H, W) and out.dtype == jnp.int32
    # allow a tiny slack for fp-tie / unspecified top-k tie-order differences
    assert agree >= 0.99, f"kernel/reference agreement too low: {agree}"
    print("KERNEL_OK")
</pallas_src>

<mosaic_0001>
module attributes {stable_mosaic.version = 11 : i64} {
  func.func @_knn_kernel(%arg0: i32, %arg1: i32, %arg2: memref<1x1x32x384xf32, #tpu.memory_space<vmem>>, %arg3: memref<1x1x32x384xi32, #tpu.memory_space<vmem>>, %arg4: memref<1x16x128xi32, #tpu.memory_space<vmem>>, %arg5: memref<9x16x128xf32, #tpu.memory_space<vmem>>, %arg6: memref<9x16x128xi32, #tpu.memory_space<vmem>>) attributes {dimension_semantics = [#tpu.dimension_semantics<parallel>, #tpu.dimension_semantics<parallel>], iteration_bounds = array<i64: 2, 1>, scalar_prefetch = 0 : i64, scratch_operands = 2 : i64, tpu.core_type = #tpu.core_type<tc>, window_params = [{transform_indices = @transform_0, window_bounds = array<i64: 1, 1, 32, 384>}, {transform_indices = @transform_1, window_bounds = array<i64: 1, 1, 32, 384>}, {transform_indices = @transform_2, window_bounds = array<i64: 1, 16, 128>}]} {
    %c0 = arith.constant 0 : index
    %c0_0 = arith.constant 0 : index
    %c0_1 = arith.constant 0 : index
    %c0_2 = arith.constant 0 : index
    %0 = vector.load %arg2[%c0, %c0_0, %c0_1, %c0_2] : memref<1x1x32x384xf32, #tpu.memory_space<vmem>>, vector<1x1x32x384xf32>
    %1 = vector.shape_cast %0 : vector<1x1x32x384xf32> to vector<32x384xf32>
    %c0_3 = arith.constant 0 : index
    %c0_4 = arith.constant 0 : index
    %c0_5 = arith.constant 0 : index
    %c0_6 = arith.constant 0 : index
    %2 = vector.load %arg3[%c0_3, %c0_4, %c0_5, %c0_6] : memref<1x1x32x384xi32, #tpu.memory_space<vmem>>, vector<1x1x32x384xi32>
    %3 = vector.shape_cast %2 : vector<1x1x32x384xi32> to vector<32x384xi32>
    %cst = arith.constant 0.000000e+00 : f32
    %4 = vector.broadcast %cst : f32 to vector<32x384xf32>
    %5 = arith.cmpf olt, %1, %4 : vector<32x384xf32>
    %cst_7 = arith.constant 1.000000e+30 : f32
    %6 = vector.broadcast %cst_7 : f32 to vector<32x384xf32>
    %7 = arith.select %5, %6, %1 : vector<32x384xi1>, vector<32x384xf32>
    %c128_i32 = arith.constant 128 : i32
    %8 = arith.muli %arg1, %c128_i32 : i32
    %9 = tpu.iota {dimensions = array<i32: 0>} : vector<16x128xi32>
    %10 = tpu.iota {dimensions = array<i32: 1>} : vector<16x128xi32>
    %11 = vector.broadcast %8 : i32 to vector<16x128xi32>
    %12 = arith.addi %10, %11 : vector<16x128xi32>
    %13 = vector.extract_strided_slice %7 {offsets = [6, 126], sizes = [16, 128], strides = [1, 1]} : vector<32x384xf32> to vector<16x128xf32>
    %14 = vector.extract_strided_slice %7 {offsets = [6, 127], sizes = [16, 128], strides = [1, 1]} : vector<32x384xf32> to vector<16x128xf32>
    %15 = vector.extract_strided_slice %7 {offsets = [6, 128], sizes = [16, 128], strides = [1, 1]} : vector<32x384xf32> to vector<16x128xf32>
    %16 = vector.extract_strided_slice %7 {offsets = [6, 129], sizes = [16, 128], strides = [1, 1]} : vector<32x384xf32> to vector<16x128xf32>
    %17 = vector.extract_strided_slice %7 {offsets = [6, 130], sizes = [16, 128], strides = [1, 1]} : vector<32x384xf32> to vector<16x128xf32>
    %18 = vector.extract_strided_slice %7 {offsets = [7, 126], sizes = [16, 128], strides = [1, 1]} : vector<32x384xf32> to vector<16x128xf32>
    %19 = vector.extract_strided_slice %7 {offsets = [7, 127], sizes = [16, 128], strides = [1, 1]} : vector<32x384xf32> to vector<16x128xf32>
    %20 = vector.extract_strided_slice %7 {offsets = [7, 128], sizes = [16, 128], strides = [1, 1]} : vector<32x384xf32> to vector<16x128xf32>
    %21 = vector.extract_strided_slice %7 {offsets = [7, 129], sizes = [16, 128], strides = [1, 1]} : vector<32x384xf32> to vector<16x128xf32>
    %22 = vector.extract_strided_slice %7 {offsets = [7, 130], sizes = [16, 128], strides = [1, 1]} : vector<32x384xf32> to vector<16x128xf32>
    %23 = vector.extract_strided_slice %7 {offsets = [8, 126], sizes = [16, 128], strides = [1, 1]} : vector<32x384xf32> to vector<16x128xf32>
    %24 = vector.extract_strided_slice %7 {offsets = [8, 127], sizes = [16, 128], strides = [1, 1]} : vector<32x384xf32> to vector<16x128xf32>
    %25 = vector.extract_strided_slice %7 {offsets = [8, 128], sizes = [16, 128], strides = [1, 1]} : vector<32x384xf32> to vector<16x128xf32>
    %26 = vector.extract_strided_slice %7 {offsets = [8, 129], sizes = [16, 128], strides = [1, 1]} : vector<32x384xf32> to vector<16x128xf32>
    %27 = vector.extract_strided_slice %7 {offsets = [8, 130], sizes = [16, 128], strides = [1, 1]} : vector<32x384xf32> to vector<16x128xf32>
    %28 = vector.extract_strided_slice %7 {offsets = [9, 126], sizes = [16, 128], strides = [1, 1]} : vector<32x384xf32> to vector<16x128xf32>
    %29 = vector.extract_strided_slice %7 {offsets = [9, 127], sizes = [16, 128], strides = [1, 1]} : vector<32x384xf32> to vector<16x128xf32>
    %30 = vector.extract_strided_slice %7 {offsets = [9, 128], sizes = [16, 128], strides = [1, 1]} : vector<32x384xf32> to vector<16x128xf32>
    %31 = vector.extract_strided_slice %7 {offsets = [9, 129], sizes = [16, 128], strides = [1, 1]} : vector<32x384xf32> to vector<16x128xf32>
    %32 = vector.extract_strided_slice %7 {offsets = [9, 130], sizes = [16, 128], strides = [1, 1]} : vector<32x384xf32> to vector<16x128xf32>
    %33 = vector.extract_strided_slice %7 {offsets = [10, 126], sizes = [16, 128], strides = [1, 1]} : vector<32x384xf32> to vector<16x128xf32>
    %34 = vector.extract_strided_slice %7 {offsets = [10, 127], sizes = [16, 128], strides = [1, 1]} : vector<32x384xf32> to vector<16x128xf32>
    %35 = vector.extract_strided_slice %7 {offsets = [10, 128], sizes = [16, 128], strides = [1, 1]} : vector<32x384xf32> to vector<16x128xf32>
    %36 = vector.extract_strided_slice %7 {offsets = [10, 129], sizes = [16, 128], strides = [1, 1]} : vector<32x384xf32> to vector<16x128xf32>
    %37 = vector.extract_strided_slice %7 {offsets = [10, 130], sizes = [16, 128], strides = [1, 1]} : vector<32x384xf32> to vector<16x128xf32>
    %38 = vector.extract_strided_slice %1 {offsets = [7, 127], sizes = [16, 128], strides = [1, 1]} : vector<32x384xf32> to vector<16x128xf32>
    %39 = vector.extract_strided_slice %1 {offsets = [7, 128], sizes = [16, 128], strides = [1, 1]} : vector<32x384xf32> to vector<16x128xf32>
    %40 = vector.extract_strided_slice %1 {offsets = [7, 129], sizes = [16, 128], strides = [1, 1]} : vector<32x384xf32> to vector<16x128xf32>
    %41 = vector.extract_strided_slice %1 {offsets = [8, 127], sizes = [16, 128], strides = [1, 1]} : vector<32x384xf32> to vector<16x128xf32>
    %42 = vector.extract_strided_slice %1 {offsets = [8, 128], sizes = [16, 128], strides = [1, 1]} : vector<32x384xf32> to vector<16x128xf32>
    %43 = vector.extract_strided_slice %1 {offsets = [8, 129], sizes = [16, 128], strides = [1, 1]} : vector<32x384xf32> to vector<16x128xf32>
    %44 = vector.extract_strided_slice %1 {offsets = [9, 127], sizes = [16, 128], strides = [1, 1]} : vector<32x384xf32> to vector<16x128xf32>
    %45 = vector.extract_strided_slice %1 {offsets = [9, 128], sizes = [16, 128], strides = [1, 1]} : vector<32x384xf32> to vector<16x128xf32>
    %46 = vector.extract_strided_slice %1 {offsets = [9, 129], sizes = [16, 128], strides = [1, 1]} : vector<32x384xf32> to vector<16x128xf32>
    %c-1_i32 = arith.constant -1 : i32
    %47 = vector.broadcast %c-1_i32 : i32 to vector<16x128xi32>
    %48 = arith.addi %9, %47 : vector<16x128xi32>
    %c0_i32 = arith.constant 0 : i32
    %49 = vector.broadcast %c0_i32 : i32 to vector<16x128xi32>
    %50 = arith.cmpi sge, %48, %49 : vector<16x128xi32>
    %c-1_i32_8 = arith.constant -1 : i32
    %51 = vector.broadcast %c-1_i32_8 : i32 to vector<16x128xi32>
    %52 = arith.addi %9, %51 : vector<16x128xi32>
    %c16_i32 = arith.constant 16 : i32
    %53 = vector.broadcast %c16_i32 : i32 to vector<16x128xi32>
    %54 = arith.cmpi slt, %52, %53 : vector<16x128xi32>
    %55 = arith.andi %50, %54 : vector<16x128xi1>
    %c0_i32_9 = arith.constant 0 : i32
    %56 = vector.broadcast %c0_i32_9 : i32 to vector<16x128xi32>
    %57 = arith.addi %9, %56 : vector<16x128xi32>
    %c0_i32_10 = arith.constant 0 : i32
    %58 = vector.broadcast %c0_i32_10 : i32 to vector<16x128xi32>
    %59 = arith.cmpi sge, %57, %58 : vector<16x128xi32>
    %c0_i32_11 = arith.constant 0 : i32
    %60 = vector.broadcast %c0_i32_11 : i32 to vector<16x128xi32>
    %61 = arith.addi %9, %60 : vector<16x128xi32>
    %c16_i32_12 = arith.constant 16 : i32
    %62 = vector.broadcast %c16_i32_12 : i32 to vector<16x128xi32>
    %63 = arith.cmpi slt, %61, %62 : vector<16x128xi32>
    %64 = arith.andi %59, %63 : vector<16x128xi1>
    %c1_i32 = arith.constant 1 : i32
    %65 = vector.broadcast %c1_i32 : i32 to vector<16x128xi32>
    %66 = arith.addi %9, %65 : vector<16x128xi32>
    %c0_i32_13 = arith.constant 0 : i32
    %67 = vector.broadcast %c0_i32_13 : i32 to vector<16x128xi32>
    %68 = arith.cmpi sge, %66, %67 : vector<16x128xi32>
    %c1_i32_14 = arith.constant 1 : i32
    %69 = vector.broadcast %c1_i32_14 : i32 to vector<16x128xi32>
    %70 = arith.addi %9, %69 : vector<16x128xi32>
    %c16_i32_15 = arith.constant 16 : i32
    %71 = vector.broadcast %c16_i32_15 : i32 to vector<16x128xi32>
    %72 = arith.cmpi slt, %70, %71 : vector<16x128xi32>
    %73 = arith.andi %68, %72 : vector<16x128xi1>
    %c-1_i32_16 = arith.constant -1 : i32
    %74 = vector.broadcast %c-1_i32_16 : i32 to vector<16x128xi32>
    %75 = arith.addi %12, %74 : vector<16x128xi32>
    %c0_i32_17 = arith.constant 0 : i32
    %76 = vector.broadcast %c0_i32_17 : i32 to vector<16x128xi32>
    %77 = arith.cmpi sge, %75, %76 : vector<16x128xi32>
    %c-1_i32_18 = arith.constant -1 : i32
    %78 = vector.broadcast %c-1_i32_18 : i32 to vector<16x128xi32>
    %79 = arith.addi %12, %78 : vector<16x128xi32>
    %c16_i32_19 = arith.constant 16 : i32
    %80 = vector.broadcast %c16_i32_19 : i32 to vector<16x128xi32>
    %81 = arith.cmpi slt, %79, %80 : vector<16x128xi32>
    %82 = arith.andi %77, %81 : vector<16x128xi1>
    %c0_i32_20 = arith.constant 0 : i32
    %83 = vector.broadcast %c0_i32_20 : i32 to vector<16x128xi32>
    %84 = arith.addi %12, %83 : vector<16x128xi32>
    %c0_i32_21 = arith.constant 0 : i32
    %85 = vector.broadcast %c0_i32_21 : i32 to vector<16x128xi32>
    %86 = arith.cmpi sge, %84, %85 : vector<16x128xi32>
    %c0_i32_22 = arith.constant 0 : i32
    %87 = vector.broadcast %c0_i32_22 : i32 to vector<16x128xi32>
    %88 = arith.addi %12, %87 : vector<16x128xi32>
    %c16_i32_23 = arith.constant 16 : i32
    %89 = vector.broadcast %c16_i32_23 : i32 to vector<16x128xi32>
    %90 = arith.cmpi slt, %88, %89 : vector<16x128xi32>
    %91 = arith.andi %86, %90 : vector<16x128xi1>
    %c1_i32_24 = arith.constant 1 : i32
    %92 = vector.broadcast %c1_i32_24 : i32 to vector<16x128xi32>
    %93 = arith.addi %12, %92 : vector<16x128xi32>
    %c0_i32_25 = arith.constant 0 : i32
    %94 = vector.broadcast %c0_i32_25 : i32 to vector<16x128xi32>
    %95 = arith.cmpi sge, %93, %94 : vector<16x128xi32>
    %c1_i32_26 = arith.constant 1 : i32
    %96 = vector.broadcast %c1_i32_26 : i32 to vector<16x128xi32>
    %97 = arith.addi %12, %96 : vector<16x128xi32>
    %c16_i32_27 = arith.constant 16 : i32
    %98 = vector.broadcast %c16_i32_27 : i32 to vector<16x128xi32>
    %99 = arith.cmpi slt, %97, %98 : vector<16x128xi32>
    %100 = arith.andi %95, %99 : vector<16x128xi1>
    %101 = arith.andi %55, %82 : vector<16x128xi1>
    %cst_28 = arith.constant 0.924886405 : f32
    %cst_29 = arith.constant 0.000000e+00 : f32
    %102 = vector.broadcast %cst_28 : f32 to vector<16x128xf32>
    %103 = vector.broadcast %cst_29 : f32 to vector<16x128xf32>
    %104 = arith.select %101, %102, %103 : vector<16x128xi1>, vector<16x128xf32>
    %105 = arith.andi %55, %91 : vector<16x128xi1>
    %cst_30 = arith.constant 0.876158595 : f32
    %cst_31 = arith.constant 0.000000e+00 : f32
    %106 = vector.broadcast %cst_30 : f32 to vector<16x128xf32>
    %107 = vector.broadcast %cst_31 : f32 to vector<16x128xf32>
    %108 = arith.select %105, %106, %107 : vector<16x128xi1>, vector<16x128xf32>
    %109 = arith.andi %55, %100 : vector<16x128xi1>
    %cst_32 = arith.constant 0.924886405 : f32
    %cst_33 = arith.constant 0.000000e+00 : f32
    %110 = vector.broadcast %cst_32 : f32 to vector<16x128xf32>
    %111 = vector.broadcast %cst_33 : f32 to vector<16x128xf32>
    %112 = arith.select %109, %110, %111 : vector<16x128xi1>, vector<16x128xf32>
    %113 = arith.andi %64, %82 : vector<16x128xi1>
    %cst_34 = arith.constant 0.876158595 : f32
    %cst_35 = arith.constant 0.000000e+00 : f32
    %114 = vector.broadcast %cst_34 : f32 to vector<16x128xf32>
    %115 = vector.broadcast %cst_35 : f32 to vector<16x128xf32>
    %116 = arith.select %113, %114, %115 : vector<16x128xi1>, vector<16x128xf32>
    %117 = arith.andi %64, %91 : vector<16x128xi1>
    %cst_36 = arith.constant 0.795820057 : f32
    %cst_37 = arith.constant 0.000000e+00 : f32
    %118 = vector.broadcast %cst_36 : f32 to vector<16x128xf32>
    %119 = vector.broadcast %cst_37 : f32 to vector<16x128xf32>
    %120 = arith.select %117, %118, %119 : vector<16x128xi1>, vector<16x128xf32>
    %121 = arith.andi %64, %100 : vector<16x128xi1>
    %cst_38 = arith.constant 0.876158595 : f32
    %cst_39 = arith.constant 0.000000e+00 : f32
    %122 = vector.broadcast %cst_38 : f32 to vector<16x128xf32>
    %123 = vector.broadcast %cst_39 : f32 to vector<16x128xf32>
    %124 = arith.select %121, %122, %123 : vector<16x128xi1>, vector<16x128xf32>
    %125 = arith.andi %73, %82 : vector<16x128xi1>
    %cst_40 = arith.constant 0.924886405 : f32
    %cst_41 = arith.constant 0.000000e+00 : f32
    %126 = vector.broadcast %cst_40 : f32 to vector<16x128xf32>
    %127 = vector.broadcast %cst_41 : f32 to vector<16x128xf32>
    %128 = arith.select %125, %126, %127 : vector<16x128xi1>, vector<16x128xf32>
    %129 = arith.andi %73, %91 : vector<16x128xi1>
    %cst_42 = arith.constant 0.876158595 : f32
    %cst_43 = arith.constant 0.000000e+00 : f32
    %130 = vector.broadcast %cst_42 : f32 to vector<16x128xf32>
    %131 = vector.broadcast %cst_43 : f32 to vector<16x128xf32>
    %132 = arith.select %129, %130, %131 : vector<16x128xi1>, vector<16x128xf32>
    %133 = arith.andi %73, %100 : vector<16x128xi1>
    %cst_44 = arith.constant 0.924886405 : f32
    %cst_45 = arith.constant 0.000000e+00 : f32
    %134 = vector.broadcast %cst_44 : f32 to vector<16x128xf32>
    %135 = vector.broadcast %cst_45 : f32 to vector<16x128xf32>
    %136 = arith.select %133, %134, %135 : vector<16x128xi1>, vector<16x128xf32>
    %cst_46 = arith.constant 0.000000e+00 : f32
    %137 = vector.broadcast %cst_46 : f32 to vector<16x128xf32>
    %138 = arith.subf %13, %38 : vector<16x128xf32>
    %139 = math.absf %138 : vector<16x128xf32>
    %140 = arith.mulf %104, %139 : vector<16x128xf32>
    %141 = arith.addf %137, %140 : vector<16x128xf32>
    %142 = arith.subf %14, %39 : vector<16x128xf32>
    %143 = math.absf %142 : vector<16x128xf32>
    %144 = arith.mulf %108, %143 : vector<16x128xf32>
    %145 = arith.addf %141, %144 : vector<16x128xf32>
    %146 = arith.subf %15, %40 : vector<16x128xf32>
    %147 = math.absf %146 : vector<16x128xf32>
    %148 = arith.mulf %112, %147 : vector<16x128xf32>
    %149 = arith.addf %145, %148 : vector<16x128xf32>
    %150 = arith.subf %18, %41 : vector<16x128xf32>
    %151 = math.absf %150 : vector<16x128xf32>
    %152 = arith.mulf %116, %151 : vector<16x128xf32>
    %153 = arith.addf %149, %152 : vector<16x128xf32>
    %154 = arith.subf %19, %42 : vector<16x128xf32>
    %155 = math.absf %154 : vector<16x128xf32>
    %156 = arith.mulf %120, %155 : vector<16x128xf32>
    %157 = arith.addf %153, %156 : vector<16x128xf32>
    %158 = arith.subf %20, %43 : vector<16x128xf32>
    %159 = math.absf %158 : vector<16x128xf32>
    %160 = arith.mulf %124, %159 : vector<16x128xf32>
    %161 = arith.addf %157, %160 : vector<16x128xf32>
    %162 = arith.subf %23, %44 : vector<16x128xf32>
    %163 = math.absf %162 : vector<16x128xf32>
    %164 = arith.mulf %128, %163 : vector<16x128xf32>
    %165 = arith.addf %161, %164 : vector<16x128xf32>
    %166 = arith.subf %24, %45 : vector<16x128xf32>
    %167 = math.absf %166 : vector<16x128xf32>
    %168 = arith.mulf %132, %167 : vector<16x128xf32>
    %169 = arith.addf %165, %168 : vector<16x128xf32>
    %170 = arith.subf %25, %46 : vector<16x128xf32>
    %171 = math.absf %170 : vector<16x128xf32>
    %172 = arith.mulf %136, %171 : vector<16x128xf32>
    %173 = arith.addf %169, %172 : vector<16x128xf32>
    %c0_47 = arith.constant 0 : index
    %c0_48 = arith.constant 0 : index
    %c0_49 = arith.constant 0 : index
    %174 = vector.load %arg5[%c0_47, %c0_48, %c0_49] : memref<9x16x128xf32, #tpu.memory_space<vmem>>, vector<1x16x128xf32>
    %175 = vector.shape_cast %174 : vector<1x16x128xf32> to vector<16x128xf32>
    %176 = vector.shape_cast %173 : vector<16x128xf32> to vector<1x16x128xf32>
    tpu.vector_store %arg5[%c0_47, %c0_48, %c0_49], %176 {strides = array<i32>} : memref<9x16x128xf32, #tpu.memory_space<vmem>>, vector<1x16x128xf32>,
    %177 = vector.extract_strided_slice %3 {offsets = [7, 127], sizes = [16, 128], strides = [1, 1]} : vector<32x384xi32> to vector<16x128xi32>
    %c0_50 = arith.constant 0 : index
    %c0_51 = arith.constant 0 : index
    %c0_52 = arith.constant 0 : index
    %178 = vector.load %arg6[%c0_50, %c0_51, %c0_52] : memref<9x16x128xi32, #tpu.memory_space<vmem>>, vector<1x16x128xi32>
    %179 = vector.shape_cast %178 : vector<1x16x128xi32> to vector<16x128xi32>
    %180 = vector.shape_cast %177 : vector<16x128xi32> to vector<1x16x128xi32>
    tpu.vector_store %arg6[%c0_50, %c0_51, %c0_52], %180 {strides = array<i32>} : memref<9x16x128xi32, #tpu.memory_space<vmem>>, vector<1x16x128xi32>,
    %cst_53 = arith.constant 0.000000e+00 : f32
    %181 = vector.broadcast %cst_53 : f32 to vector<16x128xf32>
    %182 = arith.subf %14, %38 : vector<16x128xf32>
    %183 = math.absf %182 : vector<16x128xf32>
    %184 = arith.mulf %104, %183 : vector<16x128xf32>
    %185 = arith.addf %181, %184 : vector<16x128xf32>
    %186 = arith.subf %15, %39 : vector<16x128xf32>
    %187 = math.absf %186 : vector<16x128xf32>
    %188 = arith.mulf %108, %187 : vector<16x128xf32>
    %189 = arith.addf %185, %188 : vector<16x128xf32>
    %190 = arith.subf %16, %40 : vector<16x128xf32>
    %191 = math.absf %190 : vector<16x128xf32>
    %192 = arith.mulf %112, %191 : vector<16x128xf32>
    %193 = arith.addf %189, %192 : vector<16x128xf32>
    %194 = arith.subf %19, %41 : vector<16x128xf32>
    %195 = math.absf %194 : vector<16x128xf32>
    %196 = arith.mulf %116, %195 : vector<16x128xf32>
    %197 = arith.addf %193, %196 : vector<16x128xf32>
    %198 = arith.subf %20, %42 : vector<16x128xf32>
    %199 = math.absf %198 : vector<16x128xf32>
    %200 = arith.mulf %120, %199 : vector<16x128xf32>
    %201 = arith.addf %197, %200 : vector<16x128xf32>
    %202 = arith.subf %21, %43 : vector<16x128xf32>
    %203 = math.absf %202 : vector<16x128xf32>
    %204 = arith.mulf %124, %203 : vector<16x128xf32>
    %205 = arith.addf %201, %204 : vector<16x128xf32>
    %206 = arith.subf %24, %44 : vector<16x128xf32>
    %207 = math.absf %206 : vector<16x128xf32>
    %208 = arith.mulf %128, %207 : vector<16x128xf32>
    %209 = arith.addf %205, %208 : vector<16x128xf32>
    %210 = arith.subf %25, %45 : vector<16x128xf32>
    %211 = math.absf %210 : vector<16x128xf32>
    %212 = arith.mulf %132, %211 : vector<16x128xf32>
    %213 = arith.addf %209, %212 : vector<16x128xf32>
    %214 = arith.subf %26, %46 : vector<16x128xf32>
    %215 = math.absf %214 : vector<16x128xf32>
    %216 = arith.mulf %136, %215 : vector<16x128xf32>
    %217 = arith.addf %213, %216 : vector<16x128xf32>
    %c1 = arith.constant 1 : index
    %c0_54 = arith.constant 0 : index
    %c0_55 = arith.constant 0 : index
    %218 = vector.load %arg5[%c1, %c0_54, %c0_55] : memref<9x16x128xf32, #tpu.memory_space<vmem>>, vector<1x16x128xf32>
    %219 = vector.shape_cast %218 : vector<1x16x128xf32> to vector<16x128xf32>
    %220 = vector.shape_cast %217 : vector<16x128xf32> to vector<1x16x128xf32>
    tpu.vector_store %arg5[%c1, %c0_54, %c0_55], %220 {strides = array<i32>} : memref<9x16x128xf32, #tpu.memory_space<vmem>>, vector<1x16x128xf32>,
    %221 = vector.extract_strided_slice %3 {offsets = [7, 128], sizes = [16, 128], strides = [1, 1]} : vector<32x384xi32> to vector<16x128xi32>
    %c1_56 = arith.constant 1 : index
    %c0_57 = arith.constant 0 : index
    %c0_58 = arith.constant 0 : index
    %222 = vector.load %arg6[%c1_56, %c0_57, %c0_58] : memref<9x16x128xi32, #tpu.memory_space<vmem>>, vector<1x16x128xi32>
    %223 = vector.shape_cast %222 : vector<1x16x128xi32> to vector<16x128xi32>
    %224 = vector.shape_cast %221 : vector<16x128xi32> to vector<1x16x128xi32>
    tpu.vector_store %arg6[%c1_56, %c0_57, %c0_58], %224 {strides = array<i32>} : memref<9x16x128xi32, #tpu.memory_space<vmem>>, vector<1x16x128xi32>,
    %cst_59 = arith.constant 0.000000e+00 : f32
    %225 = vector.broadcast %cst_59 : f32 to vector<16x128xf32>
    %226 = arith.subf %15, %38 : vector<16x128xf32>
    %227 = math.absf %226 : vector<16x128xf32>
    %228 = arith.mulf %104, %227 : vector<16x128xf32>
    %229 = arith.addf %225, %228 : vector<16x128xf32>
    %230 = arith.subf %16, %39 : vector<16x128xf32>
    %231 = math.absf %230 : vector<16x128xf32>
    %232 = arith.mulf %108, %231 : vector<16x128xf32>
    %233 = arith.addf %229, %232 : vector<16x128xf32>
    %234 = arith.subf %17, %40 : vector<16x128xf32>
    %235 = math.absf %234 : vector<16x128xf32>
    %236 = arith.mulf %112, %235 : vector<16x128xf32>
    %237 = arith.addf %233, %236 : vector<16x128xf32>
    %238 = arith.subf %20, %41 : vector<16x128xf32>
    %239 = math.absf %238 : vector<16x128xf32>
    %240 = arith.mulf %116, %239 : vector<16x128xf32>
    %241 = arith.addf %237, %240 : vector<16x128xf32>
    %242 = arith.subf %21, %42 : vector<16x128xf32>
    %243 = math.absf %242 : vector<16x128xf32>
    %244 = arith.mulf %120, %243 : vector<16x128xf32>
    %245 = arith.addf %241, %244 : vector<16x128xf32>
    %246 = arith.subf %22, %43 : vector<16x128xf32>
    %247 = math.absf %246 : vector<16x128xf32>
    %248 = arith.mulf %124, %247 : vector<16x128xf32>
    %249 = arith.addf %245, %248 : vector<16x128xf32>
    %250 = arith.subf %25, %44 : vector<16x128xf32>
    %251 = math.absf %250 : vector<16x128xf32>
    %252 = arith.mulf %128, %251 : vector<16x128xf32>
    %253 = arith.addf %249, %252 : vector<16x128xf32>
    %254 = arith.subf %26, %45 : vector<16x128xf32>
    %255 = math.absf %254 : vector<16x128xf32>
    %256 = arith.mulf %132, %255 : vector<16x128xf32>
    %257 = arith.addf %253, %256 : vector<16x128xf32>
    %258 = arith.subf %27, %46 : vector<16x128xf32>
    %259 = math.absf %258 : vector<16x128xf32>
    %260 = arith.mulf %136, %259 : vector<16x128xf32>
    %261 = arith.addf %257, %260 : vector<16x128xf32>
    %c2 = arith.constant 2 : index
    %c0_60 = arith.constant 0 : index
    %c0_61 = arith.constant 0 : index
    %262 = vector.load %arg5[%c2, %c0_60, %c0_61] : memref<9x16x128xf32, #tpu.memory_space<vmem>>, vector<1x16x128xf32>
    %263 = vector.shape_cast %262 : vector<1x16x128xf32> to vector<16x128xf32>
    %264 = vector.shape_cast %261 : vector<16x128xf32> to vector<1x16x128xf32>
    tpu.vector_store %arg5[%c2, %c0_60, %c0_61], %264 {strides = array<i32>} : memref<9x16x128xf32, #tpu.memory_space<vmem>>, vector<1x16x128xf32>,
    %265 = vector.extract_strided_slice %3 {offsets = [7, 129], sizes = [16, 128], strides = [1, 1]} : vector<32x384xi32> to vector<16x128xi32>
    %c2_62 = arith.constant 2 : index
    %c0_63 = arith.constant 0 : index
    %c0_64 = arith.constant 0 : index
    %266 = vector.load %arg6[%c2_62, %c0_63, %c0_64] : memref<9x16x128xi32, #tpu.memory_space<vmem>>, vector<1x16x128xi32>
    %267 = vector.shape_cast %266 : vector<1x16x128xi32> to vector<16x128xi32>
    %268 = vector.shape_cast %265 : vector<16x128xi32> to vector<1x16x128xi32>
    tpu.vector_store %arg6[%c2_62, %c0_63, %c0_64], %268 {strides = array<i32>} : memref<9x16x128xi32, #tpu.memory_space<vmem>>, vector<1x16x128xi32>,
    %cst_65 = arith.constant 0.000000e+00 : f32
    %269 = vector.broadcast %cst_65 : f32 to vector<16x128xf32>
    %270 = arith.subf %18, %38 : vector<16x128xf32>
    %271 = math.absf %270 : vector<16x128xf32>
    %272 = arith.mulf %104, %271 : vector<16x128xf32>
    %273 = arith.addf %269, %272 : vector<16x128xf32>
    %274 = arith.subf %19, %39 : vector<16x128xf32>
    %275 = math.absf %274 : vector<16x128xf32>
    %276 = arith.mulf %108, %275 : vector<16x128xf32>
    %277 = arith.addf %273, %276 : vector<16x128xf32>
    %278 = arith.subf %20, %40 : vector<16x128xf32>
    %279 = math.absf %278 : vector<16x128xf32>
    %280 = arith.mulf %112, %279 : vector<16x128xf32>
    %281 = arith.addf %277, %280 : vector<16x128xf32>
    %282 = arith.subf %23, %41 : vector<16x128xf32>
    %283 = math.absf %282 : vector<16x128xf32>
    %284 = arith.mulf %116, %283 : vector<16x128xf32>
    %285 = arith.addf %281, %284 : vector<16x128xf32>
    %286 = arith.subf %24, %42 : vector<16x128xf32>
    %287 = math.absf %286 : vector<16x128xf32>
    %288 = arith.mulf %120, %287 : vector<16x128xf32>
    %289 = arith.addf %285, %288 : vector<16x128xf32>
    %290 = arith.subf %25, %43 : vector<16x128xf32>
    %291 = math.absf %290 : vector<16x128xf32>
    %292 = arith.mulf %124, %291 : vector<16x128xf32>
    %293 = arith.addf %289, %292 : vector<16x128xf32>
    %294 = arith.subf %28, %44 : vector<16x128xf32>
    %295 = math.absf %294 : vector<16x128xf32>
    %296 = arith.mulf %128, %295 : vector<16x128xf32>
    %297 = arith.addf %293, %296 : vector<16x128xf32>
    %298 = arith.subf %29, %45 : vector<16x128xf32>
    %299 = math.absf %298 : vector<16x128xf32>
    %300 = arith.mulf %132, %299 : vector<16x128xf32>
    %301 = arith.addf %297, %300 : vector<16x128xf32>
    %302 = arith.subf %30, %46 : vector<16x128xf32>
    %303 = math.absf %302 : vector<16x128xf32>
    %304 = arith.mulf %136, %303 : vector<16x128xf32>
    %305 = arith.addf %301, %304 : vector<16x128xf32>
    %c3 = arith.constant 3 : index
    %c0_66 = arith.constant 0 : index
    %c0_67 = arith.constant 0 : index
    %306 = vector.load %arg5[%c3, %c0_66, %c0_67] : memref<9x16x128xf32, #tpu.memory_space<vmem>>, vector<1x16x128xf32>
    %307 = vector.shape_cast %306 : vector<1x16x128xf32> to vector<16x128xf32>
    %308 = vector.shape_cast %305 : vector<16x128xf32> to vector<1x16x128xf32>
    tpu.vector_store %arg5[%c3, %c0_66, %c0_67], %308 {strides = array<i32>} : memref<9x16x128xf32, #tpu.memory_space<vmem>>, vector<1x16x128xf32>,
    %309 = vector.extract_strided_slice %3 {offsets = [8, 127], sizes = [16, 128], strides = [1, 1]} : vector<32x384xi32> to vector<16x128xi32>
    %c3_68 = arith.constant 3 : index
    %c0_69 = arith.constant 0 : index
    %c0_70 = arith.constant 0 : index
    %310 = vector.load %arg6[%c3_68, %c0_69, %c0_70] : memref<9x16x128xi32, #tpu.memory_space<vmem>>, vector<1x16x128xi32>
    %311 = vector.shape_cast %310 : vector<1x16x128xi32> to vector<16x128xi32>
    %312 = vector.shape_cast %309 : vector<16x128xi32> to vector<1x16x128xi32>
    tpu.vector_store %arg6[%c3_68, %c0_69, %c0_70], %312 {strides = array<i32>} : memref<9x16x128xi32, #tpu.memory_space<vmem>>, vector<1x16x128xi32>,
    %cst_71 = arith.constant 0.000000e+00 : f32
    %313 = vector.broadcast %cst_71 : f32 to vector<16x128xf32>
    %314 = arith.subf %19, %38 : vector<16x128xf32>
    %315 = math.absf %314 : vector<16x128xf32>
    %316 = arith.mulf %104, %315 : vector<16x128xf32>
    %317 = arith.addf %313, %316 : vector<16x128xf32>
    %318 = arith.subf %20, %39 : vector<16x128xf32>
    %319 = math.absf %318 : vector<16x128xf32>
    %320 = arith.mulf %108, %319 : vector<16x128xf32>
    %321 = arith.addf %317, %320 : vector<16x128xf32>
    %322 = arith.subf %21, %40 : vector<16x128xf32>
    %323 = math.absf %322 : vector<16x128xf32>
    %324 = arith.mulf %112, %323 : vector<16x128xf32>
    %325 = arith.addf %321, %324 : vector<16x128xf32>
    %326 = arith.subf %24, %41 : vector<16x128xf32>
    %327 = math.absf %326 : vector<16x128xf32>
    %328 = arith.mulf %116, %327 : vector<16x128xf32>
    %329 = arith.addf %325, %328 : vector<16x128xf32>
    %330 = arith.subf %25, %42 : vector<16x128xf32>
    %331 = math.absf %330 : vector<16x128xf32>
    %332 = arith.mulf %120, %331 : vector<16x128xf32>
    %333 = arith.addf %329, %332 : vector<16x128xf32>
    %334 = arith.subf %26, %43 : vector<16x128xf32>
    %335 = math.absf %334 : vector<16x128xf32>
    %336 = arith.mulf %124, %335 : vector<16x128xf32>
    %337 = arith.addf %333, %336 : vector<16x128xf32>
    %338 = arith.subf %29, %44 : vector<16x128xf32>
    %339 = math.absf %338 : vector<16x128xf32>
    %340 = arith.mulf %128, %339 : vector<16x128xf32>
    %341 = arith.addf %337, %340 : vector<16x128xf32>
    %342 = arith.subf %30, %45 : vector<16x128xf32>
    %343 = math.absf %342 : vector<16x128xf32>
    %344 = arith.mulf %132, %343 : vector<16x128xf32>
    %345 = arith.addf %341, %344 : vector<16x128xf32>
    %346 = arith.subf %31, %46 : vector<16x128xf32>
    %347 = math.absf %346 : vector<16x128xf32>
    %348 = arith.mulf %136, %347 : vector<16x128xf32>
    %349 = arith.addf %345, %348 : vector<16x128xf32>
    %c4 = arith.constant 4 : index
    %c0_72 = arith.constant 0 : index
    %c0_73 = arith.constant 0 : index
    %350 = vector.load %arg5[%c4, %c0_72, %c0_73] : memref<9x16x128xf32, #tpu.memory_space<vmem>>, vector<1x16x128xf32>
    %351 = vector.shape_cast %350 : vector<1x16x128xf32> to vector<16x128xf32>
    %352 = vector.shape_cast %349 : vector<16x128xf32> to vector<1x16x128xf32>
    tpu.vector_store %arg5[%c4, %c0_72, %c0_73], %352 {strides = array<i32>} : memref<9x16x128xf32, #tpu.memory_space<vmem>>, vector<1x16x128xf32>,
    %353 = vector.extract_strided_slice %3 {offsets = [8, 128], sizes = [16, 128], strides = [1, 1]} : vector<32x384xi32> to vector<16x128xi32>
    %c4_74 = arith.constant 4 : index
    %c0_75 = arith.constant 0 : index
    %c0_76 = arith.constant 0 : index
    %354 = vector.load %arg6[%c4_74, %c0_75, %c0_76] : memref<9x16x128xi32, #tpu.memory_space<vmem>>, vector<1x16x128xi32>
    %355 = vector.shape_cast %354 : vector<1x16x128xi32> to vector<16x128xi32>
    %356 = vector.shape_cast %353 : vector<16x128xi32> to vector<1x16x128xi32>
    tpu.vector_store %arg6[%c4_74, %c0_75, %c0_76], %356 {strides = array<i32>} : memref<9x16x128xi32, #tpu.memory_space<vmem>>, vector<1x16x128xi32>,
    %cst_77 = arith.constant 0.000000e+00 : f32
    %357 = vector.broadcast %cst_77 : f32 to vector<16x128xf32>
    %358 = arith.subf %20, %38 : vector<16x128xf32>
    %359 = math.absf %358 : vector<16x128xf32>
    %360 = arith.mulf %104, %359 : vector<16x128xf32>
    %361 = arith.addf %357, %360 : vector<16x128xf32>
    %362 = arith.subf %21, %39 : vector<16x128xf32>
    %363 = math.absf %362 : vector<16x128xf32>
    %364 = arith.mulf %108, %363 : vector<16x128xf32>
    %365 = arith.addf %361, %364 : vector<16x128xf32>
    %366 = arith.subf %22, %40 : vector<16x128xf32>
    %367 = math.absf %366 : vector<16x128xf32>
    %368 = arith.mulf %112, %367 : vector<16x128xf32>
    %369 = arith.addf %365, %368 : vector<16x128xf32>
    %370 = arith.subf %25, %41 : vector<16x128xf32>
    %371 = math.absf %370 : vector<16x128xf32>
    %372 = arith.mulf %116, %371 : vector<16x128xf32>
    %373 = arith.addf %369, %372 : vector<16x128xf32>
    %374 = arith.subf %26, %42 : vector<16x128xf32>
    %375 = math.absf %374 : vector<16x128xf32>
    %376 = arith.mulf %120, %375 : vector<16x128xf32>
    %377 = arith.addf %373, %376 : vector<16x128xf32>
    %378 = arith.subf %27, %43 : vector<16x128xf32>
    %379 = math.absf %378 : vector<16x128xf32>
    %380 = arith.mulf %124, %379 : vector<16x128xf32>
    %381 = arith.addf %377, %380 : vector<16x128xf32>
    %382 = arith.subf %30, %44 : vector<16x128xf32>
    %383 = math.absf %382 : vector<16x128xf32>
    %384 = arith.mulf %128, %383 : vector<16x128xf32>
    %385 = arith.addf %381, %384 : vector<16x128xf32>
    %386 = arith.subf %31, %45 : vector<16x128xf32>
    %387 = math.absf %386 : vector<16x128xf32>
    %388 = arith.mulf %132, %387 : vector<16x128xf32>
    %389 = arith.addf %385, %388 : vector<16x128xf32>
    %390 = arith.subf %32, %46 : vector<16x128xf32>
    %391 = math.absf %390 : vector<16x128xf32>
    %392 = arith.mulf %136, %391 : vector<16x128xf32>
    %393 = arith.addf %389, %392 : vector<16x128xf32>
    %c5 = arith.constant 5 : index
    %c0_78 = arith.constant 0 : index
    %c0_79 = arith.constant 0 : index
    %394 = vector.load %arg5[%c5, %c0_78, %c0_79] : memref<9x16x128xf32, #tpu.memory_space<vmem>>, vector<1x16x128xf32>
    %395 = vector.shape_cast %394 : vector<1x16x128xf32> to vector<16x128xf32>
    %396 = vector.shape_cast %393 : vector<16x128xf32> to vector<1x16x128xf32>
    tpu.vector_store %arg5[%c5, %c0_78, %c0_79], %396 {strides = array<i32>} : memref<9x16x128xf32, #tpu.memory_space<vmem>>, vector<1x16x128xf32>,
    %397 = vector.extract_strided_slice %3 {offsets = [8, 129], sizes = [16, 128], strides = [1, 1]} : vector<32x384xi32> to vector<16x128xi32>
    %c5_80 = arith.constant 5 : index
    %c0_81 = arith.constant 0 : index
    %c0_82 = arith.constant 0 : index
    %398 = vector.load %arg6[%c5_80, %c0_81, %c0_82] : memref<9x16x128xi32, #tpu.memory_space<vmem>>, vector<1x16x128xi32>
    %399 = vector.shape_cast %398 : vector<1x16x128xi32> to vector<16x128xi32>
    %400 = vector.shape_cast %397 : vector<16x128xi32> to vector<1x16x128xi32>
    tpu.vector_store %arg6[%c5_80, %c0_81, %c0_82], %400 {strides = array<i32>} : memref<9x16x128xi32, #tpu.memory_space<vmem>>, vector<1x16x128xi32>,
    %cst_83 = arith.constant 0.000000e+00 : f32
    %401 = vector.broadcast %cst_83 : f32 to vector<16x128xf32>
    %402 = arith.subf %23, %38 : vector<16x128xf32>
    %403 = math.absf %402 : vector<16x128xf32>
    %404 = arith.mulf %104, %403 : vector<16x128xf32>
    %405 = arith.addf %401, %404 : vector<16x128xf32>
    %406 = arith.subf %24, %39 : vector<16x128xf32>
    %407 = math.absf %406 : vector<16x128xf32>
    %408 = arith.mulf %108, %407 : vector<16x128xf32>
    %409 = arith.addf %405, %408 : vector<16x128xf32>
    %410 = arith.subf %25, %40 : vector<16x128xf32>
    %411 = math.absf %410 : vector<16x128xf32>
    %412 = arith.mulf %112, %411 : vector<16x128xf32>
    %413 = arith.addf %409, %412 : vector<16x128xf32>
    %414 = arith.subf %28, %41 : vector<16x128xf32>
    %415 = math.absf %414 : vector<16x128xf32>
    %416 = arith.mulf %116, %415 : vector<16x128xf32>
    %417 = arith.addf %413, %416 : vector<16x128xf32>
    %418 = arith.subf %29, %42 : vector<16x128xf32>
    %419 = math.absf %418 : vector<16x128xf32>
    %420 = arith.mulf %120, %419 : vector<16x128xf32>
    %421 = arith.addf %417, %420 : vector<16x128xf32>
    %422 = arith.subf %30, %43 : vector<16x128xf32>
    %423 = math.absf %422 : vector<16x128xf32>
    %424 = arith.mulf %124, %423 : vector<16x128xf32>
    %425 = arith.addf %421, %424 : vector<16x128xf32>
    %426 = arith.subf %33, %44 : vector<16x128xf32>
    %427 = math.absf %426 : vector<16x128xf32>
    %428 = arith.mulf %128, %427 : vector<16x128xf32>
    %429 = arith.addf %425, %428 : vector<16x128xf32>
    %430 = arith.subf %34, %45 : vector<16x128xf32>
    %431 = math.absf %430 : vector<16x128xf32>
    %432 = arith.mulf %132, %431 : vector<16x128xf32>
    %433 = arith.addf %429, %432 : vector<16x128xf32>
    %434 = arith.subf %35, %46 : vector<16x128xf32>
    %435 = math.absf %434 : vector<16x128xf32>
    %436 = arith.mulf %136, %435 : vector<16x128xf32>
    %437 = arith.addf %433, %436 : vector<16x128xf32>
    %c6 = arith.constant 6 : index
    %c0_84 = arith.constant 0 : index
    %c0_85 = arith.constant 0 : index
    %438 = vector.load %arg5[%c6, %c0_84, %c0_85] : memref<9x16x128xf32, #tpu.memory_space<vmem>>, vector<1x16x128xf32>
    %439 = vector.shape_cast %438 : vector<1x16x128xf32> to vector<16x128xf32>
    %440 = vector.shape_cast %437 : vector<16x128xf32> to vector<1x16x128xf32>
    tpu.vector_store %arg5[%c6, %c0_84, %c0_85], %440 {strides = array<i32>} : memref<9x16x128xf32, #tpu.memory_space<vmem>>, vector<1x16x128xf32>,
    %441 = vector.extract_strided_slice %3 {offsets = [9, 127], sizes = [16, 128], strides = [1, 1]} : vector<32x384xi32> to vector<16x128xi32>
    %c6_86 = arith.constant 6 : index
    %c0_87 = arith.constant 0 : index
    %c0_88 = arith.constant 0 : index
    %442 = vector.load %arg6[%c6_86, %c0_87, %c0_88] : memref<9x16x128xi32, #tpu.memory_space<vmem>>, vector<1x16x128xi32>
    %443 = vector.shape_cast %442 : vector<1x16x128xi32> to vector<16x128xi32>
    %444 = vector.shape_cast %441 : vector<16x128xi32> to vector<1x16x128xi32>
    tpu.vector_store %arg6[%c6_86, %c0_87, %c0_88], %444 {strides = array<i32>} : memref<9x16x128xi32, #tpu.memory_space<vmem>>, vector<1x16x128xi32>,
    %cst_89 = arith.constant 0.000000e+00 : f32
    %445 = vector.broadcast %cst_89 : f32 to vector<16x128xf32>
    %446 = arith.subf %24, %38 : vector<16x128xf32>
    %447 = math.absf %446 : vector<16x128xf32>
    %448 = arith.mulf %104, %447 : vector<16x128xf32>
    %449 = arith.addf %445, %448 : vector<16x128xf32>
    %450 = arith.subf %25, %39 : vector<16x128xf32>
    %451 = math.absf %450 : vector<16x128xf32>
    %452 = arith.mulf %108, %451 : vector<16x128xf32>
    %453 = arith.addf %449, %452 : vector<16x128xf32>
    %454 = arith.subf %26, %40 : vector<16x128xf32>
    %455 = math.absf %454 : vector<16x128xf32>
    %456 = arith.mulf %112, %455 : vector<16x128xf32>
    %457 = arith.addf %453, %456 : vector<16x128xf32>
    %458 = arith.subf %29, %41 : vector<16x128xf32>
    %459 = math.absf %458 : vector<16x128xf32>
    %460 = arith.mulf %116, %459 : vector<16x128xf32>
    %461 = arith.addf %457, %460 : vector<16x128xf32>
    %462 = arith.subf %30, %42 : vector<16x128xf32>
    %463 = math.absf %462 : vector<16x128xf32>
    %464 = arith.mulf %120, %463 : vector<16x128xf32>
    %465 = arith.addf %461, %464 : vector<16x128xf32>
    %466 = arith.subf %31, %43 : vector<16x128xf32>
    %467 = math.absf %466 : vector<16x128xf32>
    %468 = arith.mulf %124, %467 : vector<16x128xf32>
    %469 = arith.addf %465, %468 : vector<16x128xf32>
    %470 = arith.subf %34, %44 : vector<16x128xf32>
    %471 = math.absf %470 : vector<16x128xf32>
    %472 = arith.mulf %128, %471 : vector<16x128xf32>
    %473 = arith.addf %469, %472 : vector<16x128xf32>
    %474 = arith.subf %35, %45 : vector<16x128xf32>
    %475 = math.absf %474 : vector<16x128xf32>
    %476 = arith.mulf %132, %475 : vector<16x128xf32>
    %477 = arith.addf %473, %476 : vector<16x128xf32>
    %478 = arith.subf %36, %46 : vector<16x128xf32>
    %479 = math.absf %478 : vector<16x128xf32>
    %480 = arith.mulf %136, %479 : vector<16x128xf32>
    %481 = arith.addf %477, %480 : vector<16x128xf32>
    %c7 = arith.constant 7 : index
    %c0_90 = arith.constant 0 : index
    %c0_91 = arith.constant 0 : index
    %482 = vector.load %arg5[%c7, %c0_90, %c0_91] : memref<9x16x128xf32, #tpu.memory_space<vmem>>, vector<1x16x128xf32>
    %483 = vector.shape_cast %482 : vector<1x16x128xf32> to vector<16x128xf32>
    %484 = vector.shape_cast %481 : vector<16x128xf32> to vector<1x16x128xf32>
    tpu.vector_store %arg5[%c7, %c0_90, %c0_91], %484 {strides = array<i32>} : memref<9x16x128xf32, #tpu.memory_space<vmem>>, vector<1x16x128xf32>,
    %485 = vector.extract_strided_slice %3 {offsets = [9, 128], sizes = [16, 128], strides = [1, 1]} : vector<32x384xi32> to vector<16x128xi32>
    %c7_92 = arith.constant 7 : index
    %c0_93 = arith.constant 0 : index
    %c0_94 = arith.constant 0 : index
    %486 = vector.load %arg6[%c7_92, %c0_93, %c0_94] : memref<9x16x128xi32, #tpu.memory_space<vmem>>, vector<1x16x128xi32>
    %487 = vector.shape_cast %486 : vector<1x16x128xi32> to vector<16x128xi32>
    %488 = vector.shape_cast %485 : vector<16x128xi32> to vector<1x16x128xi32>
    tpu.vector_store %arg6[%c7_92, %c0_93, %c0_94], %488 {strides = array<i32>} : memref<9x16x128xi32, #tpu.memory_space<vmem>>, vector<1x16x128xi32>,
    %cst_95 = arith.constant 0.000000e+00 : f32
    %489 = vector.broadcast %cst_95 : f32 to vector<16x128xf32>
    %490 = arith.subf %25, %38 : vector<16x128xf32>
    %491 = math.absf %490 : vector<16x128xf32>
    %492 = arith.mulf %104, %491 : vector<16x128xf32>
    %493 = arith.addf %489, %492 : vector<16x128xf32>
    %494 = arith.subf %26, %39 : vector<16x128xf32>
    %495 = math.absf %494 : vector<16x128xf32>
    %496 = arith.mulf %108, %495 : vector<16x128xf32>
    %497 = arith.addf %493, %496 : vector<16x128xf32>
    %498 = arith.subf %27, %40 : vector<16x128xf32>
    %499 = math.absf %498 : vector<16x128xf32>
    %500 = arith.mulf %112, %499 : vector<16x128xf32>
    %501 = arith.addf %497, %500 : vector<16x128xf32>
    %502 = arith.subf %30, %41 : vector<16x128xf32>
    %503 = math.absf %502 : vector<16x128xf32>
    %504 = arith.mulf %116, %503 : vector<16x128xf32>
    %505 = arith.addf %501, %504 : vector<16x128xf32>
    %506 = arith.subf %31, %42 : vector<16x128xf32>
    %507 = math.absf %506 : vector<16x128xf32>
    %508 = arith.mulf %120, %507 : vector<16x128xf32>
    %509 = arith.addf %505, %508 : vector<16x128xf32>
    %510 = arith.subf %32, %43 : vector<16x128xf32>
    %511 = math.absf %510 : vector<16x128xf32>
    %512 = arith.mulf %124, %511 : vector<16x128xf32>
    %513 = arith.addf %509, %512 : vector<16x128xf32>
    %514 = arith.subf %35, %44 : vector<16x128xf32>
    %515 = math.absf %514 : vector<16x128xf32>
    %516 = arith.mulf %128, %515 : vector<16x128xf32>
    %517 = arith.addf %513, %516 : vector<16x128xf32>
    %518 = arith.subf %36, %45 : vector<16x128xf32>
    %519 = math.absf %518 : vector<16x128xf32>
    %520 = arith.mulf %132, %519 : vector<16x128xf32>
    %521 = arith.addf %517, %520 : vector<16x128xf32>
    %522 = arith.subf %37, %46 : vector<16x128xf32>
    %523 = math.absf %522 : vector<16x128xf32>
    %524 = arith.mulf %136, %523 : vector<16x128xf32>
    %525 = arith.addf %521, %524 : vector<16x128xf32>
    %c8 = arith.constant 8 : index
    %c0_96 = arith.constant 0 : index
    %c0_97 = arith.constant 0 : index
    %526 = vector.load %arg5[%c8, %c0_96, %c0_97] : memref<9x16x128xf32, #tpu.memory_space<vmem>>, vector<1x16x128xf32>
    %527 = vector.shape_cast %526 : vector<1x16x128xf32> to vector<16x128xf32>
    %528 = vector.shape_cast %525 : vector<16x128xf32> to vector<1x16x128xf32>
    tpu.vector_store %arg5[%c8, %c0_96, %c0_97], %528 {strides = array<i32>} : memref<9x16x128xf32, #tpu.memory_space<vmem>>, vector<1x16x128xf32>,
    %529 = vector.extract_strided_slice %3 {offsets = [9, 129], sizes = [16, 128], strides = [1, 1]} : vector<32x384xi32> to vector<16x128xi32>
    %c8_98 = arith.constant 8 : index
    %c0_99 = arith.constant 0 : index
    %c0_100 = arith.constant 0 : index
    %530 = vector.load %arg6[%c8_98, %c0_99, %c0_100] : memref<9x16x128xi32, #tpu.memory_space<vmem>>, vector<1x16x128xi32>
    %531 = vector.shape_cast %530 : vector<1x16x128xi32> to vector<16x128xi32>
    %532 = vector.shape_cast %529 : vector<16x128xi32> to vector<1x16x128xi32>
    tpu.vector_store %arg6[%c8_98, %c0_99, %c0_100], %532 {strides = array<i32>} : memref<9x16x128xi32, #tpu.memory_space<vmem>>, vector<1x16x128xi32>,
    %cst_101 = arith.constant -1.000000e+00 : f32
    %533 = vector.broadcast %cst_101 : f32 to vector<16x128xf32>
    %c-1_i32_102 = arith.constant -1 : i32
    %534 = vector.broadcast %c-1_i32_102 : i32 to vector<16x128xi32>
    %cst_103 = arith.constant 3.000000e+38 : f32
    %535 = vector.broadcast %cst_103 : f32 to vector<16x128xf32>
    %c0_i32_104 = arith.constant 0 : i32
    %536 = vector.broadcast %c0_i32_104 : i32 to vector<16x128xi32>
    %c0_i32_105 = arith.constant 0 : i32
    %537 = vector.broadcast %c0_i32_105 : i32 to vector<16x128xi32>
    %c0_i32_106 = arith.constant 0 : i32
    %538 = arith.index_cast %c0_i32_106 : i32 to index
    %c0_107 = arith.constant 0 : index
    %c0_108 = arith.constant 0 : index
    %539 = vector.load %arg5[%538, %c0_107, %c0_108] : memref<9x16x128xf32, #tpu.memory_space<vmem>>, vector<1x16x128xf32>
    %540 = vector.shape_cast %539 : vector<1x16x128xf32> to vector<16x128xf32>
    %541 = arith.index_cast %c0_i32_106 : i32 to index
    %c0_109 = arith.constant 0 : index
    %c0_110 = arith.constant 0 : index
    %542 = vector.load %arg6[%541, %c0_109, %c0_110] : memref<9x16x128xi32, #tpu.memory_space<vmem>>, vector<1x16x128xi32>
    %543 = vector.shape_cast %542 : vector<1x16x128xi32> to vector<16x128xi32>
    %544 = arith.cmpf ogt, %540, %533 : vector<16x128xf32>
    %545 = arith.cmpf oeq, %540, %533 : vector<16x128xf32>
    %546 = vector.broadcast %c0_i32_106 : i32 to vector<16x128xi32>
    %547 = arith.cmpi sgt, %546, %534 : vector<16x128xi32>
    %548 = arith.andi %545, %547 : vector<16x128xi1>
    %549 = arith.ori %544, %548 : vector<16x128xi1>
    %550 = arith.cmpf olt, %540, %535 : vector<16x128xf32>
    %551 = arith.andi %549, %550 : vector<16x128xi1>
    %552 = arith.select %551, %540, %535 : vector<16x128xi1>, vector<16x128xf32>
    %553 = vector.broadcast %c0_i32_106 : i32 to vector<16x128xi32>
    %554 = arith.select %551, %553, %536 : vector<16x128xi1>, vector<16x128xi32>
    %555 = arith.select %551, %543, %537 : vector<16x128xi1>, vector<16x128xi32>
    %c1_i32_111 = arith.constant 1 : i32
    %556 = arith.index_cast %c1_i32_111 : i32 to index
    %c0_112 = arith.constant 0 : index
    %c0_113 = arith.constant 0 : index
    %557 = vector.load %arg5[%556, %c0_112, %c0_113] : memref<9x16x128xf32, #tpu.memory_space<vmem>>, vector<1x16x128xf32>
    %558 = vector.shape_cast %557 : vector<1x16x128xf32> to vector<16x128xf32>
    %559 = arith.index_cast %c1_i32_111 : i32 to index
    %c0_114 = arith.constant 0 : index
    %c0_115 = arith.constant 0 : index
    %560 = vector.load %arg6[%559, %c0_114, %c0_115] : memref<9x16x128xi32, #tpu.memory_space<vmem>>, vector<1x16x128xi32>
    %561 = vector.shape_cast %560 : vector<1x16x128xi32> to vector<16x128xi32>
    %562 = arith.cmpf ogt, %558, %533 : vector<16x128xf32>
    %563 = arith.cmpf oeq, %558, %533 : vector<16x128xf32>
    %564 = vector.broadcast %c1_i32_111 : i32 to vector<16x128xi32>
    %565 = arith.cmpi sgt, %564, %534 : vector<16x128xi32>
    %566 = arith.andi %563, %565 : vector<16x128xi1>
    %567 = arith.ori %562, %566 : vector<16x128xi1>
    %568 = arith.cmpf olt, %558, %552 : vector<16x128xf32>
    %569 = arith.andi %567, %568 : vector<16x128xi1>
    %570 = arith.select %569, %558, %552 : vector<16x128xi1>, vector<16x128xf32>
    %571 = vector.broadcast %c1_i32_111 : i32 to vector<16x128xi32>
    %572 = arith.select %569, %571, %554 : vector<16x128xi1>, vector<16x128xi32>
    %573 = arith.select %569, %561, %555 : vector<16x128xi1>, vector<16x128xi32>
    %c2_i32 = arith.constant 2 : i32
    %574 = arith.index_cast %c2_i32 : i32 to index
    %c0_116 = arith.constant 0 : index
    %c0_117 = arith.constant 0 : index
    %575 = vector.load %arg5[%574, %c0_116, %c0_117] : memref<9x16x128xf32, #tpu.memory_space<vmem>>, vector<1x16x128xf32>
    %576 = vector.shape_cast %575 : vector<1x16x128xf32> to vector<16x128xf32>
    %577 = arith.index_cast %c2_i32 : i32 to index
    %c0_118 = arith.constant 0 : index
    %c0_119 = arith.constant 0 : index
    %578 = vector.load %arg6[%577, %c0_118, %c0_119] : memref<9x16x128xi32, #tpu.memory_space<vmem>>, vector<1x16x128xi32>
    %579 = vector.shape_cast %578 : vector<1x16x128xi32> to vector<16x128xi32>
    %580 = arith.cmpf ogt, %576, %533 : vector<16x128xf32>
    %581 = arith.cmpf oeq, %576, %533 : vector<16x128xf32>
    %582 = vector.broadcast %c2_i32 : i32 to vector<16x128xi32>
    %583 = arith.cmpi sgt, %582, %534 : vector<16x128xi32>
    %584 = arith.andi %581, %583 : vector<16x128xi1>
    %585 = arith.ori %580, %584 : vector<16x128xi1>
    %586 = arith.cmpf olt, %576, %570 : vector<16x128xf32>
    %587 = arith.andi %585, %586 : vector<16x128xi1>
    %588 = arith.select %587, %576, %570 : vector<16x128xi1>, vector<16x128xf32>
    %589 = vector.broadcast %c2_i32 : i32 to vector<16x128xi32>
    %590 = arith.select %587, %589, %572 : vector<16x128xi1>, vector<16x128xi32>
    %591 = arith.select %587, %579, %573 : vector<16x128xi1>, vector<16x128xi32>
    %c3_i32 = arith.constant 3 : i32
    %592 = arith.index_cast %c3_i32 : i32 to index
    %c0_120 = arith.constant 0 : index
    %c0_121 = arith.constant 0 : index
    %593 = vector.load %arg5[%592, %c0_120, %c0_121] : memref<9x16x128xf32, #tpu.memory_space<vmem>>, vector<1x16x128xf32>
    %594 = vector.shape_cast %593 : vector<1x16x128xf32> to vector<16x128xf32>
    %595 = arith.index_cast %c3_i32 : i32 to index
    %c0_122 = arith.constant 0 : index
    %c0_123 = arith.constant 0 : index
    %596 = vector.load %arg6[%595, %c0_122, %c0_123] : memref<9x16x128xi32, #tpu.memory_space<vmem>>, vector<1x16x128xi32>
    %597 = vector.shape_cast %596 : vector<1x16x128xi32> to vector<16x128xi32>
    %598 = arith.cmpf ogt, %594, %533 : vector<16x128xf32>
    %599 = arith.cmpf oeq, %594, %533 : vector<16x128xf32>
    %600 = vector.broadcast %c3_i32 : i32 to vector<16x128xi32>
    %601 = arith.cmpi sgt, %600, %534 : vector<16x128xi32>
    %602 = arith.andi %599, %601 : vector<16x128xi1>
    %603 = arith.ori %598, %602 : vector<16x128xi1>
    %604 = arith.cmpf olt, %594, %588 : vector<16x128xf32>
    %605 = arith.andi %603, %604 : vector<16x128xi1>
    %606 = arith.select %605, %594, %588 : vector<16x128xi1>, vector<16x128xf32>
    %607 = vector.broadcast %c3_i32 : i32 to vector<16x128xi32>
    %608 = arith.select %605, %607, %590 : vector<16x128xi1>, vector<16x128xi32>
    %609 = arith.select %605, %597, %591 : vector<16x128xi1>, vector<16x128xi32>
    %c4_i32 = arith.constant 4 : i32
    %610 = arith.index_cast %c4_i32 : i32 to index
    %c0_124 = arith.constant 0 : index
    %c0_125 = arith.constant 0 : index
    %611 = vector.load %arg5[%610, %c0_124, %c0_125] : memref<9x16x128xf32, #tpu.memory_space<vmem>>, vector<1x16x128xf32>
    %612 = vector.shape_cast %611 : vector<1x16x128xf32> to vector<16x128xf32>
    %613 = arith.index_cast %c4_i32 : i32 to index
    %c0_126 = arith.constant 0 : index
    %c0_127 = arith.constant 0 : index
    %614 = vector.load %arg6[%613, %c0_126, %c0_127] : memref<9x16x128xi32, #tpu.memory_space<vmem>>, vector<1x16x128xi32>
    %615 = vector.shape_cast %614 : vector<1x16x128xi32> to vector<16x128xi32>
    %616 = arith.cmpf ogt, %612, %533 : vector<16x128xf32>
    %617 = arith.cmpf oeq, %612, %533 : vector<16x128xf32>
    %618 = vector.broadcast %c4_i32 : i32 to vector<16x128xi32>
    %619 = arith.cmpi sgt, %618, %534 : vector<16x128xi32>
    %620 = arith.andi %617, %619 : vector<16x128xi1>
    %621 = arith.ori %616, %620 : vector<16x128xi1>
    %622 = arith.cmpf olt, %612, %606 : vector<16x128xf32>
    %623 = arith.andi %621, %622 : vector<16x128xi1>
    %624 = arith.select %623, %612, %606 : vector<16x128xi1>, vector<16x128xf32>
    %625 = vector.broadcast %c4_i32 : i32 to vector<16x128xi32>
    %626 = arith.select %623, %625, %608 : vector<16x128xi1>, vector<16x128xi32>
    %627 = arith.select %623, %615, %609 : vector<16x128xi1>, vector<16x128xi32>
    %c5_i32 = arith.constant 5 : i32
    %628 = arith.index_cast %c5_i32 : i32 to index
    %c0_128 = arith.constant 0 : index
    %c0_129 = arith.constant 0 : index
    %629 = vector.load %arg5[%628, %c0_128, %c0_129] : memref<9x16x128xf32, #tpu.memory_space<vmem>>, vector<1x16x128xf32>
    %630 = vector.shape_cast %629 : vector<1x16x128xf32> to vector<16x128xf32>
    %631 = arith.index_cast %c5_i32 : i32 to index
    %c0_130 = arith.constant 0 : index
    %c0_131 = arith.constant 0 : index
    %632 = vector.load %arg6[%631, %c0_130, %c0_131] : memref<9x16x128xi32, #tpu.memory_space<vmem>>, vector<1x16x128xi32>
    %633 = vector.shape_cast %632 : vector<1x16x128xi32> to vector<16x128xi32>
    %634 = arith.cmpf ogt, %630, %533 : vector<16x128xf32>
    %635 = arith.cmpf oeq, %630, %533 : vector<16x128xf32>
    %636 = vector.broadcast %c5_i32 : i32 to vector<16x128xi32>
    %637 = arith.cmpi sgt, %636, %534 : vector<16x128xi32>
    %638 = arith.andi %635, %637 : vector<16x128xi1>
    %639 = arith.ori %634, %638 : vector<16x128xi1>
    %640 = arith.cmpf olt, %630, %624 : vector<16x128xf32>
    %641 = arith.andi %639, %640 : vector<16x128xi1>
    %642 = arith.select %641, %630, %624 : vector<16x128xi1>, vector<16x128xf32>
    %643 = vector.broadcast %c5_i32 : i32 to vector<16x128xi32>
    %644 = arith.select %641, %643, %626 : vector<16x128xi1>, vector<16x128xi32>
    %645 = arith.select %641, %633, %627 : vector<16x128xi1>, vector<16x128xi32>
    %c6_i32 = arith.constant 6 : i32
    %646 = arith.index_cast %c6_i32 : i32 to index
    %c0_132 = arith.constant 0 : index
    %c0_133 = arith.constant 0 : index
    %647 = vector.load %arg5[%646, %c0_132, %c0_133] : memref<9x16x128xf32, #tpu.memory_space<vmem>>, vector<1x16x128xf32>
    %648 = vector.shape_cast %647 : vector<1x16x128xf32> to vector<16x128xf32>
    %649 = arith.index_cast %c6_i32 : i32 to index
    %c0_134 = arith.constant 0 : index
    %c0_135 = arith.constant 0 : index
    %650 = vector.load %arg6[%649, %c0_134, %c0_135] : memref<9x16x128xi32, #tpu.memory_space<vmem>>, vector<1x16x128xi32>
    %651 = vector.shape_cast %650 : vector<1x16x128xi32> to vector<16x128xi32>
    %652 = arith.cmpf ogt, %648, %533 : vector<16x128xf32>
    %653 = arith.cmpf oeq, %648, %533 : vector<16x128xf32>
    %654 = vector.broadcast %c6_i32 : i32 to vector<16x128xi32>
    %655 = arith.cmpi sgt, %654, %534 : vector<16x128xi32>
    %656 = arith.andi %653, %655 : vector<16x128xi1>
    %657 = arith.ori %652, %656 : vector<16x128xi1>
    %658 = arith.cmpf olt, %648, %642 : vector<16x128xf32>
    %659 = arith.andi %657, %658 : vector<16x128xi1>
    %660 = arith.select %659, %648, %642 : vector<16x128xi1>, vector<16x128xf32>
    %661 = vector.broadcast %c6_i32 : i32 to vector<16x128xi32>
    %662 = arith.select %659, %661, %644 : vector<16x128xi1>, vector<16x128xi32>
    %663 = arith.select %659, %651, %645 : vector<16x128xi1>, vector<16x128xi32>
    %c7_i32 = arith.constant 7 : i32
    %664 = arith.index_cast %c7_i32 : i32 to index
    %c0_136 = arith.constant 0 : index
    %c0_137 = arith.constant 0 : index
    %665 = vector.load %arg5[%664, %c0_136, %c0_137] : memref<9x16x128xf32, #tpu.memory_space<vmem>>, vector<1x16x128xf32>
    %666 = vector.shape_cast %665 : vector<1x16x128xf32> to vector<16x128xf32>
    %667 = arith.index_cast %c7_i32 : i32 to index
    %c0_138 = arith.constant 0 : index
    %c0_139 = arith.constant 0 : index
    %668 = vector.load %arg6[%667, %c0_138, %c0_139] : memref<9x16x128xi32, #tpu.memory_space<vmem>>, vector<1x16x128xi32>
    %669 = vector.shape_cast %668 : vector<1x16x128xi32> to vector<16x128xi32>
    %670 = arith.cmpf ogt, %666, %533 : vector<16x128xf32>
    %671 = arith.cmpf oeq, %666, %533 : vector<16x128xf32>
    %672 = vector.broadcast %c7_i32 : i32 to vector<16x128xi32>
    %673 = arith.cmpi sgt, %672, %534 : vector<16x128xi32>
    %674 = arith.andi %671, %673 : vector<16x128xi1>
    %675 = arith.ori %670, %674 : vector<16x128xi1>
    %676 = arith.cmpf olt, %666, %660 : vector<16x128xf32>
    %677 = arith.andi %675, %676 : vector<16x128xi1>
    %678 = arith.select %677, %666, %660 : vector<16x128xi1>, vector<16x128xf32>
    %679 = vector.broadcast %c7_i32 : i32 to vector<16x128xi32>
    %680 = arith.select %677, %679, %662 : vector<16x128xi1>, vector<16x128xi32>
    %681 = arith.select %677, %669, %663 : vector<16x128xi1>, vector<16x128xi32>
    %c8_i32 = arith.constant 8 : i32
    %682 = arith.index_cast %c8_i32 : i32 to index
    %c0_140 = arith.constant 0 : index
    %c0_141 = arith.constant 0 : index
    %683 = vector.load %arg5[%682, %c0_140, %c0_141] : memref<9x16x128xf32, #tpu.memory_space<vmem>>, vector<1x16x128xf32>
    %684 = vector.shape_cast %683 : vector<1x16x128xf32> to vector<16x128xf32>
    %685 = arith.index_cast %c8_i32 : i32 to index
    %c0_142 = arith.constant 0 : index
    %c0_143 = arith.constant 0 : index
    %686 = vector.load %arg6[%685, %c0_142, %c0_143] : memref<9x16x128xi32, #tpu.memory_space<vmem>>, vector<1x16x128xi32>
    %687 = vector.shape_cast %686 : vector<1x16x128xi32> to vector<16x128xi32>
    %688 = arith.cmpf ogt, %684, %533 : vector<16x128xf32>
    %689 = arith.cmpf oeq, %684, %533 : vector<16x128xf32>
    %690 = vector.broadcast %c8_i32 : i32 to vector<16x128xi32>
    %691 = arith.cmpi sgt, %690, %534 : vector<16x128xi32>
    %692 = arith.andi %689, %691 : vector<16x128xi1>
    %693 = arith.ori %688, %692 : vector<16x128xi1>
    %694 = arith.cmpf olt, %684, %678 : vector<16x128xf32>
    %695 = arith.andi %693, %694 : vector<16x128xi1>
    %696 = arith.select %695, %684, %678 : vector<16x128xi1>, vector<16x128xf32>
    %697 = vector.broadcast %c8_i32 : i32 to vector<16x128xi32>
    %698 = arith.select %695, %697, %680 : vector<16x128xi1>, vector<16x128xi32>
    %699 = arith.select %695, %687, %681 : vector<16x128xi1>, vector<16x128xi32>
    %c9_i32 = arith.constant 9 : i32
    %cst_144 = arith.constant 1.000000e+00 : f32
    %700 = vector.broadcast %cst_144 : f32 to vector<16x128xf32>
    %701 = arith.cmpf ole, %696, %700 : vector<16x128xf32>
    %cst_145 = arith.constant 3.000000e+38 : f32
    %702 = vector.broadcast %cst_145 : f32 to vector<16x128xf32>
    %c0_i32_146 = arith.constant 0 : i32
    %703 = vector.broadcast %c0_i32_146 : i32 to vector<16x128xi32>
    %c0_i32_147 = arith.constant 0 : i32
    %704 = vector.broadcast %c0_i32_147 : i32 to vector<16x128xi32>
    %c0_i32_148 = arith.constant 0 : i32
    %705 = arith.index_cast %c0_i32_148 : i32 to index
    %c0_149 = arith.constant 0 : index
    %c0_150 = arith.constant 0 : index
    %706 = vector.load %arg5[%705, %c0_149, %c0_150] : memref<9x16x128xf32, #tpu.memory_space<vmem>>, vector<1x16x128xf32>
    %707 = vector.shape_cast %706 : vector<1x16x128xf32> to vector<16x128xf32>
    %708 = arith.index_cast %c0_i32_148 : i32 to index
    %c0_151 = arith.constant 0 : index
    %c0_152 = arith.constant 0 : index
    %709 = vector.load %arg6[%708, %c0_151, %c0_152] : memref<9x16x128xi32, #tpu.memory_space<vmem>>, vector<1x16x128xi32>
    %710 = vector.shape_cast %709 : vector<1x16x128xi32> to vector<16x128xi32>
    %711 = arith.cmpf ogt, %707, %696 : vector<16x128xf32>
    %712 = arith.cmpf oeq, %707, %696 : vector<16x128xf32>
    %713 = vector.broadcast %c0_i32_148 : i32 to vector<16x128xi32>
    %714 = arith.cmpi sgt, %713, %698 : vector<16x128xi32>
    %715 = arith.andi %712, %714 : vector<16x128xi1>
    %716 = arith.ori %711, %715 : vector<16x128xi1>
    %717 = arith.cmpf olt, %707, %702 : vector<16x128xf32>
    %718 = arith.andi %716, %717 : vector<16x128xi1>
    %719 = arith.select %718, %707, %702 : vector<16x128xi1>, vector<16x128xf32>
    %720 = vector.broadcast %c0_i32_148 : i32 to vector<16x128xi32>
    %721 = arith.select %718, %720, %703 : vector<16x128xi1>, vector<16x128xi32>
    %722 = arith.select %718, %710, %704 : vector<16x128xi1>, vector<16x128xi32>
    %c1_i32_153 = arith.constant 1 : i32
    %723 = arith.index_cast %c1_i32_153 : i32 to index
    %c0_154 = arith.constant 0 : index
    %c0_155 = arith.constant 0 : index
    %724 = vector.load %arg5[%723, %c0_154, %c0_155] : memref<9x16x128xf32, #tpu.memory_space<vmem>>, vector<1x16x128xf32>
    %725 = vector.shape_cast %724 : vector<1x16x128xf32> to vector<16x128xf32>
    %726 = arith.index_cast %c1_i32_153 : i32 to index
    %c0_156 = arith.constant 0 : index
    %c0_157 = arith.constant 0 : index
    %727 = vector.load %arg6[%726, %c0_156, %c0_157] : memref<9x16x128xi32, #tpu.memory_space<vmem>>, vector<1x16x128xi32>
    %728 = vector.shape_cast %727 : vector<1x16x128xi32> to vector<16x128xi32>
    %729 = arith.cmpf ogt, %725, %696 : vector<16x128xf32>
    %730 = arith.cmpf oeq, %725, %696 : vector<16x128xf32>
    %731 = vector.broadcast %c1_i32_153 : i32 to vector<16x128xi32>
    %732 = arith.cmpi sgt, %731, %698 : vector<16x128xi32>
    %733 = arith.andi %730, %732 : vector<16x128xi1>
    %734 = arith.ori %729, %733 : vector<16x128xi1>
    %735 = arith.cmpf olt, %725, %719 : vector<16x128xf32>
    %736 = arith.andi %734, %735 : vector<16x128xi1>
    %737 = arith.select %736, %725, %719 : vector<16x128xi1>, vector<16x128xf32>
    %738 = vector.broadcast %c1_i32_153 : i32 to vector<16x128xi32>
    %739 = arith.select %736, %738, %721 : vector<16x128xi1>, vector<16x128xi32>
    %740 = arith.select %736, %728, %722 : vector<16x128xi1>, vector<16x128xi32>
    %c2_i32_158 = arith.constant 2 : i32
    %741 = arith.index_cast %c2_i32_158 : i32 to index
    %c0_159 = arith.constant 0 : index
    %c0_160 = arith.constant 0 : index
    %742 = vector.load %arg5[%741, %c0_159, %c0_160] : memref<9x16x128xf32, #tpu.memory_space<vmem>>, vector<1x16x128xf32>
    %743 = vector.shape_cast %742 : vector<1x16x128xf32> to vector<16x128xf32>
    %744 = arith.index_cast %c2_i32_158 : i32 to index
    %c0_161 = arith.constant 0 : index
    %c0_162 = arith.constant 0 : index
    %745 = vector.load %arg6[%744, %c0_161, %c0_162] : memref<9x16x128xi32, #tpu.memory_space<vmem>>, vector<1x16x128xi32>
    %746 = vector.shape_cast %745 : vector<1x16x128xi32> to vector<16x128xi32>
    %747 = arith.cmpf ogt, %743, %696 : vector<16x128xf32>
    %748 = arith.cmpf oeq, %743, %696 : vector<16x128xf32>
    %749 = vector.broadcast %c2_i32_158 : i32 to vector<16x128xi32>
    %750 = arith.cmpi sgt, %749, %698 : vector<16x128xi32>
    %751 = arith.andi %748, %750 : vector<16x128xi1>
    %752 = arith.ori %747, %751 : vector<16x128xi1>
    %753 = arith.cmpf olt, %743, %737 : vector<16x128xf32>
    %754 = arith.andi %752, %753 : vector<16x128xi1>
    %755 = arith.select %754, %743, %737 : vector<16x128xi1>, vector<16x128xf32>
    %756 = vector.broadcast %c2_i32_158 : i32 to vector<16x128xi32>
    %757 = arith.select %754, %756, %739 : vector<16x128xi1>, vector<16x128xi32>
    %758 = arith.select %754, %746, %740 : vector<16x128xi1>, vector<16x128xi32>
    %c3_i32_163 = arith.constant 3 : i32
    %759 = arith.index_cast %c3_i32_163 : i32 to index
    %c0_164 = arith.constant 0 : index
    %c0_165 = arith.constant 0 : index
    %760 = vector.load %arg5[%759, %c0_164, %c0_165] : memref<9x16x128xf32, #tpu.memory_space<vmem>>, vector<1x16x128xf32>
    %761 = vector.shape_cast %760 : vector<1x16x128xf32> to vector<16x128xf32>
    %762 = arith.index_cast %c3_i32_163 : i32 to index
    %c0_166 = arith.constant 0 : index
    %c0_167 = arith.constant 0 : index
    %763 = vector.load %arg6[%762, %c0_166, %c0_167] : memref<9x16x128xi32, #tpu.memory_space<vmem>>, vector<1x16x128xi32>
    %764 = vector.shape_cast %763 : vector<1x16x128xi32> to vector<16x128xi32>
    %765 = arith.cmpf ogt, %761, %696 : vector<16x128xf32>
    %766 = arith.cmpf oeq, %761, %696 : vector<16x128xf32>
    %767 = vector.broadcast %c3_i32_163 : i32 to vector<16x128xi32>
    %768 = arith.cmpi sgt, %767, %698 : vector<16x128xi32>
    %769 = arith.andi %766, %768 : vector<16x128xi1>
    %770 = arith.ori %765, %769 : vector<16x128xi1>
    %771 = arith.cmpf olt, %761, %755 : vector<16x128xf32>
    %772 = arith.andi %770, %771 : vector<16x128xi1>
    %773 = arith.select %772, %761, %755 : vector<16x128xi1>, vector<16x128xf32>
    %774 = vector.broadcast %c3_i32_163 : i32 to vector<16x128xi32>
    %775 = arith.select %772, %774, %757 : vector<16x128xi1>, vector<16x128xi32>
    %776 = arith.select %772, %764, %758 : vector<16x128xi1>, vector<16x128xi32>
    %c4_i32_168 = arith.constant 4 : i32
    %777 = arith.index_cast %c4_i32_168 : i32 to index
    %c0_169 = arith.constant 0 : index
    %c0_170 = arith.constant 0 : index
    %778 = vector.load %arg5[%777, %c0_169, %c0_170] : memref<9x16x128xf32, #tpu.memory_space<vmem>>, vector<1x16x128xf32>
    %779 = vector.shape_cast %778 : vector<1x16x128xf32> to vector<16x128xf32>
    %780 = arith.index_cast %c4_i32_168 : i32 to index
    %c0_171 = arith.constant 0 : index
    %c0_172 = arith.constant 0 : index
    %781 = vector.load %arg6[%780, %c0_171, %c0_172] : memref<9x16x128xi32, #tpu.memory_space<vmem>>, vector<1x16x128xi32>
    %782 = vector.shape_cast %781 : vector<1x16x128xi32> to vector<16x128xi32>
    %783 = arith.cmpf ogt, %779, %696 : vector<16x128xf32>
    %784 = arith.cmpf oeq, %779, %696 : vector<16x128xf32>
    %785 = vector.broadcast %c4_i32_168 : i32 to vector<16x128xi32>
    %786 = arith.cmpi sgt, %785, %698 : vector<16x128xi32>
    %787 = arith.andi %784, %786 : vector<16x128xi1>
    %788 = arith.ori %783, %787 : vector<16x128xi1>
    %789 = arith.cmpf olt, %779, %773 : vector<16x128xf32>
    %790 = arith.andi %788, %789 : vector<16x128xi1>
    %791 = arith.select %790, %779, %773 : vector<16x128xi1>, vector<16x128xf32>
    %792 = vector.broadcast %c4_i32_168 : i32 to vector<16x128xi32>
    %793 = arith.select %790, %792, %775 : vector<16x128xi1>, vector<16x128xi32>
    %794 = arith.select %790, %782, %776 : vector<16x128xi1>, vector<16x128xi32>
    %c5_i32_173 = arith.constant 5 : i32
    %795 = arith.index_cast %c5_i32_173 : i32 to index
    %c0_174 = arith.constant 0 : index
    %c0_175 = arith.constant 0 : index
    %796 = vector.load %arg5[%795, %c0_174, %c0_175] : memref<9x16x128xf32, #tpu.memory_space<vmem>>, vector<1x16x128xf32>
    %797 = vector.shape_cast %796 : vector<1x16x128xf32> to vector<16x128xf32>
    %798 = arith.index_cast %c5_i32_173 : i32 to index
    %c0_176 = arith.constant 0 : index
    %c0_177 = arith.constant 0 : index
    %799 = vector.load %arg6[%798, %c0_176, %c0_177] : memref<9x16x128xi32, #tpu.memory_space<vmem>>, vector<1x16x128xi32>
    %800 = vector.shape_cast %799 : vector<1x16x128xi32> to vector<16x128xi32>
    %801 = arith.cmpf ogt, %797, %696 : vector<16x128xf32>
    %802 = arith.cmpf oeq, %797, %696 : vector<16x128xf32>
    %803 = vector.broadcast %c5_i32_173 : i32 to vector<16x128xi32>
    %804 = arith.cmpi sgt, %803, %698 : vector<16x128xi32>
    %805 = arith.andi %802, %804 : vector<16x128xi1>
    %806 = arith.ori %801, %805 : vector<16x128xi1>
    %807 = arith.cmpf olt, %797, %791 : vector<16x128xf32>
    %808 = arith.andi %806, %807 : vector<16x128xi1>
    %809 = arith.select %808, %797, %791 : vector<16x128xi1>, vector<16x128xf32>
    %810 = vector.broadcast %c5_i32_173 : i32 to vector<16x128xi32>
    %811 = arith.select %808, %810, %793 : vector<16x128xi1>, vector<16x128xi32>
    %812 = arith.select %808, %800, %794 : vector<16x128xi1>, vector<16x128xi32>
    %c6_i32_178 = arith.constant 6 : i32
    %813 = arith.index_cast %c6_i32_178 : i32 to index
    %c0_179 = arith.constant 0 : index
    %c0_180 = arith.constant 0 : index
    %814 = vector.load %arg5[%813, %c0_179, %c0_180] : memref<9x16x128xf32, #tpu.memory_space<vmem>>, vector<1x16x128xf32>
    %815 = vector.shape_cast %814 : vector<1x16x128xf32> to vector<16x128xf32>
    %816 = arith.index_cast %c6_i32_178 : i32 to index
    %c0_181 = arith.constant 0 : index
    %c0_182 = arith.constant 0 : index
    %817 = vector.load %arg6[%816, %c0_181, %c0_182] : memref<9x16x128xi32, #tpu.memory_space<vmem>>, vector<1x16x128xi32>
    %818 = vector.shape_cast %817 : vector<1x16x128xi32> to vector<16x128xi32>
    %819 = arith.cmpf ogt, %815, %696 : vector<16x128xf32>
    %820 = arith.cmpf oeq, %815, %696 : vector<16x128xf32>
    %821 = vector.broadcast %c6_i32_178 : i32 to vector<16x128xi32>
    %822 = arith.cmpi sgt, %821, %698 : vector<16x128xi32>
    %823 = arith.andi %820, %822 : vector<16x128xi1>
    %824 = arith.ori %819, %823 : vector<16x128xi1>
    %825 = arith.cmpf olt, %815, %809 : vector<16x128xf32>
    %826 = arith.andi %824, %825 : vector<16x128xi1>
    %827 = arith.select %826, %815, %809 : vector<16x128xi1>, vector<16x128xf32>
    %828 = vector.broadcast %c6_i32_178 : i32 to vector<16x128xi32>
    %829 = arith.select %826, %828, %811 : vector<16x128xi1>, vector<16x128xi32>
    %830 = arith.select %826, %818, %812 : vector<16x128xi1>, vector<16x128xi32>
    %c7_i32_183 = arith.constant 7 : i32
    %831 = arith.index_cast %c7_i32_183 : i32 to index
    %c0_184 = arith.constant 0 : index
    %c0_185 = arith.constant 0 : index
    %832 = vector.load %arg5[%831, %c0_184, %c0_185] : memref<9x16x128xf32, #tpu.memory_space<vmem>>, vector<1x16x128xf32>
    %833 = vector.shape_cast %832 : vector<1x16x128xf32> to vector<16x128xf32>
    %834 = arith.index_cast %c7_i32_183 : i32 to index
    %c0_186 = arith.constant 0 : index
    %c0_187 = arith.constant 0 : index
    %835 = vector.load %arg6[%834, %c0_186, %c0_187] : memref<9x16x128xi32, #tpu.memory_space<vmem>>, vector<1x16x128xi32>
    %836 = vector.shape_cast %835 : vector<1x16x128xi32> to vector<16x128xi32>
    %837 = arith.cmpf ogt, %833, %696 : vector<16x128xf32>
    %838 = arith.cmpf oeq, %833, %696 : vector<16x128xf32>
    %839 = vector.broadcast %c7_i32_183 : i32 to vector<16x128xi32>
    %840 = arith.cmpi sgt, %839, %698 : vector<16x128xi32>
    %841 = arith.andi %838, %840 : vector<16x128xi1>
    %842 = arith.ori %837, %841 : vector<16x128xi1>
    %843 = arith.cmpf olt, %833, %827 : vector<16x128xf32>
    %844 = arith.andi %842, %843 : vector<16x128xi1>
    %845 = arith.select %844, %833, %827 : vector<16x128xi1>, vector<16x128xf32>
    %846 = vector.broadcast %c7_i32_183 : i32 to vector<16x128xi32>
    %847 = arith.select %844, %846, %829 : vector<16x128xi1>, vector<16x128xi32>
    %848 = arith.select %844, %836, %830 : vector<16x128xi1>, vector<16x128xi32>
    %c8_i32_188 = arith.constant 8 : i32
    %849 = arith.index_cast %c8_i32_188 : i32 to index
    %c0_189 = arith.constant 0 : index
    %c0_190 = arith.constant 0 : index
    %850 = vector.load %arg5[%849, %c0_189, %c0_190] : memref<9x16x128xf32, #tpu.memory_space<vmem>>, vector<1x16x128xf32>
    %851 = vector.shape_cast %850 : vector<1x16x128xf32> to vector<16x128xf32>
    %852 = arith.index_cast %c8_i32_188 : i32 to index
    %c0_191 = arith.constant 0 : index
    %c0_192 = arith.constant 0 : index
    %853 = vector.load %arg6[%852, %c0_191, %c0_192] : memref<9x16x128xi32, #tpu.memory_space<vmem>>, vector<1x16x128xi32>
    %854 = vector.shape_cast %853 : vector<1x16x128xi32> to vector<16x128xi32>
    %855 = arith.cmpf ogt, %851, %696 : vector<16x128xf32>
    %856 = arith.cmpf oeq, %851, %696 : vector<16x128xf32>
    %857 = vector.broadcast %c8_i32_188 : i32 to vector<16x128xi32>
    %858 = arith.cmpi sgt, %857, %698 : vector<16x128xi32>
    %859 = arith.andi %856, %858 : vector<16x128xi1>
    %860 = arith.ori %855, %859 : vector<16x128xi1>
    %861 = arith.cmpf olt, %851, %845 : vector<16x128xf32>
    %862 = arith.andi %860, %861 : vector<16x128xi1>
    %863 = arith.select %862, %851, %845 : vector<16x128xi1>, vector<16x128xf32>
    %864 = vector.broadcast %c8_i32_188 : i32 to vector<16x128xi32>
    %865 = arith.select %862, %864, %847 : vector<16x128xi1>, vector<16x128xi32>
    %866 = arith.select %862, %854, %848 : vector<16x128xi1>, vector<16x128xi32>
    %c9_i32_193 = arith.constant 9 : i32
    %cst_194 = arith.constant 1.000000e+00 : f32
    %867 = vector.broadcast %cst_194 : f32 to vector<16x128xf32>
    %868 = arith.cmpf ole, %863, %867 : vector<16x128xf32>
    %cst_195 = arith.constant 3.000000e+38 : f32
    %869 = vector.broadcast %cst_195 : f32 to vector<16x128xf32>
    %c0_i32_196 = arith.constant 0 : i32
    %870 = vector.broadcast %c0_i32_196 : i32 to vector<16x128xi32>
    %c0_i32_197 = arith.constant 0 : i32
    %871 = arith.index_cast %c0_i32_197 : i32 to index
    %c0_198 = arith.constant 0 : index
    %c0_199 = arith.constant 0 : index
    %872 = vector.load %arg5[%871, %c0_198, %c0_199] : memref<9x16x128xf32, #tpu.memory_space<vmem>>, vector<1x16x128xf32>
    %873 = vector.shape_cast %872 : vector<1x16x128xf32> to vector<16x128xf32>
    %874 = arith.index_cast %c0_i32_197 : i32 to index
    %c0_200 = arith.constant 0 : index
    %c0_201 = arith.constant 0 : index
    %875 = vector.load %arg6[%874, %c0_200, %c0_201] : memref<9x16x128xi32, #tpu.memory_space<vmem>>, vector<1x16x128xi32>
    %876 = vector.shape_cast %875 : vector<1x16x128xi32> to vector<16x128xi32>
    %877 = arith.cmpf ogt, %873, %863 : vector<16x128xf32>
    %878 = arith.cmpf oeq, %873, %863 : vector<16x128xf32>
    %879 = vector.broadcast %c0_i32_197 : i32 to vector<16x128xi32>
    %880 = arith.cmpi sgt, %879, %865 : vector<16x128xi32>
    %881 = arith.andi %878, %880 : vector<16x128xi1>
    %882 = arith.ori %877, %881 : vector<16x128xi1>
    %883 = arith.cmpf olt, %873, %869 : vector<16x128xf32>
    %884 = arith.andi %882, %883 : vector<16x128xi1>
    %885 = arith.select %884, %873, %869 : vector<16x128xi1>, vector<16x128xf32>
    %886 = arith.select %884, %876, %870 : vector<16x128xi1>, vector<16x128xi32>
    %c1_i32_202 = arith.constant 1 : i32
    %887 = arith.index_cast %c1_i32_202 : i32 to index
    %c0_203 = arith.constant 0 : index
    %c0_204 = arith.constant 0 : index
    %888 = vector.load %arg5[%887, %c0_203, %c0_204] : memref<9x16x128xf32, #tpu.memory_space<vmem>>, vector<1x16x128xf32>
    %889 = vector.shape_cast %888 : vector<1x16x128xf32> to vector<16x128xf32>
    %890 = arith.index_cast %c1_i32_202 : i32 to index
    %c0_205 = arith.constant 0 : index
    %c0_206 = arith.constant 0 : index
    %891 = vector.load %arg6[%890, %c0_205, %c0_206] : memref<9x16x128xi32, #tpu.memory_space<vmem>>, vector<1x16x128xi32>
    %892 = vector.shape_cast %891 : vector<1x16x128xi32> to vector<16x128xi32>
    %893 = arith.cmpf ogt, %889, %863 : vector<16x128xf32>
    %894 = arith.cmpf oeq, %889, %863 : vector<16x128xf32>
    %895 = vector.broadcast %c1_i32_202 : i32 to vector<16x128xi32>
    %896 = arith.cmpi sgt, %895, %865 : vector<16x128xi32>
    %897 = arith.andi %894, %896 : vector<16x128xi1>
    %898 = arith.ori %893, %897 : vector<16x128xi1>
    %899 = arith.cmpf olt, %889, %885 : vector<16x128xf32>
    %900 = arith.andi %898, %899 : vector<16x128xi1>
    %901 = arith.select %900, %889, %885 : vector<16x128xi1>, vector<16x128xf32>
    %902 = arith.select %900, %892, %886 : vector<16x128xi1>, vector<16x128xi32>
    %c2_i32_207 = arith.constant 2 : i32
    %903 = arith.index_cast %c2_i32_207 : i32 to index
    %c0_208 = arith.constant 0 : index
    %c0_209 = arith.constant 0 : index
    %904 = vector.load %arg5[%903, %c0_208, %c0_209] : memref<9x16x128xf32, #tpu.memory_space<vmem>>, vector<1x16x128xf32>
    %905 = vector.shape_cast %904 : vector<1x16x128xf32> to vector<16x128xf32>
    %906 = arith.index_cast %c2_i32_207 : i32 to index
    %c0_210 = arith.constant 0 : index
    %c0_211 = arith.constant 0 : index
    %907 = vector.load %arg6[%906, %c0_210, %c0_211] : memref<9x16x128xi32, #tpu.memory_space<vmem>>, vector<1x16x128xi32>
    %908 = vector.shape_cast %907 : vector<1x16x128xi32> to vector<16x128xi32>
    %909 = arith.cmpf ogt, %905, %863 : vector<16x128xf32>
    %910 = arith.cmpf oeq, %905, %863 : vector<16x128xf32>
    %911 = vector.broadcast %c2_i32_207 : i32 to vector<16x128xi32>
    %912 = arith.cmpi sgt, %911, %865 : vector<16x128xi32>
    %913 = arith.andi %910, %912 : vector<16x128xi1>
    %914 = arith.ori %909, %913 : vector<16x128xi1>
    %915 = arith.cmpf olt, %905, %901 : vector<16x128xf32>
    %916 = arith.andi %914, %915 : vector<16x128xi1>
    %917 = arith.select %916, %905, %901 : vector<16x128xi1>, vector<16x128xf32>
    %918 = arith.select %916, %908, %902 : vector<16x128xi1>, vector<16x128xi32>
    %c3_i32_212 = arith.constant 3 : i32
    %919 = arith.index_cast %c3_i32_212 : i32 to index
    %c0_213 = arith.constant 0 : index
    %c0_214 = arith.constant 0 : index
    %920 = vector.load %arg5[%919, %c0_213, %c0_214] : memref<9x16x128xf32, #tpu.memory_space<vmem>>, vector<1x16x128xf32>
    %921 = vector.shape_cast %920 : vector<1x16x128xf32> to vector<16x128xf32>
    %922 = arith.index_cast %c3_i32_212 : i32 to index
    %c0_215 = arith.constant 0 : index
    %c0_216 = arith.constant 0 : index
    %923 = vector.load %arg6[%922, %c0_215, %c0_216] : memref<9x16x128xi32, #tpu.memory_space<vmem>>, vector<1x16x128xi32>
    %924 = vector.shape_cast %923 : vector<1x16x128xi32> to vector<16x128xi32>
    %925 = arith.cmpf ogt, %921, %863 : vector<16x128xf32>
    %926 = arith.cmpf oeq, %921, %863 : vector<16x128xf32>
    %927 = vector.broadcast %c3_i32_212 : i32 to vector<16x128xi32>
    %928 = arith.cmpi sgt, %927, %865 : vector<16x128xi32>
    %929 = arith.andi %926, %928 : vector<16x128xi1>
    %930 = arith.ori %925, %929 : vector<16x128xi1>
    %931 = arith.cmpf olt, %921, %917 : vector<16x128xf32>
    %932 = arith.andi %930, %931 : vector<16x128xi1>
    %933 = arith.select %932, %921, %917 : vector<16x128xi1>, vector<16x128xf32>
    %934 = arith.select %932, %924, %918 : vector<16x128xi1>, vector<16x128xi32>
    %c4_i32_217 = arith.constant 4 : i32
    %935 = arith.index_cast %c4_i32_217 : i32 to index
    %c0_218 = arith.constant 0 : index
    %c0_219 = arith.constant 0 : index
    %936 = vector.load %arg5[%935, %c0_218, %c0_219] : memref<9x16x128xf32, #tpu.memory_space<vmem>>, vector<1x16x128xf32>
    %937 = vector.shape_cast %936 : vector<1x16x128xf32> to vector<16x128xf32>
    %938 = arith.index_cast %c4_i32_217 : i32 to index
    %c0_220 = arith.constant 0 : index
    %c0_221 = arith.constant 0 : index
    %939 = vector.load %arg6[%938, %c0_220, %c0_221] : memref<9x16x128xi32, #tpu.memory_space<vmem>>, vector<1x16x128xi32>
    %940 = vector.shape_cast %939 : vector<1x16x128xi32> to vector<16x128xi32>
    %941 = arith.cmpf ogt, %937, %863 : vector<16x128xf32>
    %942 = arith.cmpf oeq, %937, %863 : vector<16x128xf32>
    %943 = vector.broadcast %c4_i32_217 : i32 to vector<16x128xi32>
    %944 = arith.cmpi sgt, %943, %865 : vector<16x128xi32>
    %945 = arith.andi %942, %944 : vector<16x128xi1>
    %946 = arith.ori %941, %945 : vector<16x128xi1>
    %947 = arith.cmpf olt, %937, %933 : vector<16x128xf32>
    %948 = arith.andi %946, %947 : vector<16x128xi1>
    %949 = arith.select %948, %937, %933 : vector<16x128xi1>, vector<16x128xf32>
    %950 = arith.select %948, %940, %934 : vector<16x128xi1>, vector<16x128xi32>
    %c5_i32_222 = arith.constant 5 : i32
    %951 = arith.index_cast %c5_i32_222 : i32 to index
    %c0_223 = arith.constant 0 : index
    %c0_224 = arith.constant 0 : index
    %952 = vector.load %arg5[%951, %c0_223, %c0_224] : memref<9x16x128xf32, #tpu.memory_space<vmem>>, vector<1x16x128xf32>
    %953 = vector.shape_cast %952 : vector<1x16x128xf32> to vector<16x128xf32>
    %954 = arith.index_cast %c5_i32_222 : i32 to index
    %c0_225 = arith.constant 0 : index
    %c0_226 = arith.constant 0 : index
    %955 = vector.load %arg6[%954, %c0_225, %c0_226] : memref<9x16x128xi32, #tpu.memory_space<vmem>>, vector<1x16x128xi32>
    %956 = vector.shape_cast %955 : vector<1x16x128xi32> to vector<16x128xi32>
    %957 = arith.cmpf ogt, %953, %863 : vector<16x128xf32>
    %958 = arith.cmpf oeq, %953, %863 : vector<16x128xf32>
    %959 = vector.broadcast %c5_i32_222 : i32 to vector<16x128xi32>
    %960 = arith.cmpi sgt, %959, %865 : vector<16x128xi32>
    %961 = arith.andi %958, %960 : vector<16x128xi1>
    %962 = arith.ori %957, %961 : vector<16x128xi1>
    %963 = arith.cmpf olt, %953, %949 : vector<16x128xf32>
    %964 = arith.andi %962, %963 : vector<16x128xi1>
    %965 = arith.select %964, %953, %949 : vector<16x128xi1>, vector<16x128xf32>
    %966 = arith.select %964, %956, %950 : vector<16x128xi1>, vector<16x128xi32>
    %c6_i32_227 = arith.constant 6 : i32
    %967 = arith.index_cast %c6_i32_227 : i32 to index
    %c0_228 = arith.constant 0 : index
    %c0_229 = arith.constant 0 : index
    %968 = vector.load %arg5[%967, %c0_228, %c0_229] : memref<9x16x128xf32, #tpu.memory_space<vmem>>, vector<1x16x128xf32>
    %969 = vector.shape_cast %968 : vector<1x16x128xf32> to vector<16x128xf32>
    %970 = arith.index_cast %c6_i32_227 : i32 to index
    %c0_230 = arith.constant 0 : index
    %c0_231 = arith.constant 0 : index
    %971 = vector.load %arg6[%970, %c0_230, %c0_231] : memref<9x16x128xi32, #tpu.memory_space<vmem>>, vector<1x16x128xi32>
    %972 = vector.shape_cast %971 : vector<1x16x128xi32> to vector<16x128xi32>
    %973 = arith.cmpf ogt, %969, %863 : vector<16x128xf32>
    %974 = arith.cmpf oeq, %969, %863 : vector<16x128xf32>
    %975 = vector.broadcast %c6_i32_227 : i32 to vector<16x128xi32>
    %976 = arith.cmpi sgt, %975, %865 : vector<16x128xi32>
    %977 = arith.andi %974, %976 : vector<16x128xi1>
    %978 = arith.ori %973, %977 : vector<16x128xi1>
    %979 = arith.cmpf olt, %969, %965 : vector<16x128xf32>
    %980 = arith.andi %978, %979 : vector<16x128xi1>
    %981 = arith.select %980, %969, %965 : vector<16x128xi1>, vector<16x128xf32>
    %982 = arith.select %980, %972, %966 : vector<16x128xi1>, vector<16x128xi32>
    %c7_i32_232 = arith.constant 7 : i32
    %983 = arith.index_cast %c7_i32_232 : i32 to index
    %c0_233 = arith.constant 0 : index
    %c0_234 = arith.constant 0 : index
    %984 = vector.load %arg5[%983, %c0_233, %c0_234] : memref<9x16x128xf32, #tpu.memory_space<vmem>>, vector<1x16x128xf32>
    %985 = vector.shape_cast %984 : vector<1x16x128xf32> to vector<16x128xf32>
    %986 = arith.index_cast %c7_i32_232 : i32 to index
    %c0_235 = arith.constant 0 : index
    %c0_236 = arith.constant 0 : index
    %987 = vector.load %arg6[%986, %c0_235, %c0_236] : memref<9x16x128xi32, #tpu.memory_space<vmem>>, vector<1x16x128xi32>
    %988 = vector.shape_cast %987 : vector<1x16x128xi32> to vector<16x128xi32>
    %989 = arith.cmpf ogt, %985, %863 : vector<16x128xf32>
    %990 = arith.cmpf oeq, %985, %863 : vector<16x128xf32>
    %991 = vector.broadcast %c7_i32_232 : i32 to vector<16x128xi32>
    %992 = arith.cmpi sgt, %991, %865 : vector<16x128xi32>
    %993 = arith.andi %990, %992 : vector<16x128xi1>
    %994 = arith.ori %989, %993 : vector<16x128xi1>
    %995 = arith.cmpf olt, %985, %981 : vector<16x128xf32>
    %996 = arith.andi %994, %995 : vector<16x128xi1>
    %997 = arith.select %996, %985, %981 : vector<16x128xi1>, vector<16x128xf32>
    %998 = arith.select %996, %988, %982 : vector<16x128xi1>, vector<16x128xi32>
    %c8_i32_237 = arith.constant 8 : i32
    %999 = arith.index_cast %c8_i32_237 : i32 to index
    %c0_238 = arith.constant 0 : index
    %c0_239 = arith.constant 0 : index
    %1000 = vector.load %arg5[%999, %c0_238, %c0_239] : memref<9x16x128xf32, #tpu.memory_space<vmem>>, vector<1x16x128xf32>
    %1001 = vector.shape_cast %1000 : vector<1x16x128xf32> to vector<16x128xf32>
    %1002 = arith.index_cast %c8_i32_237 : i32 to index
    %c0_240 = arith.constant 0 : index
    %c0_241 = arith.constant 0 : index
    %1003 = vector.load %arg6[%1002, %c0_240, %c0_241] : memref<9x16x128xi32, #tpu.memory_space<vmem>>, vector<1x16x128xi32>
    %1004 = vector.shape_cast %1003 : vector<1x16x128xi32> to vector<16x128xi32>
    %1005 = arith.cmpf ogt, %1001, %863 : vector<16x128xf32>
    %1006 = arith.cmpf oeq, %1001, %863 : vector<16x128xf32>
    %1007 = vector.broadcast %c8_i32_237 : i32 to vector<16x128xi32>
    %1008 = arith.cmpi sgt, %1007, %865 : vector<16x128xi32>
    %1009 = arith.andi %1006, %1008 : vector<16x128xi1>
    %1010 = arith.ori %1005, %1009 : vector<16x128xi1>
    %1011 = arith.cmpf olt, %1001, %997 : vector<16x128xf32>
    %1012 = arith.andi %1010, %1011 : vector<16x128xi1>
    %1013 = arith.select %1012, %1001, %997 : vector<16x128xi1>, vector<16x128xf32>
    %1014 = arith.select %1012, %1004, %998 : vector<16x128xi1>, vector<16x128xi32>
    %c9_i32_242 = arith.constant 9 : i32
    %cst_243 = arith.constant 1.000000e+00 : f32
    %1015 = vector.broadcast %cst_243 : f32 to vector<16x128xf32>
    %1016 = arith.cmpf ole, %1013, %1015 : vector<16x128xf32>
    %c0_i32_244 = arith.constant 0 : i32
    %1017 = vector.broadcast %c0_i32_244 : i32 to vector<16x128xi32>
    %c0_i32_245 = arith.constant 0 : i32
    %1018 = vector.broadcast %c0_i32_245 : i32 to vector<16x128xi32>
    %c0_i32_246 = arith.constant 0 : i32
    %1019 = vector.broadcast %c0_i32_246 : i32 to vector<16x128xi32>
    %1020 = arith.cmpi eq, %699, %699 : vector<16x128xi32>
    %1021 = arith.andi %1020, %701 : vector<16x128xi1>
    %1022 = arith.extui %1021 : vector<16x128xi1> to vector<16x128xi32>
    %1023 = arith.addi %1019, %1022 : vector<16x128xi32>
    %1024 = arith.cmpi eq, %866, %699 : vector<16x128xi32>
    %1025 = arith.andi %1024, %868 : vector<16x128xi1>
    %1026 = arith.extui %1025 : vector<16x128xi1> to vector<16x128xi32>
    %1027 = arith.addi %1023, %1026 : vector<16x128xi32>
    %1028 = arith.cmpi eq, %1014, %699 : vector<16x128xi32>
    %1029 = arith.andi %1028, %1016 : vector<16x128xi1>
    %1030 = arith.extui %1029 : vector<16x128xi1> to vector<16x128xi32>
    %1031 = arith.addi %1027, %1030 : vector<16x128xi32>
    %c0_i32_247 = arith.constant 0 : i32
    %1032 = vector.broadcast %c0_i32_247 : i32 to vector<16x128xi32>
    %1033 = arith.select %701, %1031, %1032 : vector<16x128xi1>, vector<16x128xi32>
    %1034 = arith.cmpi sgt, %1033, %1017 : vector<16x128xi32>
    %1035 = arith.cmpi eq, %1033, %1017 : vector<16x128xi32>
    %1036 = arith.cmpi slt, %699, %1018 : vector<16x128xi32>
    %1037 = arith.andi %1035, %1036 : vector<16x128xi1>
    %1038 = arith.ori %1034, %1037 : vector<16x128xi1>
    %1039 = arith.select %1038, %1033, %1017 : vector<16x128xi1>, vector<16x128xi32>
    %1040 = arith.select %1038, %699, %1018 : vector<16x128xi1>, vector<16x128xi32>
    %c0_i32_248 = arith.constant 0 : i32
    %1041 = vector.broadcast %c0_i32_248 : i32 to vector<16x128xi32>
    %1042 = arith.cmpi eq, %699, %866 : vector<16x128xi32>
    %1043 = arith.andi %1042, %701 : vector<16x128xi1>
    %1044 = arith.extui %1043 : vector<16x128xi1> to vector<16x128xi32>
    %1045 = arith.addi %1041, %1044 : vector<16x128xi32>
    %1046 = arith.cmpi eq, %866, %866 : vector<16x128xi32>
    %1047 = arith.andi %1046, %868 : vector<16x128xi1>
    %1048 = arith.extui %1047 : vector<16x128xi1> to vector<16x128xi32>
    %1049 = arith.addi %1045, %1048 : vector<16x128xi32>
    %1050 = arith.cmpi eq, %1014, %866 : vector<16x128xi32>
    %1051 = arith.andi %1050, %1016 : vector<16x128xi1>
    %1052 = arith.extui %1051 : vector<16x128xi1> to vector<16x128xi32>
    %1053 = arith.addi %1049, %1052 : vector<16x128xi32>
    %c0_i32_249 = arith.constant 0 : i32
    %1054 = vector.broadcast %c0_i32_249 : i32 to vector<16x128xi32>
    %1055 = arith.select %868, %1053, %1054 : vector<16x128xi1>, vector<16x128xi32>
    %1056 = arith.cmpi sgt, %1055, %1039 : vector<16x128xi32>
    %1057 = arith.cmpi eq, %1055, %1039 : vector<16x128xi32>
    %1058 = arith.cmpi slt, %866, %1040 : vector<16x128xi32>
    %1059 = arith.andi %1057, %1058 : vector<16x128xi1>
    %1060 = arith.ori %1056, %1059 : vector<16x128xi1>
    %1061 = arith.select %1060, %1055, %1039 : vector<16x128xi1>, vector<16x128xi32>
    %1062 = arith.select %1060, %866, %1040 : vector<16x128xi1>, vector<16x128xi32>
    %c0_i32_250 = arith.constant 0 : i32
    %1063 = vector.broadcast %c0_i32_250 : i32 to vector<16x128xi32>
    %1064 = arith.cmpi eq, %699, %1014 : vector<16x128xi32>
    %1065 = arith.andi %1064, %701 : vector<16x128xi1>
    %1066 = arith.extui %1065 : vector<16x128xi1> to vector<16x128xi32>
    %1067 = arith.addi %1063, %1066 : vector<16x128xi32>
    %1068 = arith.cmpi eq, %866, %1014 : vector<16x128xi32>
    %1069 = arith.andi %1068, %868 : vector<16x128xi1>
    %1070 = arith.extui %1069 : vector<16x128xi1> to vector<16x128xi32>
    %1071 = arith.addi %1067, %1070 : vector<16x128xi32>
    %1072 = arith.cmpi eq, %1014, %1014 : vector<16x128xi32>
    %1073 = arith.andi %1072, %1016 : vector<16x128xi1>
    %1074 = arith.extui %1073 : vector<16x128xi1> to vector<16x128xi32>
    %1075 = arith.addi %1071, %1074 : vector<16x128xi32>
    %c0_i32_251 = arith.constant 0 : i32
    %1076 = vector.broadcast %c0_i32_251 : i32 to vector<16x128xi32>
    %1077 = arith.select %1016, %1075, %1076 : vector<16x128xi1>, vector<16x128xi32>
    %1078 = arith.cmpi sgt, %1077, %1061 : vector<16x128xi32>
    %1079 = arith.cmpi eq, %1077, %1061 : vector<16x128xi32>
    %1080 = arith.cmpi slt, %1014, %1062 : vector<16x128xi32>
    %1081 = arith.andi %1079, %1080 : vector<16x128xi1>
    %1082 = arith.ori %1078, %1081 : vector<16x128xi1>
    %1083 = arith.select %1082, %1014, %1062 : vector<16x128xi1>, vector<16x128xi32>
    %c0_252 = arith.constant 0 : index
    %c0_253 = arith.constant 0 : index
    %c0_254 = arith.constant 0 : index
    %1084 = vector.load %arg4[%c0_252, %c0_253, %c0_254] : memref<1x16x128xi32, #tpu.memory_space<vmem>>, vector<1x16x128xi32>
    %1085 = vector.shape_cast %1084 : vector<1x16x128xi32> to vector<16x128xi32>
    %1086 = vector.shape_cast %1083 : vector<16x128xi32> to vector<1x16x128xi32>
    tpu.vector_store %arg4[%c0_252, %c0_253, %c0_254], %1086 {strides = array<i32>} : memref<1x16x128xi32, #tpu.memory_space<vmem>>, vector<1x16x128xi32>,
    return
  }
  func.func @transform_0(%arg0: i32, %arg1: i32) -> (i32, i32, i32, i32) {
    %c0_i32 = arith.constant 0 : i32
    %c0_i32_0 = arith.constant 0 : i32
    %c0_i32_1 = arith.constant 0 : i32
    return %arg0, %arg1, %c0_i32, %c0_i32_0 : i32, i32, i32, i32
  }
  func.func @transform_1(%arg0: i32, %arg1: i32) -> (i32, i32, i32, i32) {
    %c0_i32 = arith.constant 0 : i32
    %c0_i32_0 = arith.constant 0 : i32
    %c0_i32_1 = arith.constant 0 : i32
    return %arg0, %arg1, %c0_i32, %c0_i32_0 : i32, i32, i32, i32
  }
  func.func @transform_2(%arg0: i32, %arg1: i32) -> (i32, i32, i32) {
    %c0_i32 = arith.constant 0 : i32
    %c0_i32_0 = arith.constant 0 : i32
    return %arg0, %c0_i32, %arg1 : i32, i32, i32
  }
}

</mosaic_0001>

<llo_original>
// kernel: tpu_custom_call.1
$region0: #{tpu_custom_call.1}
  #allocation0 [shape = 'u32[]', space=smem, size = 0x4, offset = 0x4, fixed_abs, tag = 'smem constant byte address 0x4 - core index']
  #allocation1 [shape = 'u32[144,128]{1,0:T(1,128)}', space=vmem, size = 0x12000, scoped, tag = 'internal scratch']
  #allocation2 [shape = 'f32[9,16,128]{2,1,0:T(8,128)}', space=vmem, size = 0x12000, scoped, tag = 'scratch operand']
  #allocation3 [shape = 's32[9,16,128]{2,1,0:T(8,128)}', space=vmem, size = 0x12000, scoped, tag = 'scratch operand']
  %s0 = inlined_call_operand.hbm [shape: f32[2,1,32,384], index: 0, kind: input, shape index: {}]
  %s1 = inlined_call_operand.hbm [shape: s32[2,1,32,384], index: 1, kind: input, shape index: {}]
  %s2 = inlined_call_operand.hbm [shape: s32[2,16,128], index: 2, kind: output, shape index: {}]
  %s3 = sld [smem:[#allocation0]]
  $region49: #{tpu_custom_call.1} parent=0
    _
  %s5 = ssub.s32 1, %s3
  %s6 = scalar_select 0, %s5, %s3
  $region1: #{tpu_custom_call.1} parent=0
    #allocation4 [shape = 'u8[98304]{0}', space=vmem, size = 0x18000, scoped, tag = 'input window, operand 0']
    #allocation5 [shape = 's32[2]{0}', space=sflag, size = 0x8, scoped, tag = 'scoped memory for tpu_custom_call.1']
    #allocation6 [shape = 's32[2]{0}', space=sflag, size = 0x8, scoped, tag = 'scoped memory for tpu_custom_call.1']
    #allocation7 [shape = 'u8[98304]{0}', space=vmem, size = 0x18000, scoped, tag = 'input window, operand 1']
    #allocation8 [shape = 's32[2]{0}', space=sflag, size = 0x8, scoped, tag = 'scoped memory for tpu_custom_call.1']
    #allocation9 [shape = 'u8[16384]{0}', space=vmem, size = 0x4000, scoped, tag = 'output window, operand 0']
    %7 = vsyncpa [#allocation5], 0
    %s8 = scalar_lea.sflag [#allocation5], 1
    %9 = vsyncpa %s8, 0
    %10 = vsyncpa [#allocation8], 0
    %s11 = scalar_lea.sflag [#allocation8], 1
    %12 = vsyncpa %s11, 0
    %13 = vsyncpa [#allocation6], 0
    %s14 = scalar_lea.sflag [#allocation6], 1
    %15 = vsyncpa %s14, 0
    loop: start=0, step=1, limit=4
    $region2: #{tpu_custom_call.1} parent=1 // loop_pre_header
      _
    $region3: #{tpu_custom_call.1} parent=1 // loop_header
      %s17 = sphi 0, %s21
      %p18 = scmp.ge.s32.totalorder %s17, 4
      %s24 = sphi 0, %s36
      %s25 = sphi 0, %s32
      %s26 = sphi 0, %s24
      %s27 = sphi 0, %s25
      %s28 = sphi 0, %s26
      %s29 = sphi 0, %s27
      %s41 = sphi 0, %s43
      %s44 = sphi 0, %s41
      %s45 = sphi 0, %s44
      %s61 = sphi 0, %s45
      %s69 = sphi 0, %s71
      %s72 = sphi 0, %s69
      %s73 = sphi 0, %s72
      %s89 = sphi 0, %s73
      %s97 = sphi 0, %s99
      %s100 = sphi 0, %s97
      %s101 = sphi 0, %s100
      %s117 = sphi 0, %s101
    $region4: #{tpu_custom_call.1} parent=1 // loop_header_branch
      %20 = sbr.rel (%p18) target = $region8
    $region5: #{tpu_custom_call.1} parent=1 // loop_body
      %s22 = ssub.s32 %s17, 1
      %s23 = ssub.s32 %s17, 2
      %s30 = sadd.s32 1, %s25
      %p31 = scmp.ge.s32.totalorder %s30, 1
      %s32 = scalar_select %p31, 0, %s30
      %s33 = sadd.s32 1, %s24
      %s34 = scalar_select %p31, %s33, %s24
      %p35 = scmp.ge.s32.totalorder %s34, 2
      %s36 = scalar_select %p35, 0, %s34
      %s37 = ssub.s32 %s24, %s36
      %s38 = ssub.s32 %s25, %s32
      %s39 = sor.u32 %s37, %s38
      %p40 = scmp.eq.s32.totalorder %s39, 0
      %s42 = sadd.s32 %s41, 1
      %s43 = scalar_select %p40, %s41, %s42
      %p46 = pneg %p40
      %p47 = scmp.eq.s32.totalorder %s17, 1
      %p48 = por %p46, %p47
      %p49 = scmp.ne.s32.totalorder %s41, %s44
      %p50 = scmp.eq.s32.totalorder %s17, 0
      %p51 = por %p49, %p50
      %p52 = scmp.ne.s32.totalorder %s41, %s44
      %p53 = scmp.eq.s32.totalorder %s22, 1
      %p54 = por %p52, %p53
      %p55 = scmp.ne.s32.totalorder %s44, %s45
      %p56 = scmp.eq.s32.totalorder %s22, 0
      %p57 = por %p55, %p56
      %p58 = scmp.ne.s32.totalorder %s44, %s45
      %p59 = scmp.eq.s32.totalorder %s23, 1
      %p60 = por %p58, %p59
      %p62 = scmp.ne.s32.totalorder %s45, %s61
      %p63 = scmp.eq.s32.totalorder %s23, 0
      %p64 = por %p62, %p63
      %s65 = ssub.s32 %s24, %s36
      %s66 = ssub.s32 %s25, %s32
      %s67 = sor.u32 %s65, %s66
      %p68 = scmp.eq.s32.totalorder %s67, 0
      %s70 = sadd.s32 %s69, 1
      %s71 = scalar_select %p68, %s69, %s70
      %p74 = pneg %p68
      %p75 = scmp.eq.s32.totalorder %s17, 1
      %p76 = por %p74, %p75
      %p77 = scmp.ne.s32.totalorder %s69, %s72
      %p78 = scmp.eq.s32.totalorder %s17, 0
      %p79 = por %p77, %p78
      %p80 = scmp.ne.s32.totalorder %s69, %s72
      %p81 = scmp.eq.s32.totalorder %s22, 1
      %p82 = por %p80, %p81
      %p83 = scmp.ne.s32.totalorder %s72, %s73
      %p84 = scmp.eq.s32.totalorder %s22, 0
      %p85 = por %p83, %p84
      %p86 = scmp.ne.s32.totalorder %s72, %s73
      %p87 = scmp.eq.s32.totalorder %s23, 1
      %p88 = por %p86, %p87
      %p90 = scmp.ne.s32.totalorder %s73, %s89
      %p91 = scmp.eq.s32.totalorder %s23, 0
      %p92 = por %p90, %p91
      %s93 = ssub.s32 %s24, %s36
      %s94 = ssub.s32 %s25, %s32
      %s95 = sor.u32 %s93, %s94
      %p96 = scmp.eq.s32.totalorder %s95, 0
      %s98 = sadd.s32 %s97, 1
      %s99 = scalar_select %p96, %s97, %s98
      %p102 = pneg %p96
      %p103 = scmp.eq.s32.totalorder %s17, 1
      %p104 = por %p102, %p103
      %p105 = scmp.ne.s32.totalorder %s97, %s100
      %p106 = scmp.eq.s32.totalorder %s17, 0
      %p107 = por %p105, %p106
      %p108 = scmp.ne.s32.totalorder %s97, %s100
      %p109 = scmp.eq.s32.totalorder %s22, 1
      %p110 = por %p108, %p109
      %p111 = scmp.ne.s32.totalorder %s100, %s101
      %p112 = scmp.eq.s32.totalorder %s22, 0
      %p113 = por %p111, %p112
      %p114 = scmp.ne.s32.totalorder %s100, %s101
      %p115 = scmp.eq.s32.totalorder %s23, 1
      %p116 = por %p114, %p115
      %p118 = scmp.ne.s32.totalorder %s101, %s117
      %p119 = scmp.eq.s32.totalorder %s23, 0
      %p120 = por %p118, %p119
      %p121 = scmp.le.s32.totalorder 1, %s17
      %p122 = scmp.lt.s32.totalorder %s17, 3
      %p123 = pnand %p121, %p122
      %p124 = pneg %p123
      // Predicated region
      $region9: #{tpu_custom_call.1} parent=5 // pred_check
        _
      $region10: #{tpu_custom_call.1} parent=5 // pred_check_branch
        %126 = sbr.rel (%p123) target = $region12
      $region11: #{tpu_custom_call.1} parent=5 // pred_region
        %s127 = ssub.s32 %s17, 1
      $region12: #{tpu_custom_call.1} parent=5 // pred_fallthru
        _
      %p128 = scmp.lt.s32.totalorder %s17, 2
      // Predicated region
      $region13: #{tpu_custom_call.1} parent=5 // pred_check
        %p129 = pneg %p128
      $region14: #{tpu_custom_call.1} parent=5 // pred_check_branch
        %131 = sbr.rel (%p129) target = $region16
      $region15: #{tpu_custom_call.1} parent=5 // pred_region
        // Predicated region
        $region17: #{tpu_custom_call.1} parent=15 // pred_check
          %p132 = pneg %p51
        $region18: #{tpu_custom_call.1} parent=15 // pred_check_branch
          %134 = sbr.rel (%p132) target = $region20
        $region19: #{tpu_custom_call.1} parent=15 // pred_region
          %s135 = sand.u32 %s41, 1
          %s136 = scalar_lea.sflag [#allocation5], %s135
          %s137 = sand.u32 %s41, 1
          %s138 = smul.addr %s137, 96
          %s139 = scalar_lea.vmem [#allocation4], %s138
          %s141 = ssub.s32 1536, 1536
          %142 = vsyncadd %s136, %s141
          %s143 = smul.addr %s25, 12
          %s144 = smul.addr %s24, 12
          %s145 = sadd.s32 %s143, %s144
          %s146 = smul.addr %s145, 128
          %s147 = scalar_lea.hbm %s0, %s146
          %s148 = sshll.u32 %s139, 4
          %s149 = int_to_ptr.vmem [resolvable:$true] %s148
          %154 = dma.hbm_to_vmem [thread:$0]  %s147, 1536, %s149, %s136, 384, 384, 24
        $region20: #{tpu_custom_call.1} parent=15 // pred_fallthru
          _
        // Predicated region
        $region21: #{tpu_custom_call.1} parent=15 // pred_check
          %p155 = pneg %p79
        $region22: #{tpu_custom_call.1} parent=15 // pred_check_branch
          %157 = sbr.rel (%p155) target = $region24
        $region23: #{tpu_custom_call.1} parent=15 // pred_region
          %s158 = sand.u32 %s69, 1
          %s159 = scalar_lea.sflag [#allocation8], %s158
          %s160 = sand.u32 %s69, 1
          %s161 = smul.addr %s160, 96
          %s162 = scalar_lea.vmem [#allocation7], %s161
          %s164 = ssub.s32 1536, 1536
          %165 = vsyncadd %s159, %s164
          %s166 = smul.addr %s25, 12
          %s167 = smul.addr %s24, 12
          %s168 = sadd.s32 %s166, %s167
          %s169 = smul.addr %s168, 128
          %s170 = scalar_lea.hbm %s1, %s169
          %s171 = sshll.u32 %s162, 4
          %s172 = int_to_ptr.vmem [resolvable:$true] %s171
          %177 = dma.hbm_to_vmem [thread:$0]  %s170, 1536, %s172, %s159, 384, 384, 24
        $region24: #{tpu_custom_call.1} parent=15 // pred_fallthru
          _
      $region16: #{tpu_custom_call.1} parent=5 // pred_fallthru
        _
      %p178 = scmp.le.s32.totalorder 1, %s17
      %p179 = scmp.lt.s32.totalorder %s17, 3
      %p180 = pnand %p178, %p179
      %p181 = pneg %p180
      // Predicated region
      $region25: #{tpu_custom_call.1} parent=5 // pred_check
        _
      $region26: #{tpu_custom_call.1} parent=5 // pred_check_branch
        %183 = sbr.rel (%p180) target = $region28
      $region27: #{tpu_custom_call.1} parent=5 // pred_region
        %s184 = ssub.s32 %s17, 1
        %s185 = sand.u32 %s44, 1
        %s186 = scalar_lea.sflag [#allocation5], %s185
        %s187 = sand.u32 %s44, 1
        %s188 = smul.addr %s187, 96
        %s189 = scalar_lea.vmem [#allocation4], %s188
        // Predicated region
        $region29: #{tpu_custom_call.1} parent=27 // pred_check
          %p190 = pneg %p57
        $region30: #{tpu_custom_call.1} parent=27 // pred_check_branch
          %192 = sbr.rel (%p190) target = $region32
        $region31: #{tpu_custom_call.1} parent=27 // pred_region
          %193 = dma.done %s186, 1536
        $region32: #{tpu_custom_call.1} parent=27 // pred_fallthru
          _
        %s194 = sand.u32 %s72, 1
        %s195 = scalar_lea.sflag [#allocation8], %s194
        %s196 = sand.u32 %s72, 1
        %s197 = smul.addr %s196, 96
        %s198 = scalar_lea.vmem [#allocation7], %s197
        // Predicated region
        $region33: #{tpu_custom_call.1} parent=27 // pred_check
          %p199 = pneg %p85
        $region34: #{tpu_custom_call.1} parent=27 // pred_check_branch
          %201 = sbr.rel (%p199) target = $region36
        $region35: #{tpu_custom_call.1} parent=27 // pred_region
          %202 = dma.done %s195, 1536
        $region36: #{tpu_custom_call.1} parent=27 // pred_fallthru
          _
        %s203 = sand.u32 %s44, 1
        %s204 = scalar_lea.sflag [#allocation5], %s203
        %s205 = sand.u32 %s44, 1
        %s206 = smul.addr %s205, 96
        %s207 = scalar_lea.vmem [#allocation4], %s206
        %p208 = pneg %p57
        %p209 = pneg %p54
        %s210 = sand.u32 %s72, 1
        %s211 = scalar_lea.sflag [#allocation8], %s210
        %s212 = sand.u32 %s72, 1
        %s213 = smul.addr %s212, 96
        %s214 = scalar_lea.vmem [#allocation7], %s213
        %p215 = pneg %p85
        %p216 = pneg %p82
        %p217 = pneg %p113
        %p218 = pneg %p110
        %s219 = sand.u32 %s100, 1
        %s220 = scalar_lea.sflag [#allocation6], %s219
        %s221 = sand.u32 %s100, 1
        %s222 = smul.addr %s221, 16
        %s223 = scalar_lea.vmem [#allocation9], %s222
        %v224 = vld [vmem:[%s189] sm:$0xff]
        %v225 = vld [vmem:[%s189 + $0x8] sm:$0xff]
        %v226 = vld [vmem:[%s189 + $0x10] sm:$0xff]
        %v227 = vld [vmem:[%s189 + $0x18] sm:$0xff]
        %v228 = vld [vmem:[%s189 + $0x20] sm:$0xff]
        %v229 = vld [vmem:[%s189 + $0x28] sm:$0xff]
        %v230 = vld [vmem:[%s189 + $0x30] sm:$0xff]
        %v231 = vld [vmem:[%s189 + $0x38] sm:$0xff]
        %v232 = vld [vmem:[%s189 + $0x40] sm:$0xff]
        %v233 = vld [vmem:[%s189 + $0x48] sm:$0xff]
        %v234 = vld [vmem:[%s189 + $0x50] sm:$0xff]
        %v235 = vld [vmem:[%s189 + $0x58] sm:$0xff]
        %v236 = vld [vmem:[%s198] sm:$0xff]
        %v237 = vld [vmem:[%s198 + $0x8] sm:$0xff]
        %v238 = vld [vmem:[%s198 + $0x10] sm:$0xff]
        %v239 = vld [vmem:[%s198 + $0x18] sm:$0xff]
        %v240 = vld [vmem:[%s198 + $0x20] sm:$0xff]
        %v241 = vld [vmem:[%s198 + $0x28] sm:$0xff]
        %v242 = vld [vmem:[%s198 + $0x30] sm:$0xff]
        %v243 = vld [vmem:[%s198 + $0x38] sm:$0xff]
        %v244 = vld [vmem:[%s198 + $0x40] sm:$0xff]
        %v245 = vld [vmem:[%s198 + $0x48] sm:$0xff]
        %v246 = vld [vmem:[%s198 + $0x50] sm:$0xff]
        %v247 = vld [vmem:[%s198 + $0x58] sm:$0xff]
        %vm248 = vcmp.lt.f32.partialorder %v224, 0.0
        %vm249 = vcmp.lt.f32.partialorder %v225, 0.0
        %vm250 = vcmp.lt.f32.partialorder %v226, 0.0
        %vm251 = vcmp.lt.f32.partialorder %v227, 0.0
        %vm252 = vcmp.lt.f32.partialorder %v228, 0.0
        %vm253 = vcmp.lt.f32.partialorder %v229, 0.0
        %vm254 = vcmp.lt.f32.partialorder %v230, 0.0
        %vm255 = vcmp.lt.f32.partialorder %v231, 0.0
        %vm256 = vcmp.lt.f32.partialorder %v232, 0.0
        %vm257 = vcmp.lt.f32.partialorder %v233, 0.0
        %vm258 = vcmp.lt.f32.partialorder %v234, 0.0
        %vm259 = vcmp.lt.f32.partialorder %v235, 0.0
        %v260 = vsel %vm248, 1e+30, %v224
        %v261 = vsel %vm249, 1e+30, %v225
        %v262 = vsel %vm250, 1e+30, %v226
        %v263 = vsel %vm251, 1e+30, %v227
        %v264 = vsel %vm252, 1e+30, %v228
        %v265 = vsel %vm253, 1e+30, %v229
        %v266 = vsel %vm254, 1e+30, %v230
        %v267 = vsel %vm255, 1e+30, %v231
        %v268 = vsel %vm256, 1e+30, %v232
        %v269 = vsel %vm257, 1e+30, %v233
        %v270 = vsel %vm258, 1e+30, %v234
        %v271 = vsel %vm259, 1e+30, %v235
        %s272 = smul.u32 %s27, 128
        %v273 = vlaneseq
        %v274 = vshrl.u32 %v273, 7
        %v275 = vadd.s32 %v274, 8
        %v276 = vlaneseq
        %v277 = vand.u32 %v276, 127
        %v278 = vstv %s272
        %v279 = vadd.s32 %v277, %v278
        %v280 = vadd.s32 %v274, 4294967295
        %v281 = vadd.s32 %v275, 4294967295
        %vm282 = vcmp.ge.s32.totalorder %v280, 0
        %vm283 = vcmp.ge.s32.totalorder %v281, 0
        %vm284 = vcmp.lt.s32.totalorder %v280, 16
        %vm285 = vcmp.lt.s32.totalorder %v281, 16
        %vm286 = vmand %vm282, %vm284
        %vm287 = vmand %vm283, %vm285
        %vm288 = vcmp.ge.s32.totalorder %v274, 0
        %vm289 = vcmp.ge.s32.totalorder %v275, 0
        %vm290 = vcmp.lt.s32.totalorder %v274, 16
        %vm291 = vcmp.lt.s32.totalorder %v275, 16
        %vm292 = vmand %vm288, %vm290
        %vm293 = vmand %vm289, %vm291
        %v294 = vadd.s32 %v274, 1
        %v295 = vadd.s32 %v275, 1
        %vm296 = vcmp.ge.s32.totalorder %v294, 0
        %vm297 = vcmp.ge.s32.totalorder %v295, 0
        %vm298 = vcmp.lt.s32.totalorder %v294, 16
        %vm299 = vcmp.lt.s32.totalorder %v295, 16
        %vm300 = vmand %vm296, %vm298
        %vm301 = vmand %vm297, %vm299
        %v302 = vadd.s32 %v279, 4294967295
        %vm303 = vcmp.ge.s32.totalorder %v302, 0
        %vm304 = vcmp.lt.s32.totalorder %v302, 16
        %vm305 = vmand %vm303, %vm304
        %vm306 = vcmp.ge.s32.totalorder %v279, 0
        %vm307 = vcmp.lt.s32.totalorder %v279, 16
        %vm308 = vmand %vm306, %vm307
        %v309 = vadd.s32 %v279, 1
        %vm310 = vcmp.ge.s32.totalorder %v309, 0
        %vm311 = vcmp.lt.s32.totalorder %v309, 16
        %vm312 = vmand %vm310, %vm311
        %vm313 = vmand %vm286, %vm305
        %vm314 = vmand %vm287, %vm305
        %v315 = vsel %vm313, 0.9248864, 0.0
        %v316 = vsel %vm314, 0.9248864, 0.0
        %vm317 = vmand %vm286, %vm308
        %vm318 = vmand %vm287, %vm308
        %v319 = vsel %vm317, 0.8761586, 0.0
        %v320 = vsel %vm318, 0.8761586, 0.0
        %vm321 = vmand %vm286, %vm312
        %vm322 = vmand %vm287, %vm312
        %v323 = vsel %vm321, 0.9248864, 0.0
        %v324 = vsel %vm322, 0.9248864, 0.0
        %vm325 = vmand %vm292, %vm305
        %vm326 = vmand %vm293, %vm305
        %v327 = vsel %vm325, 0.8761586, 0.0
        %v328 = vsel %vm326, 0.8761586, 0.0
        %vm329 = vmand %vm292, %vm308
        %vm330 = vmand %vm293, %vm308
        %v331 = vsel %vm329, 0.79582006, 0.0
        %v332 = vsel %vm330, 0.79582006, 0.0
        %vm333 = vmand %vm292, %vm312
        %vm334 = vmand %vm293, %vm312
        %v335 = vsel %vm333, 0.8761586, 0.0
        %v336 = vsel %vm334, 0.8761586, 0.0
        %vm337 = vmand %vm300, %vm305
        %vm338 = vmand %vm301, %vm305
        %v339 = vsel %vm337, 0.9248864, 0.0
        %v340 = vsel %vm338, 0.9248864, 0.0
        %vm341 = vmand %vm300, %vm308
        %vm342 = vmand %vm301, %vm308
        %v343 = vsel %vm341, 0.8761586, 0.0
        %v344 = vsel %vm342, 0.8761586, 0.0
        %vm345 = vmand %vm300, %vm312
        %vm346 = vmand %vm301, %vm312
        %v347 = vsel %vm345, 0.9248864, 0.0
        %v348 = vsel %vm346, 0.9248864, 0.0
        %vm355 = vcmask 1046528
        %v356 = vrot.slane %v224, 1
        %v357 = vrot.slane %v227, 1
        %v358 = vsel %vm355, %v356, %v357
        %v359 = vrot.slane %v225, 1
        %v360 = vrot.slane %v228, 1
        %v361 = vsel %vm355, %v359, %v360
        %v362 = vrot.slane %v230, 1
        %v363 = vsel %vm355, %v357, %v362
        %v364 = vrot.slane %v231, 1
        %v365 = vsel %vm355, %v360, %v364
        %366 = vrot.lane.b32.xlu0 %v358, 127
        %v367 = vpop.permute.xlu0 %366
        %368 = vrot.lane.b32.xlu0 %v361, 127
        %v369 = vpop.permute.xlu0 %368
        %370 = vrot.lane.b32.xlu0 %v363, 127
        %v371 = vpop.permute.xlu0 %370
        %372 = vrot.lane.b32.xlu0 %v365, 127
        %v373 = vpop.permute.xlu0 %372
        %374 = vrot.lane.b32.xlu0 %v362, 127
        %v375 = vpop.permute.xlu0 %374
        %376 = vrot.lane.b32.xlu0 %v364, 127
        %v377 = vpop.permute.xlu0 %376
        %vm378 = vcmask 1039360
        %v379 = vsel %vm378, %v367, %v369
        %v380 = vsel %vm378, %v371, %v373
        %v381 = vsel %vm378, %v375, %v377
        %v388 = vsub.f32 %v260, %v379
        %v389 = vsub.f32 %v261, %v369
        %v390 = vsub.f32 %v263, %v380
        %v391 = vsub.f32 %v264, %v373
        %v392 = vsub.f32 %v266, %v381
        %v393 = vsub.f32 %v267, %v377
        %v394 = vand.u32 2147483647, %v388
        %v395 = vand.u32 2147483647, %v389
        %v396 = vand.u32 2147483647, %v390
        %v397 = vand.u32 2147483647, %v391
        %v398 = vand.u32 2147483647, %v392
        %v399 = vand.u32 2147483647, %v393
        %vm406 = vcmask 1041408
        %v407 = vrot.slane %v394, 6
        %v408 = vrot.slane %v396, 6
        %v409 = vsel %vm406, %v407, %v408
        %v410 = vrot.slane %v395, 6
        %v411 = vrot.slane %v397, 6
        %v412 = vsel %vm406, %v410, %v411
        %v413 = vrot.slane %v398, 6
        %v414 = vsel %vm406, %v408, %v413
        %v415 = vrot.slane %v399, 6
        %v416 = vsel %vm406, %v411, %v415
        %417 = vrot.lane.b32.xlu0 %v409, 2
        %v418 = vpop.permute.xlu0 %417
        %419 = vrot.lane.b32.xlu0 %v412, 2
        %v420 = vpop.permute.xlu0 %419
        %421 = vrot.lane.b32.xlu0 %v414, 2
        %v422 = vpop.permute.xlu0 %421
        %423 = vrot.lane.b32.xlu0 %v416, 2
        %v424 = vpop.permute.xlu0 %423
        %vm425 = vcmask 15360
        %v426 = vsel %vm425, %v418, %v420
        %v427 = vsel %vm425, %v422, %v424
        %v430 = vmul.f32 %v315, %v426
        %v431 = vmul.f32 %v316, %v427
        %v432 = vadd.f32 %v430, 0.0
        %v433 = vadd.f32 %v431, 0.0
        %v434 = vsub.f32 %v260, %v369
        %v435 = vsub.f32 %v263, %v373
        %v436 = vsub.f32 %v266, %v377
        %v437 = vand.u32 2147483647, %v434
        %v438 = vand.u32 2147483647, %v435
        %v439 = vand.u32 2147483647, %v436
        %v443 = vrot.slane %v437, 6
        %v444 = vrot.slane %v438, 6
        %v445 = vsel %vm406, %v443, %v444
        %v446 = vrot.slane %v439, 6
        %v447 = vsel %vm406, %v444, %v446
        %448 = vrot.lane.b32.xlu0 %v445, 1
        %v449 = vpop.permute.xlu0 %448
        %450 = vrot.lane.b32.xlu0 %v412, 1
        %v451 = vpop.permute.xlu0 %450
        %452 = vrot.lane.b32.xlu0 %v447, 1
        %v453 = vpop.permute.xlu0 %452
        %454 = vrot.lane.b32.xlu0 %v416, 1
        %v455 = vpop.permute.xlu0 %454
        %vm456 = vcmask 7168
        %v457 = vsel %vm456, %v449, %v451
        %v458 = vsel %vm456, %v453, %v455
        %v461 = vmul.f32 %v319, %v457
        %v462 = vmul.f32 %v320, %v458
        %v463 = vadd.f32 %v432, %v461
        %v464 = vadd.f32 %v433, %v462
        %v468 = vrot.slane %v226, 1
        %v469 = vrot.slane %v229, 1
        %v470 = vsel %vm355, %v468, %v469
        %v471 = vrot.slane %v232, 1
        %v472 = vsel %vm355, %v469, %v471
        %473 = vrot.lane.b32.xlu0 %v470, 127
        %v474 = vpop.permute.xlu0 %473
        %475 = vrot.lane.b32.xlu0 %v472, 127
        %v476 = vpop.permute.xlu0 %475
        %477 = vrot.lane.b32.xlu0 %v471, 127
        %v478 = vpop.permute.xlu0 %477
        %v479 = vsel %vm378, %v369, %v474
        %v480 = vsel %vm378, %v373, %v476
        %v481 = vsel %vm378, %v377, %v478
        %v485 = vsub.f32 %v261, %v479
        %v486 = vsub.f32 %v264, %v480
        %v487 = vsub.f32 %v267, %v481
        %v488 = vand.u32 2147483647, %v485
        %v489 = vand.u32 2147483647, %v486
        %v490 = vand.u32 2147483647, %v487
        %v494 = vrot.slane %v488, 6
        %v495 = vrot.slane %v489, 6
        %v496 = vsel %vm406, %v494, %v495
        %v497 = vrot.slane %v490, 6
        %v498 = vsel %vm406, %v495, %v497
        %v501 = vmul.f32 %v323, %v496
        %v502 = vmul.f32 %v324, %v498
        %v503 = vadd.f32 %v463, %v501
        %v504 = vadd.f32 %v464, %v502
        %505 = vrot.lane.b32.xlu0 %v357, 127
        %v506 = vpop.permute.xlu0 %505
        %507 = vrot.lane.b32.xlu0 %v360, 127
        %v508 = vpop.permute.xlu0 %507
        %v509 = vsel %vm378, %v506, %v508
        %v512 = vsub.f32 %v260, %v509
        %v513 = vsub.f32 %v261, %v508
        %v514 = vand.u32 2147483647, %v512
        %v515 = vand.u32 2147483647, %v513
        %vm518 = vcmask 1040384
        %v519 = vrot.slane %v514, 7
        %v520 = vrot.slane %v396, 7
        %v521 = vsel %vm518, %v519, %v520
        %v522 = vrot.slane %v515, 7
        %v523 = vrot.slane %v397, 7
        %v524 = vsel %vm518, %v522, %v523
        %v525 = vrot.slane %v398, 7
        %v526 = vsel %vm518, %v520, %v525
        %v527 = vrot.slane %v399, 7
        %v528 = vsel %vm518, %v523, %v527
        %529 = vrot.lane.b32.xlu0 %v521, 2
        %v530 = vpop.permute.xlu0 %529
        %531 = vrot.lane.b32.xlu0 %v524, 2
        %v532 = vpop.permute.xlu0 %531
        %533 = vrot.lane.b32.xlu0 %v526, 2
        %v534 = vpop.permute.xlu0 %533
        %535 = vrot.lane.b32.xlu0 %v528, 2
        %v536 = vpop.permute.xlu0 %535
        %v537 = vsel %vm425, %v530, %v532
        %v538 = vsel %vm425, %v534, %v536
        %v541 = vmul.f32 %v327, %v537
        %v542 = vmul.f32 %v328, %v538
        %v543 = vadd.f32 %v503, %v541
        %v544 = vadd.f32 %v504, %v542
        %v545 = vsub.f32 %v260, %v508
        %v546 = vand.u32 2147483647, %v545
        %v548 = vrot.slane %v546, 7
        %v549 = vrot.slane %v438, 7
        %v550 = vsel %vm518, %v548, %v549
        %v551 = vrot.slane %v439, 7
        %v552 = vsel %vm518, %v549, %v551
        %553 = vrot.lane.b32.xlu0 %v550, 1
        %v554 = vpop.permute.xlu0 %553
        %555 = vrot.lane.b32.xlu0 %v524, 1
        %v556 = vpop.permute.xlu0 %555
        %557 = vrot.lane.b32.xlu0 %v552, 1
        %v558 = vpop.permute.xlu0 %557
        %559 = vrot.lane.b32.xlu0 %v528, 1
        %v560 = vpop.permute.xlu0 %559
        %v561 = vsel %vm456, %v554, %v556
        %v562 = vsel %vm456, %v558, %v560
        %v565 = vmul.f32 %v331, %v561
        %v566 = vmul.f32 %v332, %v562
        %v567 = vadd.f32 %v543, %v565
        %v568 = vadd.f32 %v544, %v566
        %569 = vrot.lane.b32.xlu0 %v469, 127
        %v570 = vpop.permute.xlu0 %569
        %v571 = vsel %vm378, %v508, %v570
        %v573 = vsub.f32 %v261, %v571
        %v574 = vand.u32 2147483647, %v573
        %v576 = vrot.slane %v574, 7
        %v577 = vrot.slane %v489, 7
        %v578 = vsel %vm518, %v576, %v577
        %v579 = vrot.slane %v490, 7
        %v580 = vsel %vm518, %v577, %v579
        %v583 = vmul.f32 %v335, %v578
        %v584 = vmul.f32 %v336, %v580
        %v585 = vadd.f32 %v567, %v583
        %v586 = vadd.f32 %v568, %v584
        %v589 = vrot.slane %v233, 1
        %v590 = vsel %vm355, %v362, %v589
        %v591 = vrot.slane %v234, 1
        %v592 = vsel %vm355, %v364, %v591
        %593 = vrot.lane.b32.xlu0 %v590, 127
        %v594 = vpop.permute.xlu0 %593
        %595 = vrot.lane.b32.xlu0 %v592, 127
        %v596 = vpop.permute.xlu0 %595
        %v597 = vsel %vm378, %v594, %v596
        %v600 = vsub.f32 %v266, %v597
        %v601 = vsub.f32 %v267, %v596
        %v602 = vand.u32 2147483647, %v600
        %v603 = vand.u32 2147483647, %v601
        %606 = vrot.lane.b32.xlu0 %v396, 2
        %v607 = vpop.permute.xlu0 %606
        %608 = vrot.lane.b32.xlu0 %v397, 2
        %v609 = vpop.permute.xlu0 %608
        %610 = vrot.lane.b32.xlu0 %v602, 2
        %v611 = vpop.permute.xlu0 %610
        %612 = vrot.lane.b32.xlu0 %v603, 2
        %v613 = vpop.permute.xlu0 %612
        %v614 = vsel %vm425, %v607, %v609
        %v615 = vsel %vm425, %v611, %v613
        %v618 = vmul.f32 %v339, %v614
        %v619 = vmul.f32 %v340, %v615
        %v620 = vadd.f32 %v585, %v618
        %v621 = vadd.f32 %v586, %v619
        %v622 = vsub.f32 %v266, %v596
        %v623 = vand.u32 2147483647, %v622
        %625 = vrot.lane.b32.xlu0 %v438, 1
        %v626 = vpop.permute.xlu0 %625
        %627 = vrot.lane.b32.xlu0 %v397, 1
        %v628 = vpop.permute.xlu0 %627
        %629 = vrot.lane.b32.xlu0 %v623, 1
        %v630 = vpop.permute.xlu0 %629
        %631 = vrot.lane.b32.xlu0 %v603, 1
        %v632 = vpop.permute.xlu0 %631
        %v633 = vsel %vm456, %v626, %v628
        %v634 = vsel %vm456, %v630, %v632
        %v637 = vmul.f32 %v343, %v633
        %v638 = vmul.f32 %v344, %v634
        %v639 = vadd.f32 %v620, %v637
        %v640 = vadd.f32 %v621, %v638
        %v642 = vrot.slane %v235, 1
        %v643 = vsel %vm355, %v471, %v642
        %644 = vrot.lane.b32.xlu0 %v643, 127
        %v645 = vpop.permute.xlu0 %644
        %v646 = vsel %vm378, %v596, %v645
        %v648 = vsub.f32 %v267, %v646
        %v649 = vand.u32 2147483647, %v648
        %v650 = vmul.f32 %v347, %v489
        %v651 = vmul.f32 %v348, %v649
        %v652 = vadd.f32 %v639, %v650
        %v653 = vadd.f32 %v640, %v651
        %654 = vst [vmem:[#allocation2] sm:$0xff] %v652
        %655 = vst [vmem:[#allocation2 + $0x8] sm:$0xff] %v653
        %656 = vrot.lane.b32.xlu0 %v236, 1
        %v657 = vpop.permute.xlu0 %656
        %658 = vrot.lane.b32.xlu0 %v237, 1
        %v659 = vpop.permute.xlu0 %658
        %660 = vrot.lane.b32.xlu0 %v239, 1
        %v661 = vpop.permute.xlu0 %660
        %662 = vrot.lane.b32.xlu0 %v240, 1
        %v663 = vpop.permute.xlu0 %662
        %664 = vrot.lane.b32.xlu0 %v242, 1
        %v665 = vpop.permute.xlu0 %664
        %666 = vrot.lane.b32.xlu0 %v243, 1
        %v667 = vpop.permute.xlu0 %666
        %v668 = vsel %vm456, %v657, %v659
        %v669 = vsel %vm456, %v661, %v663
        %v670 = vsel %vm456, %v665, %v667
        %671 = vst [vmem:[#allocation3 - $0x7] sm:$0x80] %v668
        %672 = vst [vmem:[#allocation3 + $0x1] sm:$0xff] %v669
        %673 = vst [vmem:[#allocation3 + $0x9] sm:$0x7f] %v670
        %v680 = vsub.f32 %v260, %v358
        %v681 = vsub.f32 %v261, %v361
        %v682 = vsub.f32 %v263, %v363
        %v683 = vsub.f32 %v264, %v365
        %v684 = vsub.f32 %v266, %v362
        %v685 = vsub.f32 %v267, %v364
        %v686 = vand.u32 2147483647, %v680
        %v687 = vand.u32 2147483647, %v681
        %v688 = vand.u32 2147483647, %v682
        %v689 = vand.u32 2147483647, %v683
        %v690 = vand.u32 2147483647, %v684
        %v691 = vand.u32 2147483647, %v685
        %v698 = vrot.slane %v686, 6
        %v699 = vrot.slane %v688, 6
        %v700 = vsel %vm406, %v698, %v699
        %v701 = vrot.slane %v687, 6
        %v702 = vrot.slane %v689, 6
        %v703 = vsel %vm406, %v701, %v702
        %v704 = vrot.slane %v690, 6
        %v705 = vsel %vm406, %v699, %v704
        %v706 = vrot.slane %v691, 6
        %v707 = vsel %vm406, %v702, %v706
        %708 = vrot.lane.b32.xlu0 %v700, 1
        %v709 = vpop.permute.xlu0 %708
        %710 = vrot.lane.b32.xlu0 %v703, 1
        %v711 = vpop.permute.xlu0 %710
        %712 = vrot.lane.b32.xlu0 %v705, 1
        %v713 = vpop.permute.xlu0 %712
        %714 = vrot.lane.b32.xlu0 %v707, 1
        %v715 = vpop.permute.xlu0 %714
        %v716 = vsel %vm456, %v709, %v711
        %v717 = vsel %vm456, %v713, %v715
        %v720 = vmul.f32 %v315, %v716
        %v721 = vmul.f32 %v316, %v717
        %v722 = vadd.f32 %v720, 0.0
        %v723 = vadd.f32 %v721, 0.0
        %v726 = vmul.f32 %v319, %v703
        %v727 = vmul.f32 %v320, %v707
        %v728 = vadd.f32 %v722, %v726
        %v729 = vadd.f32 %v723, %v727
        %v733 = vsub.f32 %v262, %v470
        %v734 = vsub.f32 %v265, %v472
        %v735 = vsub.f32 %v268, %v471
        %v736 = vand.u32 2147483647, %v733
        %v737 = vand.u32 2147483647, %v734
        %v738 = vand.u32 2147483647, %v735
        %v742 = vrot.slane %v736, 6
        %v743 = vrot.slane %v737, 6
        %v744 = vsel %vm406, %v742, %v743
        %v745 = vrot.slane %v738, 6
        %v746 = vsel %vm406, %v743, %v745
        %747 = vrot.lane.b32.xlu0 %v703, 127
        %v748 = vpop.permute.xlu0 %747
        %749 = vrot.lane.b32.xlu0 %v744, 127
        %v750 = vpop.permute.xlu0 %749
        %751 = vrot.lane.b32.xlu0 %v707, 127
        %v752 = vpop.permute.xlu0 %751
        %753 = vrot.lane.b32.xlu0 %v746, 127
        %v754 = vpop.permute.xlu0 %753
        %v755 = vsel %vm378, %v748, %v750
        %v756 = vsel %vm378, %v752, %v754
        %v759 = vmul.f32 %v323, %v755
        %v760 = vmul.f32 %v324, %v756
        %v761 = vadd.f32 %v728, %v759
        %v762 = vadd.f32 %v729, %v760
        %v765 = vsub.f32 %v260, %v357
        %v766 = vsub.f32 %v261, %v360
        %v767 = vand.u32 2147483647, %v765
        %v768 = vand.u32 2147483647, %v766
        %v771 = vrot.slane %v767, 7
        %v772 = vrot.slane %v688, 7
        %v773 = vsel %vm518, %v771, %v772
        %v774 = vrot.slane %v768, 7
        %v775 = vrot.slane %v689, 7
        %v776 = vsel %vm518, %v774, %v775
        %v777 = vrot.slane %v690, 7
        %v778 = vsel %vm518, %v772, %v777
        %v779 = vrot.slane %v691, 7
        %v780 = vsel %vm518, %v775, %v779
        %781 = vrot.lane.b32.xlu0 %v773, 1
        %v782 = vpop.permute.xlu0 %781
        %783 = vrot.lane.b32.xlu0 %v776, 1
        %v784 = vpop.permute.xlu0 %783
        %785 = vrot.lane.b32.xlu0 %v778, 1
        %v786 = vpop.permute.xlu0 %785
        %787 = vrot.lane.b32.xlu0 %v780, 1
        %v788 = vpop.permute.xlu0 %787
        %v789 = vsel %vm456, %v782, %v784
        %v790 = vsel %vm456, %v786, %v788
        %v793 = vmul.f32 %v327, %v789
        %v794 = vmul.f32 %v328, %v790
        %v795 = vadd.f32 %v761, %v793
        %v796 = vadd.f32 %v762, %v794
        %v799 = vmul.f32 %v331, %v776
        %v800 = vmul.f32 %v332, %v780
        %v801 = vadd.f32 %v795, %v799
        %v802 = vadd.f32 %v796, %v800
        %v804 = vsub.f32 %v262, %v469
        %v805 = vand.u32 2147483647, %v804
        %v807 = vrot.slane %v805, 7
        %v808 = vrot.slane %v737, 7
        %v809 = vsel %vm518, %v807, %v808
        %v810 = vrot.slane %v738, 7
        %v811 = vsel %vm518, %v808, %v810
        %812 = vrot.lane.b32.xlu0 %v776, 127
        %v813 = vpop.permute.xlu0 %812
        %814 = vrot.lane.b32.xlu0 %v809, 127
        %v815 = vpop.permute.xlu0 %814
        %816 = vrot.lane.b32.xlu0 %v780, 127
        %v817 = vpop.permute.xlu0 %816
        %818 = vrot.lane.b32.xlu0 %v811, 127
        %v819 = vpop.permute.xlu0 %818
        %v820 = vsel %vm378, %v813, %v815
        %v821 = vsel %vm378, %v817, %v819
        %v824 = vmul.f32 %v335, %v820
        %v825 = vmul.f32 %v336, %v821
        %v826 = vadd.f32 %v801, %v824
        %v827 = vadd.f32 %v802, %v825
        %v830 = vsub.f32 %v266, %v590
        %v831 = vsub.f32 %v267, %v592
        %v832 = vand.u32 2147483647, %v830
        %v833 = vand.u32 2147483647, %v831
        %836 = vrot.lane.b32.xlu0 %v688, 1
        %v837 = vpop.permute.xlu0 %836
        %838 = vrot.lane.b32.xlu0 %v689, 1
        %v839 = vpop.permute.xlu0 %838
        %840 = vrot.lane.b32.xlu0 %v832, 1
        %v841 = vpop.permute.xlu0 %840
        %842 = vrot.lane.b32.xlu0 %v833, 1
        %v843 = vpop.permute.xlu0 %842
        %v844 = vsel %vm456, %v837, %v839
        %v845 = vsel %vm456, %v841, %v843
        %v848 = vmul.f32 %v339, %v844
        %v849 = vmul.f32 %v340, %v845
        %v850 = vadd.f32 %v826, %v848
        %v851 = vadd.f32 %v827, %v849
        %v852 = vmul.f32 %v343, %v689
        %v853 = vmul.f32 %v344, %v833
        %v854 = vadd.f32 %v850, %v852
        %v855 = vadd.f32 %v851, %v853
        %v857 = vsub.f32 %v268, %v643
        %v858 = vand.u32 2147483647, %v857
        %860 = vrot.lane.b32.xlu0 %v689, 127
        %v861 = vpop.permute.xlu0 %860
        %862 = vrot.lane.b32.xlu0 %v737, 127
        %v863 = vpop.permute.xlu0 %862
        %864 = vrot.lane.b32.xlu0 %v833, 127
        %v865 = vpop.permute.xlu0 %864
        %866 = vrot.lane.b32.xlu0 %v858, 127
        %v867 = vpop.permute.xlu0 %866
        %v868 = vsel %vm378, %v861, %v863
        %v869 = vsel %vm378, %v865, %v867
        %v872 = vmul.f32 %v347, %v868
        %v873 = vmul.f32 %v348, %v869
        %v874 = vadd.f32 %v854, %v872
        %v875 = vadd.f32 %v855, %v873
        %s876 = scalar_lea.vmem [#allocation2], 16
        %877 = vst [vmem:[%s876] sm:$0xff] %v874
        %878 = vst [vmem:[%s876 + $0x8] sm:$0xff] %v875
        %s879 = scalar_lea.vmem [#allocation3], 16
        %880 = vst [vmem:[%s879 - $0x7] sm:$0x80] %v237
        %881 = vst [vmem:[%s879 + $0x1] sm:$0xff] %v240
        %882 = vst [vmem:[%s879 + $0x9] sm:$0x7f] %v243
        %883 = vrot.lane.b32.xlu0 %v358, 1
        %v884 = vpop.permute.xlu0 %883
        %885 = vrot.lane.b32.xlu0 %v361, 1
        %v886 = vpop.permute.xlu0 %885
        %887 = vrot.lane.b32.xlu0 %v363, 1
        %v888 = vpop.permute.xlu0 %887
        %889 = vrot.lane.b32.xlu0 %v365, 1
        %v890 = vpop.permute.xlu0 %889
        %891 = vrot.lane.b32.xlu0 %v362, 1
        %v892 = vpop.permute.xlu0 %891
        %893 = vrot.lane.b32.xlu0 %v364, 1
        %v894 = vpop.permute.xlu0 %893
        %v895 = vsel %vm456, %v884, %v886
        %v896 = vsel %vm456, %v888, %v890
        %v897 = vsel %vm456, %v892, %v894
        %v901 = vsub.f32 %v261, %v895
        %v902 = vsub.f32 %v264, %v896
        %v903 = vsub.f32 %v267, %v897
        %v904 = vand.u32 2147483647, %v901
        %v905 = vand.u32 2147483647, %v902
        %v906 = vand.u32 2147483647, %v903
        %v910 = vrot.slane %v904, 6
        %v911 = vrot.slane %v905, 6
        %v912 = vsel %vm406, %v910, %v911
        %v913 = vrot.slane %v906, 6
        %v914 = vsel %vm406, %v911, %v913
        %v917 = vmul.f32 %v315, %v912
        %v918 = vmul.f32 %v316, %v914
        %v919 = vadd.f32 %v917, 0.0
        %v920 = vadd.f32 %v918, 0.0
        %v924 = vsub.f32 %v261, %v886
        %v925 = vsub.f32 %v262, %v886
        %v926 = vsub.f32 %v264, %v890
        %v927 = vsub.f32 %v265, %v890
        %v928 = vsub.f32 %v267, %v894
        %v929 = vsub.f32 %v268, %v894
        %v930 = vand.u32 2147483647, %v924
        %v931 = vand.u32 2147483647, %v925
        %v932 = vand.u32 2147483647, %v926
        %v933 = vand.u32 2147483647, %v927
        %v934 = vand.u32 2147483647, %v928
        %v935 = vand.u32 2147483647, %v929
        %v942 = vrot.slane %v930, 6
        %v943 = vrot.slane %v932, 6
        %v944 = vsel %vm406, %v942, %v943
        %v945 = vrot.slane %v931, 6
        %v946 = vrot.slane %v933, 6
        %v947 = vsel %vm406, %v945, %v946
        %v948 = vrot.slane %v934, 6
        %v949 = vsel %vm406, %v943, %v948
        %v950 = vrot.slane %v935, 6
        %v951 = vsel %vm406, %v946, %v950
        %952 = vrot.lane.b32.xlu0 %v944, 127
        %v953 = vpop.permute.xlu0 %952
        %954 = vrot.lane.b32.xlu0 %v947, 127
        %v955 = vpop.permute.xlu0 %954
        %956 = vrot.lane.b32.xlu0 %v949, 127
        %v957 = vpop.permute.xlu0 %956
        %958 = vrot.lane.b32.xlu0 %v951, 127
        %v959 = vpop.permute.xlu0 %958
        %v960 = vsel %vm378, %v953, %v955
        %v961 = vsel %vm378, %v957, %v959
        %v964 = vmul.f32 %v319, %v960
        %v965 = vmul.f32 %v320, %v961
        %v966 = vadd.f32 %v919, %v964
        %v967 = vadd.f32 %v920, %v965
        %968 = vrot.lane.b32.xlu0 %v470, 1
        %v969 = vpop.permute.xlu0 %968
        %970 = vrot.lane.b32.xlu0 %v472, 1
        %v971 = vpop.permute.xlu0 %970
        %972 = vrot.lane.b32.xlu0 %v471, 1
        %v973 = vpop.permute.xlu0 %972
        %v974 = vsel %vm456, %v886, %v969
        %v975 = vsel %vm456, %v890, %v971
        %v976 = vsel %vm456, %v894, %v973
        %v980 = vsub.f32 %v262, %v974
        %v981 = vsub.f32 %v265, %v975
        %v982 = vsub.f32 %v268, %v976
        %v983 = vand.u32 2147483647, %v980
        %v984 = vand.u32 2147483647, %v981
        %v985 = vand.u32 2147483647, %v982
        %v989 = vrot.slane %v983, 6
        %v990 = vrot.slane %v984, 6
        %v991 = vsel %vm406, %v989, %v990
        %v992 = vrot.slane %v985, 6
        %v993 = vsel %vm406, %v990, %v992
        %994 = vrot.lane.b32.xlu0 %v944, 126
        %v995 = vpop.permute.xlu0 %994
        %996 = vrot.lane.b32.xlu0 %v991, 126
        %v997 = vpop.permute.xlu0 %996
        %998 = vrot.lane.b32.xlu0 %v949, 126
        %v999 = vpop.permute.xlu0 %998
        %1000 = vrot.lane.b32.xlu0 %v993, 126
        %v1001 = vpop.permute.xlu0 %1000
        %vm1002 = vcmask 1031168
        %v1003 = vsel %vm1002, %v995, %v997
        %v1004 = vsel %vm1002, %v999, %v1001
        %v1007 = vmul.f32 %v323, %v1003
        %v1008 = vmul.f32 %v324, %v1004
        %v1009 = vadd.f32 %v966, %v1007
        %v1010 = vadd.f32 %v967, %v1008
        %1011 = vrot.lane.b32.xlu0 %v357, 1
        %v1012 = vpop.permute.xlu0 %1011
        %1013 = vrot.lane.b32.xlu0 %v360, 1
        %v1014 = vpop.permute.xlu0 %1013
        %v1015 = vsel %vm456, %v1012, %v1014
        %v1017 = vsub.f32 %v261, %v1015
        %v1018 = vand.u32 2147483647, %v1017
        %v1020 = vrot.slane %v1018, 7
        %v1021 = vrot.slane %v905, 7
        %v1022 = vsel %vm518, %v1020, %v1021
        %v1023 = vrot.slane %v906, 7
        %v1024 = vsel %vm518, %v1021, %v1023
        %v1027 = vmul.f32 %v327, %v1022
        %v1028 = vmul.f32 %v328, %v1024
        %v1029 = vadd.f32 %v1009, %v1027
        %v1030 = vadd.f32 %v1010, %v1028
        %v1032 = vsub.f32 %v261, %v1014
        %v1033 = vsub.f32 %v262, %v1014
        %v1034 = vand.u32 2147483647, %v1032
        %v1035 = vand.u32 2147483647, %v1033
        %v1038 = vrot.slane %v1034, 7
        %v1039 = vrot.slane %v932, 7
        %v1040 = vsel %vm518, %v1038, %v1039
        %v1041 = vrot.slane %v1035, 7
        %v1042 = vrot.slane %v933, 7
        %v1043 = vsel %vm518, %v1041, %v1042
        %v1044 = vrot.slane %v934, 7
        %v1045 = vsel %vm518, %v1039, %v1044
        %v1046 = vrot.slane %v935, 7
        %v1047 = vsel %vm518, %v1042, %v1046
        %1048 = vrot.lane.b32.xlu0 %v1040, 127
        %v1049 = vpop.permute.xlu0 %1048
        %1050 = vrot.lane.b32.xlu0 %v1043, 127
        %v1051 = vpop.permute.xlu0 %1050
        %1052 = vrot.lane.b32.xlu0 %v1045, 127
        %v1053 = vpop.permute.xlu0 %1052
        %1054 = vrot.lane.b32.xlu0 %v1047, 127
        %v1055 = vpop.permute.xlu0 %1054
        %v1056 = vsel %vm378, %v1049, %v1051
        %v1057 = vsel %vm378, %v1053, %v1055
        %v1060 = vmul.f32 %v331, %v1056
        %v1061 = vmul.f32 %v332, %v1057
        %v1062 = vadd.f32 %v1029, %v1060
        %v1063 = vadd.f32 %v1030, %v1061
        %1064 = vrot.lane.b32.xlu0 %v469, 1
        %v1065 = vpop.permute.xlu0 %1064
        %v1066 = vsel %vm456, %v1014, %v1065
        %v1068 = vsub.f32 %v262, %v1066
        %v1069 = vand.u32 2147483647, %v1068
        %v1071 = vrot.slane %v1069, 7
        %v1072 = vrot.slane %v984, 7
        %v1073 = vsel %vm518, %v1071, %v1072
        %v1074 = vrot.slane %v985, 7
        %v1075 = vsel %vm518, %v1072, %v1074
        %1076 = vrot.lane.b32.xlu0 %v1040, 126
        %v1077 = vpop.permute.xlu0 %1076
        %1078 = vrot.lane.b32.xlu0 %v1073, 126
        %v1079 = vpop.permute.xlu0 %1078
        %1080 = vrot.lane.b32.xlu0 %v1045, 126
        %v1081 = vpop.permute.xlu0 %1080
        %1082 = vrot.lane.b32.xlu0 %v1075, 126
        %v1083 = vpop.permute.xlu0 %1082
        %v1084 = vsel %vm1002, %v1077, %v1079
        %v1085 = vsel %vm1002, %v1081, %v1083
        %v1088 = vmul.f32 %v335, %v1084
        %v1089 = vmul.f32 %v336, %v1085
        %v1090 = vadd.f32 %v1062, %v1088
        %v1091 = vadd.f32 %v1063, %v1089
        %1092 = vrot.lane.b32.xlu0 %v590, 1
        %v1093 = vpop.permute.xlu0 %1092
        %1094 = vrot.lane.b32.xlu0 %v592, 1
        %v1095 = vpop.permute.xlu0 %1094
        %v1096 = vsel %vm456, %v1093, %v1095
        %v1098 = vsub.f32 %v267, %v1096
        %v1099 = vand.u32 2147483647, %v1098
        %v1100 = vmul.f32 %v339, %v905
        %v1101 = vmul.f32 %v340, %v1099
        %v1102 = vadd.f32 %v1090, %v1100
        %v1103 = vadd.f32 %v1091, %v1101
        %v1105 = vsub.f32 %v267, %v1095
        %v1106 = vsub.f32 %v268, %v1095
        %v1107 = vand.u32 2147483647, %v1105
        %v1108 = vand.u32 2147483647, %v1106
        %1111 = vrot.lane.b32.xlu0 %v932, 127
        %v1112 = vpop.permute.xlu0 %1111
        %1113 = vrot.lane.b32.xlu0 %v933, 127
        %v1114 = vpop.permute.xlu0 %1113
        %1115 = vrot.lane.b32.xlu0 %v1107, 127
        %v1116 = vpop.permute.xlu0 %1115
        %1117 = vrot.lane.b32.xlu0 %v1108, 127
        %v1118 = vpop.permute.xlu0 %1117
        %v1119 = vsel %vm378, %v1112, %v1114
        %v1120 = vsel %vm378, %v1116, %v1118
        %v1123 = vmul.f32 %v343, %v1119
        %v1124 = vmul.f32 %v344, %v1120
        %v1125 = vadd.f32 %v1102, %v1123
        %v1126 = vadd.f32 %v1103, %v1124
        %1127 = vrot.lane.b32.xlu0 %v643, 1
        %v1128 = vpop.permute.xlu0 %1127
        %v1129 = vsel %vm456, %v1095, %v1128
        %v1131 = vsub.f32 %v268, %v1129
        %v1132 = vand.u32 2147483647, %v1131
        %1134 = vrot.lane.b32.xlu0 %v932, 126
        %v1135 = vpop.permute.xlu0 %1134
        %1136 = vrot.lane.b32.xlu0 %v984, 126
        %v1137 = vpop.permute.xlu0 %1136
        %1138 = vrot.lane.b32.xlu0 %v1107, 126
        %v1139 = vpop.permute.xlu0 %1138
        %1140 = vrot.lane.b32.xlu0 %v1132, 126
        %v1141 = vpop.permute.xlu0 %1140
        %v1142 = vsel %vm1002, %v1135, %v1137
        %v1143 = vsel %vm1002, %v1139, %v1141
        %v1146 = vmul.f32 %v347, %v1142
        %v1147 = vmul.f32 %v348, %v1143
        %v1148 = vadd.f32 %v1125, %v1146
        %v1149 = vadd.f32 %v1126, %v1147
        %s1150 = scalar_lea.vmem [#allocation2], 32
        %1151 = vst [vmem:[%s1150] sm:$0xff] %v1148
        %1152 = vst [vmem:[%s1150 + $0x8] sm:$0xff] %v1149
        %1153 = vrot.lane.b32.xlu0 %v237, 127
        %v1154 = vpop.permute.xlu0 %1153
        %1155 = vrot.lane.b32.xlu0 %v238, 127
        %v1156 = vpop.permute.xlu0 %1155
        %1157 = vrot.lane.b32.xlu0 %v240, 127
        %v1158 = vpop.permute.xlu0 %1157
        %1159 = vrot.lane.b32.xlu0 %v241, 127
        %v1160 = vpop.permute.xlu0 %1159
        %1161 = vrot.lane.b32.xlu0 %v243, 127
        %v1162 = vpop.permute.xlu0 %1161
        %1163 = vrot.lane.b32.xlu0 %v244, 127
        %v1164 = vpop.permute.xlu0 %1163
        %v1165 = vsel %vm378, %v1154, %v1156
        %v1166 = vsel %vm378, %v1158, %v1160
        %v1167 = vsel %vm378, %v1162, %v1164
        %s1168 = scalar_lea.vmem [#allocation3], 32
        %1169 = vst [vmem:[%s1168 - $0x7] sm:$0x80] %v1165
        %1170 = vst [vmem:[%s1168 + $0x1] sm:$0xff] %v1166
        %1171 = vst [vmem:[%s1168 + $0x9] sm:$0x7f] %v1167
        %1172 = vrot.lane.b32.xlu0 %v224, 127
        %v1173 = vpop.permute.xlu0 %1172
        %1174 = vrot.lane.b32.xlu0 %v225, 127
        %v1175 = vpop.permute.xlu0 %1174
        %1176 = vrot.lane.b32.xlu0 %v227, 127
        %v1177 = vpop.permute.xlu0 %1176
        %1178 = vrot.lane.b32.xlu0 %v228, 127
        %v1179 = vpop.permute.xlu0 %1178
        %1180 = vrot.lane.b32.xlu0 %v230, 127
        %v1181 = vpop.permute.xlu0 %1180
        %1182 = vrot.lane.b32.xlu0 %v231, 127
        %v1183 = vpop.permute.xlu0 %1182
        %v1184 = vsel %vm378, %v1173, %v1175
        %v1185 = vsel %vm378, %v1177, %v1179
        %v1186 = vsel %vm378, %v1181, %v1183
        %v1193 = vsub.f32 %v260, %v1184
        %v1194 = vsub.f32 %v261, %v1175
        %v1195 = vsub.f32 %v263, %v1185
        %v1196 = vsub.f32 %v264, %v1179
        %v1197 = vsub.f32 %v266, %v1186
        %v1198 = vsub.f32 %v267, %v1183
        %v1199 = vand.u32 2147483647, %v1193
        %v1200 = vand.u32 2147483647, %v1194
        %v1201 = vand.u32 2147483647, %v1195
        %v1202 = vand.u32 2147483647, %v1196
        %v1203 = vand.u32 2147483647, %v1197
        %v1204 = vand.u32 2147483647, %v1198
        %v1211 = vrot.slane %v1199, 7
        %v1212 = vrot.slane %v1201, 7
        %v1213 = vsel %vm518, %v1211, %v1212
        %v1214 = vrot.slane %v1200, 7
        %v1215 = vrot.slane %v1202, 7
        %v1216 = vsel %vm518, %v1214, %v1215
        %v1217 = vrot.slane %v1203, 7
        %v1218 = vsel %vm518, %v1212, %v1217
        %v1219 = vrot.slane %v1204, 7
        %v1220 = vsel %vm518, %v1215, %v1219
        %1221 = vrot.lane.b32.xlu0 %v1213, 2
        %v1222 = vpop.permute.xlu0 %1221
        %1223 = vrot.lane.b32.xlu0 %v1216, 2
        %v1224 = vpop.permute.xlu0 %1223
        %1225 = vrot.lane.b32.xlu0 %v1218, 2
        %v1226 = vpop.permute.xlu0 %1225
        %1227 = vrot.lane.b32.xlu0 %v1220, 2
        %v1228 = vpop.permute.xlu0 %1227
        %v1229 = vsel %vm425, %v1222, %v1224
        %v1230 = vsel %vm425, %v1226, %v1228
        %v1233 = vmul.f32 %v315, %v1229
        %v1234 = vmul.f32 %v316, %v1230
        %v1235 = vadd.f32 %v1233, 0.0
        %v1236 = vadd.f32 %v1234, 0.0
        %v1237 = vsub.f32 %v260, %v1175
        %v1238 = vsub.f32 %v263, %v1179
        %v1239 = vsub.f32 %v266, %v1183
        %v1240 = vand.u32 2147483647, %v1237
        %v1241 = vand.u32 2147483647, %v1238
        %v1242 = vand.u32 2147483647, %v1239
        %v1246 = vrot.slane %v1240, 7
        %v1247 = vrot.slane %v1241, 7
        %v1248 = vsel %vm518, %v1246, %v1247
        %v1249 = vrot.slane %v1242, 7
        %v1250 = vsel %vm518, %v1247, %v1249
        %1251 = vrot.lane.b32.xlu0 %v1248, 1
        %v1252 = vpop.permute.xlu0 %1251
        %1253 = vrot.lane.b32.xlu0 %v1216, 1
        %v1254 = vpop.permute.xlu0 %1253
        %1255 = vrot.lane.b32.xlu0 %v1250, 1
        %v1256 = vpop.permute.xlu0 %1255
        %1257 = vrot.lane.b32.xlu0 %v1220, 1
        %v1258 = vpop.permute.xlu0 %1257
        %v1259 = vsel %vm456, %v1252, %v1254
        %v1260 = vsel %vm456, %v1256, %v1258
        %v1263 = vmul.f32 %v319, %v1259
        %v1264 = vmul.f32 %v320, %v1260
        %v1265 = vadd.f32 %v1235, %v1263
        %v1266 = vadd.f32 %v1236, %v1264
        %1267 = vrot.lane.b32.xlu0 %v226, 127
        %v1268 = vpop.permute.xlu0 %1267
        %1269 = vrot.lane.b32.xlu0 %v229, 127
        %v1270 = vpop.permute.xlu0 %1269
        %1271 = vrot.lane.b32.xlu0 %v232, 127
        %v1272 = vpop.permute.xlu0 %1271
        %v1273 = vsel %vm378, %v1175, %v1268
        %v1274 = vsel %vm378, %v1179, %v1270
        %v1275 = vsel %vm378, %v1183, %v1272
        %v1279 = vsub.f32 %v261, %v1273
        %v1280 = vsub.f32 %v264, %v1274
        %v1281 = vsub.f32 %v267, %v1275
        %v1282 = vand.u32 2147483647, %v1279
        %v1283 = vand.u32 2147483647, %v1280
        %v1284 = vand.u32 2147483647, %v1281
        %v1288 = vrot.slane %v1282, 7
        %v1289 = vrot.slane %v1283, 7
        %v1290 = vsel %vm518, %v1288, %v1289
        %v1291 = vrot.slane %v1284, 7
        %v1292 = vsel %vm518, %v1289, %v1291
        %v1295 = vmul.f32 %v323, %v1290
        %v1296 = vmul.f32 %v324, %v1292
        %v1297 = vadd.f32 %v1265, %v1295
        %v1298 = vadd.f32 %v1266, %v1296
        %1299 = vrot.lane.b32.xlu0 %v1201, 2
        %v1300 = vpop.permute.xlu0 %1299
        %1301 = vrot.lane.b32.xlu0 %v1202, 2
        %v1302 = vpop.permute.xlu0 %1301
        %1303 = vrot.lane.b32.xlu0 %v1203, 2
        %v1304 = vpop.permute.xlu0 %1303
        %1305 = vrot.lane.b32.xlu0 %v1204, 2
        %v1306 = vpop.permute.xlu0 %1305
        %v1307 = vsel %vm425, %v1300, %v1302
        %v1308 = vsel %vm425, %v1304, %v1306
        %v1311 = vmul.f32 %v327, %v1307
        %v1312 = vmul.f32 %v328, %v1308
        %v1313 = vadd.f32 %v1297, %v1311
        %v1314 = vadd.f32 %v1298, %v1312
        %1315 = vrot.lane.b32.xlu0 %v1241, 1
        %v1316 = vpop.permute.xlu0 %1315
        %1317 = vrot.lane.b32.xlu0 %v1202, 1
        %v1318 = vpop.permute.xlu0 %1317
        %1319 = vrot.lane.b32.xlu0 %v1242, 1
        %v1320 = vpop.permute.xlu0 %1319
        %1321 = vrot.lane.b32.xlu0 %v1204, 1
        %v1322 = vpop.permute.xlu0 %1321
        %v1323 = vsel %vm456, %v1316, %v1318
        %v1324 = vsel %vm456, %v1320, %v1322
        %v1327 = vmul.f32 %v331, %v1323
        %v1328 = vmul.f32 %v332, %v1324
        %v1329 = vadd.f32 %v1313, %v1327
        %v1330 = vadd.f32 %v1314, %v1328
        %v1331 = vmul.f32 %v335, %v1283
        %v1332 = vmul.f32 %v336, %v1284
        %v1333 = vadd.f32 %v1329, %v1331
        %v1334 = vadd.f32 %v1330, %v1332
        %1335 = vrot.lane.b32.xlu0 %v233, 127
        %v1336 = vpop.permute.xlu0 %1335
        %1337 = vrot.lane.b32.xlu0 %v234, 127
        %v1338 = vpop.permute.xlu0 %1337
        %v1339 = vsel %vm378, %v1336, %v1338
        %v1342 = vsub.f32 %v269, %v1339
        %v1343 = vsub.f32 %v270, %v1338
        %v1344 = vand.u32 2147483647, %v1342
        %v1345 = vand.u32 2147483647, %v1343
        %v1348 = vrot.slane %v1201, 1
        %v1349 = vrot.slane %v1203, 1
        %v1350 = vsel %vm355, %v1348, %v1349
        %v1351 = vrot.slane %v1202, 1
        %v1352 = vrot.slane %v1204, 1
        %v1353 = vsel %vm355, %v1351, %v1352
        %v1354 = vrot.slane %v1344, 1
        %v1355 = vsel %vm355, %v1349, %v1354
        %v1356 = vrot.slane %v1345, 1
        %v1357 = vsel %vm355, %v1352, %v1356
        %1358 = vrot.lane.b32.xlu0 %v1350, 2
        %v1359 = vpop.permute.xlu0 %1358
        %1360 = vrot.lane.b32.xlu0 %v1353, 2
        %v1361 = vpop.permute.xlu0 %1360
        %1362 = vrot.lane.b32.xlu0 %v1355, 2
        %v1363 = vpop.permute.xlu0 %1362
        %1364 = vrot.lane.b32.xlu0 %v1357, 2
        %v1365 = vpop.permute.xlu0 %1364
        %v1366 = vsel %vm425, %v1359, %v1361
        %v1367 = vsel %vm425, %v1363, %v1365
        %v1370 = vmul.f32 %v339, %v1366
        %v1371 = vmul.f32 %v340, %v1367
        %v1372 = vadd.f32 %v1333, %v1370
        %v1373 = vadd.f32 %v1334, %v1371
        %v1374 = vsub.f32 %v269, %v1338
        %v1375 = vand.u32 2147483647, %v1374
        %v1377 = vrot.slane %v1241, 1
        %v1378 = vrot.slane %v1242, 1
        %v1379 = vsel %vm355, %v1377, %v1378
        %v1380 = vrot.slane %v1375, 1
        %v1381 = vsel %vm355, %v1378, %v1380
        %1382 = vrot.lane.b32.xlu0 %v1379, 1
        %v1383 = vpop.permute.xlu0 %1382
        %1384 = vrot.lane.b32.xlu0 %v1353, 1
        %v1385 = vpop.permute.xlu0 %1384
        %1386 = vrot.lane.b32.xlu0 %v1381, 1
        %v1387 = vpop.permute.xlu0 %1386
        %1388 = vrot.lane.b32.xlu0 %v1357, 1
        %v1389 = vpop.permute.xlu0 %1388
        %v1390 = vsel %vm456, %v1383, %v1385
        %v1391 = vsel %vm456, %v1387, %v1389
        %v1394 = vmul.f32 %v343, %v1390
        %v1395 = vmul.f32 %v344, %v1391
        %v1396 = vadd.f32 %v1372, %v1394
        %v1397 = vadd.f32 %v1373, %v1395
        %1398 = vrot.lane.b32.xlu0 %v235, 127
        %v1399 = vpop.permute.xlu0 %1398
        %v1400 = vsel %vm378, %v1338, %v1399
        %v1402 = vsub.f32 %v270, %v1400
        %v1403 = vand.u32 2147483647, %v1402
        %v1405 = vrot.slane %v1283, 1
        %v1406 = vrot.slane %v1284, 1
        %v1407 = vsel %vm355, %v1405, %v1406
        %v1408 = vrot.slane %v1403, 1
        %v1409 = vsel %vm355, %v1406, %v1408
        %v1412 = vmul.f32 %v347, %v1407
        %v1413 = vmul.f32 %v348, %v1409
        %v1414 = vadd.f32 %v1396, %v1412
        %v1415 = vadd.f32 %v1397, %v1413
        %s1416 = scalar_lea.vmem [#allocation2], 48
        %1417 = vst [vmem:[%s1416] sm:$0xff] %v1414
        %1418 = vst [vmem:[%s1416 + $0x8] sm:$0xff] %v1415
        %s1419 = scalar_lea.vmem [#allocation3], 48
        %1420 = vst [vmem:[%s1419] sm:$0xff] %v669
        %1421 = vst [vmem:[%s1419 + $0x8] sm:$0xff] %v670
        %v1422 = vsub.f32 %v260, %v224
        %v1423 = vsub.f32 %v261, %v225
        %v1424 = vsub.f32 %v263, %v227
        %v1425 = vsub.f32 %v264, %v228
        %v1426 = vsub.f32 %v266, %v230
        %v1427 = vsub.f32 %v267, %v231
        %v1428 = vand.u32 2147483647, %v1422
        %v1429 = vand.u32 2147483647, %v1423
        %v1430 = vand.u32 2147483647, %v1424
        %v1431 = vand.u32 2147483647, %v1425
        %v1432 = vand.u32 2147483647, %v1426
        %v1433 = vand.u32 2147483647, %v1427
        %v1440 = vrot.slane %v1428, 7
        %v1441 = vrot.slane %v1430, 7
        %v1442 = vsel %vm518, %v1440, %v1441
        %v1443 = vrot.slane %v1429, 7
        %v1444 = vrot.slane %v1431, 7
        %v1445 = vsel %vm518, %v1443, %v1444
        %v1446 = vrot.slane %v1432, 7
        %v1447 = vsel %vm518, %v1441, %v1446
        %v1448 = vrot.slane %v1433, 7
        %v1449 = vsel %vm518, %v1444, %v1448
        %1450 = vrot.lane.b32.xlu0 %v1442, 1
        %v1451 = vpop.permute.xlu0 %1450
        %1452 = vrot.lane.b32.xlu0 %v1445, 1
        %v1453 = vpop.permute.xlu0 %1452
        %1454 = vrot.lane.b32.xlu0 %v1447, 1
        %v1455 = vpop.permute.xlu0 %1454
        %1456 = vrot.lane.b32.xlu0 %v1449, 1
        %v1457 = vpop.permute.xlu0 %1456
        %v1458 = vsel %vm456, %v1451, %v1453
        %v1459 = vsel %vm456, %v1455, %v1457
        %v1462 = vmul.f32 %v315, %v1458
        %v1463 = vmul.f32 %v316, %v1459
        %v1464 = vadd.f32 %v1462, 0.0
        %v1465 = vadd.f32 %v1463, 0.0
        %v1468 = vmul.f32 %v319, %v1445
        %v1469 = vmul.f32 %v320, %v1449
        %v1470 = vadd.f32 %v1464, %v1468
        %v1471 = vadd.f32 %v1465, %v1469
        %v1472 = vsub.f32 %v262, %v226
        %v1473 = vsub.f32 %v265, %v229
        %v1474 = vsub.f32 %v268, %v232
        %v1475 = vand.u32 2147483647, %v1472
        %v1476 = vand.u32 2147483647, %v1473
        %v1477 = vand.u32 2147483647, %v1474
        %v1481 = vrot.slane %v1475, 7
        %v1482 = vrot.slane %v1476, 7
        %v1483 = vsel %vm518, %v1481, %v1482
        %v1484 = vrot.slane %v1477, 7
        %v1485 = vsel %vm518, %v1482, %v1484
        %1486 = vrot.lane.b32.xlu0 %v1445, 127
        %v1487 = vpop.permute.xlu0 %1486
        %1488 = vrot.lane.b32.xlu0 %v1483, 127
        %v1489 = vpop.permute.xlu0 %1488
        %1490 = vrot.lane.b32.xlu0 %v1449, 127
        %v1491 = vpop.permute.xlu0 %1490
        %1492 = vrot.lane.b32.xlu0 %v1485, 127
        %v1493 = vpop.permute.xlu0 %1492
        %v1494 = vsel %vm378, %v1487, %v1489
        %v1495 = vsel %vm378, %v1491, %v1493
        %v1498 = vmul.f32 %v323, %v1494
        %v1499 = vmul.f32 %v324, %v1495
        %v1500 = vadd.f32 %v1470, %v1498
        %v1501 = vadd.f32 %v1471, %v1499
        %1502 = vrot.lane.b32.xlu0 %v1430, 1
        %v1503 = vpop.permute.xlu0 %1502
        %1504 = vrot.lane.b32.xlu0 %v1431, 1
        %v1505 = vpop.permute.xlu0 %1504
        %1506 = vrot.lane.b32.xlu0 %v1432, 1
        %v1507 = vpop.permute.xlu0 %1506
        %1508 = vrot.lane.b32.xlu0 %v1433, 1
        %v1509 = vpop.permute.xlu0 %1508
        %v1510 = vsel %vm456, %v1503, %v1505
        %v1511 = vsel %vm456, %v1507, %v1509
        %v1514 = vmul.f32 %v327, %v1510
        %v1515 = vmul.f32 %v328, %v1511
        %v1516 = vadd.f32 %v1500, %v1514
        %v1517 = vadd.f32 %v1501, %v1515
        %v1518 = vmul.f32 %v331, %v1431
        %v1519 = vmul.f32 %v332, %v1433
        %v1520 = vadd.f32 %v1516, %v1518
        %v1521 = vadd.f32 %v1517, %v1519
        %1522 = vrot.lane.b32.xlu0 %v1431, 127
        %v1523 = vpop.permute.xlu0 %1522
        %1524 = vrot.lane.b32.xlu0 %v1476, 127
        %v1525 = vpop.permute.xlu0 %1524
        %1526 = vrot.lane.b32.xlu0 %v1433, 127
        %v1527 = vpop.permute.xlu0 %1526
        %1528 = vrot.lane.b32.xlu0 %v1477, 127
        %v1529 = vpop.permute.xlu0 %1528
        %v1530 = vsel %vm378, %v1523, %v1525
        %v1531 = vsel %vm378, %v1527, %v1529
        %v1534 = vmul.f32 %v335, %v1530
        %v1535 = vmul.f32 %v336, %v1531
        %v1536 = vadd.f32 %v1520, %v1534
        %v1537 = vadd.f32 %v1521, %v1535
        %v1538 = vsub.f32 %v269, %v233
        %v1539 = vsub.f32 %v270, %v234
        %v1540 = vand.u32 2147483647, %v1538
        %v1541 = vand.u32 2147483647, %v1539
        %v1544 = vrot.slane %v1430, 1
        %v1545 = vrot.slane %v1432, 1
        %v1546 = vsel %vm355, %v1544, %v1545
        %v1547 = vrot.slane %v1431, 1
        %v1548 = vrot.slane %v1433, 1
        %v1549 = vsel %vm355, %v1547, %v1548
        %v1550 = vrot.slane %v1540, 1
        %v1551 = vsel %vm355, %v1545, %v1550
        %v1552 = vrot.slane %v1541, 1
        %v1553 = vsel %vm355, %v1548, %v1552
        %1554 = vrot.lane.b32.xlu0 %v1546, 1
        %v1555 = vpop.permute.xlu0 %1554
        %1556 = vrot.lane.b32.xlu0 %v1549, 1
        %v1557 = vpop.permute.xlu0 %1556
        %1558 = vrot.lane.b32.xlu0 %v1551, 1
        %v1559 = vpop.permute.xlu0 %1558
        %1560 = vrot.lane.b32.xlu0 %v1553, 1
        %v1561 = vpop.permute.xlu0 %1560
        %v1562 = vsel %vm456, %v1555, %v1557
        %v1563 = vsel %vm456, %v1559, %v1561
        %v1566 = vmul.f32 %v339, %v1562
        %v1567 = vmul.f32 %v340, %v1563
        %v1568 = vadd.f32 %v1536, %v1566
        %v1569 = vadd.f32 %v1537, %v1567
        %v1572 = vmul.f32 %v343, %v1549
        %v1573 = vmul.f32 %v344, %v1553
        %v1574 = vadd.f32 %v1568, %v1572
        %v1575 = vadd.f32 %v1569, %v1573
        %v1576 = vsub.f32 %v271, %v235
        %v1577 = vand.u32 2147483647, %v1576
        %v1579 = vrot.slane %v1476, 1
        %v1580 = vrot.slane %v1477, 1
        %v1581 = vsel %vm355, %v1579, %v1580
        %v1582 = vrot.slane %v1577, 1
        %v1583 = vsel %vm355, %v1580, %v1582
        %1584 = vrot.lane.b32.xlu0 %v1549, 127
        %v1585 = vpop.permute.xlu0 %1584
        %1586 = vrot.lane.b32.xlu0 %v1581, 127
        %v1587 = vpop.permute.xlu0 %1586
        %1588 = vrot.lane.b32.xlu0 %v1553, 127
        %v1589 = vpop.permute.xlu0 %1588
        %1590 = vrot.lane.b32.xlu0 %v1583, 127
        %v1591 = vpop.permute.xlu0 %1590
        %v1592 = vsel %vm378, %v1585, %v1587
        %v1593 = vsel %vm378, %v1589, %v1591
        %v1596 = vmul.f32 %v347, %v1592
        %v1597 = vmul.f32 %v348, %v1593
        %v1598 = vadd.f32 %v1574, %v1596
        %v1599 = vadd.f32 %v1575, %v1597
        %s1600 = scalar_lea.vmem [#allocation2], 64
        %1601 = vst [vmem:[%s1600] sm:$0xff] %v1598
        %1602 = vst [vmem:[%s1600 + $0x8] sm:$0xff] %v1599
        %s1603 = scalar_lea.vmem [#allocation3], 64
        %1604 = vst [vmem:[%s1603] sm:$0xff] %v240
        %1605 = vst [vmem:[%s1603 + $0x8] sm:$0xff] %v243
        %1606 = vrot.lane.b32.xlu0 %v224, 1
        %v1607 = vpop.permute.xlu0 %1606
        %1608 = vrot.lane.b32.xlu0 %v225, 1
        %v1609 = vpop.permute.xlu0 %1608
        %1610 = vrot.lane.b32.xlu0 %v227, 1
        %v1611 = vpop.permute.xlu0 %1610
        %1612 = vrot.lane.b32.xlu0 %v228, 1
        %v1613 = vpop.permute.xlu0 %1612
        %1614 = vrot.lane.b32.xlu0 %v230, 1
        %v1615 = vpop.permute.xlu0 %1614
        %1616 = vrot.lane.b32.xlu0 %v231, 1
        %v1617 = vpop.permute.xlu0 %1616
        %v1618 = vsel %vm456, %v1607, %v1609
        %v1619 = vsel %vm456, %v1611, %v1613
        %v1620 = vsel %vm456, %v1615, %v1617
        %v1624 = vsub.f32 %v261, %v1618
        %v1625 = vsub.f32 %v264, %v1619
        %v1626 = vsub.f32 %v267, %v1620
        %v1627 = vand.u32 2147483647, %v1624
        %v1628 = vand.u32 2147483647, %v1625
        %v1629 = vand.u32 2147483647, %v1626
        %v1633 = vrot.slane %v1627, 7
        %v1634 = vrot.slane %v1628, 7
        %v1635 = vsel %vm518, %v1633, %v1634
        %v1636 = vrot.slane %v1629, 7
        %v1637 = vsel %vm518, %v1634, %v1636
        %v1640 = vmul.f32 %v315, %v1635
        %v1641 = vmul.f32 %v316, %v1637
        %v1642 = vadd.f32 %v1640, 0.0
        %v1643 = vadd.f32 %v1641, 0.0
        %v1647 = vsub.f32 %v261, %v1609
        %v1648 = vsub.f32 %v262, %v1609
        %v1649 = vsub.f32 %v264, %v1613
        %v1650 = vsub.f32 %v265, %v1613
        %v1651 = vsub.f32 %v267, %v1617
        %v1652 = vsub.f32 %v268, %v1617
        %v1653 = vand.u32 2147483647, %v1647
        %v1654 = vand.u32 2147483647, %v1648
        %v1655 = vand.u32 2147483647, %v1649
        %v1656 = vand.u32 2147483647, %v1650
        %v1657 = vand.u32 2147483647, %v1651
        %v1658 = vand.u32 2147483647, %v1652
        %v1665 = vrot.slane %v1653, 7
        %v1666 = vrot.slane %v1655, 7
        %v1667 = vsel %vm518, %v1665, %v1666
        %v1668 = vrot.slane %v1654, 7
        %v1669 = vrot.slane %v1656, 7
        %v1670 = vsel %vm518, %v1668, %v1669
        %v1671 = vrot.slane %v1657, 7
        %v1672 = vsel %vm518, %v1666, %v1671
        %v1673 = vrot.slane %v1658, 7
        %v1674 = vsel %vm518, %v1669, %v1673
        %1675 = vrot.lane.b32.xlu0 %v1667, 127
        %v1676 = vpop.permute.xlu0 %1675
        %1677 = vrot.lane.b32.xlu0 %v1670, 127
        %v1678 = vpop.permute.xlu0 %1677
        %1679 = vrot.lane.b32.xlu0 %v1672, 127
        %v1680 = vpop.permute.xlu0 %1679
        %1681 = vrot.lane.b32.xlu0 %v1674, 127
        %v1682 = vpop.permute.xlu0 %1681
        %v1683 = vsel %vm378, %v1676, %v1678
        %v1684 = vsel %vm378, %v1680, %v1682
        %v1687 = vmul.f32 %v319, %v1683
        %v1688 = vmul.f32 %v320, %v1684
        %v1689 = vadd.f32 %v1642, %v1687
        %v1690 = vadd.f32 %v1643, %v1688
        %1691 = vrot.lane.b32.xlu0 %v226, 1
        %v1692 = vpop.permute.xlu0 %1691
        %1693 = vrot.lane.b32.xlu0 %v229, 1
        %v1694 = vpop.permute.xlu0 %1693
        %1695 = vrot.lane.b32.xlu0 %v232, 1
        %v1696 = vpop.permute.xlu0 %1695
        %v1697 = vsel %vm456, %v1609, %v1692
        %v1698 = vsel %vm456, %v1613, %v1694
        %v1699 = vsel %vm456, %v1617, %v1696
        %v1703 = vsub.f32 %v262, %v1697
        %v1704 = vsub.f32 %v265, %v1698
        %v1705 = vsub.f32 %v268, %v1699
        %v1706 = vand.u32 2147483647, %v1703
        %v1707 = vand.u32 2147483647, %v1704
        %v1708 = vand.u32 2147483647, %v1705
        %v1712 = vrot.slane %v1706, 7
        %v1713 = vrot.slane %v1707, 7
        %v1714 = vsel %vm518, %v1712, %v1713
        %v1715 = vrot.slane %v1708, 7
        %v1716 = vsel %vm518, %v1713, %v1715
        %1717 = vrot.lane.b32.xlu0 %v1667, 126
        %v1718 = vpop.permute.xlu0 %1717
        %1719 = vrot.lane.b32.xlu0 %v1714, 126
        %v1720 = vpop.permute.xlu0 %1719
        %1721 = vrot.lane.b32.xlu0 %v1672, 126
        %v1722 = vpop.permute.xlu0 %1721
        %1723 = vrot.lane.b32.xlu0 %v1716, 126
        %v1724 = vpop.permute.xlu0 %1723
        %v1725 = vsel %vm1002, %v1718, %v1720
        %v1726 = vsel %vm1002, %v1722, %v1724
        %v1729 = vmul.f32 %v323, %v1725
        %v1730 = vmul.f32 %v324, %v1726
        %v1731 = vadd.f32 %v1689, %v1729
        %v1732 = vadd.f32 %v1690, %v1730
        %v1733 = vmul.f32 %v327, %v1628
        %v1734 = vmul.f32 %v328, %v1629
        %v1735 = vadd.f32 %v1731, %v1733
        %v1736 = vadd.f32 %v1732, %v1734
        %1737 = vrot.lane.b32.xlu0 %v1655, 127
        %v1738 = vpop.permute.xlu0 %1737
        %1739 = vrot.lane.b32.xlu0 %v1656, 127
        %v1740 = vpop.permute.xlu0 %1739
        %1741 = vrot.lane.b32.xlu0 %v1657, 127
        %v1742 = vpop.permute.xlu0 %1741
        %1743 = vrot.lane.b32.xlu0 %v1658, 127
        %v1744 = vpop.permute.xlu0 %1743
        %v1745 = vsel %vm378, %v1738, %v1740
        %v1746 = vsel %vm378, %v1742, %v1744
        %v1749 = vmul.f32 %v331, %v1745
        %v1750 = vmul.f32 %v332, %v1746
        %v1751 = vadd.f32 %v1735, %v1749
        %v1752 = vadd.f32 %v1736, %v1750
        %1753 = vrot.lane.b32.xlu0 %v1655, 126
        %v1754 = vpop.permute.xlu0 %1753
        %1755 = vrot.lane.b32.xlu0 %v1707, 126
        %v1756 = vpop.permute.xlu0 %1755
        %1757 = vrot.lane.b32.xlu0 %v1657, 126
        %v1758 = vpop.permute.xlu0 %1757
        %1759 = vrot.lane.b32.xlu0 %v1708, 126
        %v1760 = vpop.permute.xlu0 %1759
        %v1761 = vsel %vm1002, %v1754, %v1756
        %v1762 = vsel %vm1002, %v1758, %v1760
        %v1765 = vmul.f32 %v335, %v1761
        %v1766 = vmul.f32 %v336, %v1762
        %v1767 = vadd.f32 %v1751, %v1765
        %v1768 = vadd.f32 %v1752, %v1766
        %1769 = vrot.lane.b32.xlu0 %v233, 1
        %v1770 = vpop.permute.xlu0 %1769
        %1771 = vrot.lane.b32.xlu0 %v234, 1
        %v1772 = vpop.permute.xlu0 %1771
        %v1773 = vsel %vm456, %v1770, %v1772
        %v1775 = vsub.f32 %v270, %v1773
        %v1776 = vand.u32 2147483647, %v1775
        %v1778 = vrot.slane %v1628, 1
        %v1779 = vrot.slane %v1629, 1
        %v1780 = vsel %vm355, %v1778, %v1779
        %v1781 = vrot.slane %v1776, 1
        %v1782 = vsel %vm355, %v1779, %v1781
        %v1785 = vmul.f32 %v339, %v1780
        %v1786 = vmul.f32 %v340, %v1782
        %v1787 = vadd.f32 %v1767, %v1785
        %v1788 = vadd.f32 %v1768, %v1786
        %v1790 = vsub.f32 %v270, %v1772
        %v1791 = vsub.f32 %v271, %v1772
        %v1792 = vand.u32 2147483647, %v1790
        %v1793 = vand.u32 2147483647, %v1791
        %v1796 = vrot.slane %v1655, 1
        %v1797 = vrot.slane %v1657, 1
        %v1798 = vsel %vm355, %v1796, %v1797
        %v1799 = vrot.slane %v1656, 1
        %v1800 = vrot.slane %v1658, 1
        %v1801 = vsel %vm355, %v1799, %v1800
        %v1802 = vrot.slane %v1792, 1
        %v1803 = vsel %vm355, %v1797, %v1802
        %v1804 = vrot.slane %v1793, 1
        %v1805 = vsel %vm355, %v1800, %v1804
        %1806 = vrot.lane.b32.xlu0 %v1798, 127
        %v1807 = vpop.permute.xlu0 %1806
        %1808 = vrot.lane.b32.xlu0 %v1801, 127
        %v1809 = vpop.permute.xlu0 %1808
        %1810 = vrot.lane.b32.xlu0 %v1803, 127
        %v1811 = vpop.permute.xlu0 %1810
        %1812 = vrot.lane.b32.xlu0 %v1805, 127
        %v1813 = vpop.permute.xlu0 %1812
        %v1814 = vsel %vm378, %v1807, %v1809
        %v1815 = vsel %vm378, %v1811, %v1813
        %v1818 = vmul.f32 %v343, %v1814
        %v1819 = vmul.f32 %v344, %v1815
        %v1820 = vadd.f32 %v1787, %v1818
        %v1821 = vadd.f32 %v1788, %v1819
        %1822 = vrot.lane.b32.xlu0 %v235, 1
        %v1823 = vpop.permute.xlu0 %1822
        %v1824 = vsel %vm456, %v1772, %v1823
        %v1826 = vsub.f32 %v271, %v1824
        %v1827 = vand.u32 2147483647, %v1826
        %v1829 = vrot.slane %v1707, 1
        %v1830 = vrot.slane %v1708, 1
        %v1831 = vsel %vm355, %v1829, %v1830
        %v1832 = vrot.slane %v1827, 1
        %v1833 = vsel %vm355, %v1830, %v1832
        %1834 = vrot.lane.b32.xlu0 %v1798, 126
        %v1835 = vpop.permute.xlu0 %1834
        %1836 = vrot.lane.b32.xlu0 %v1831, 126
        %v1837 = vpop.permute.xlu0 %1836
        %1838 = vrot.lane.b32.xlu0 %v1803, 126
        %v1839 = vpop.permute.xlu0 %1838
        %1840 = vrot.lane.b32.xlu0 %v1833, 126
        %v1841 = vpop.permute.xlu0 %1840
        %v1842 = vsel %vm1002, %v1835, %v1837
        %v1843 = vsel %vm1002, %v1839, %v1841
        %v1846 = vmul.f32 %v347, %v1842
        %v1847 = vmul.f32 %v348, %v1843
        %v1848 = vadd.f32 %v1820, %v1846
        %v1849 = vadd.f32 %v1821, %v1847
        %s1850 = scalar_lea.vmem [#allocation2], 80
        %1851 = vst [vmem:[%s1850] sm:$0xff] %v1848
        %1852 = vst [vmem:[%s1850 + $0x8] sm:$0xff] %v1849
        %s1853 = scalar_lea.vmem [#allocation3], 80
        %1854 = vst [vmem:[%s1853] sm:$0xff] %v1166
        %1855 = vst [vmem:[%s1853 + $0x8] sm:$0xff] %v1167
        %v1856 = vrot.slane %v224, 7
        %v1857 = vrot.slane %v227, 7
        %v1858 = vsel %vm518, %v1856, %v1857
        %v1859 = vrot.slane %v225, 7
        %v1860 = vrot.slane %v228, 7
        %v1861 = vsel %vm518, %v1859, %v1860
        %v1862 = vrot.slane %v230, 7
        %v1863 = vsel %vm518, %v1857, %v1862
        %v1864 = vrot.slane %v231, 7
        %v1865 = vsel %vm518, %v1860, %v1864
        %1866 = vrot.lane.b32.xlu0 %v1858, 127
        %v1867 = vpop.permute.xlu0 %1866
        %1868 = vrot.lane.b32.xlu0 %v1861, 127
        %v1869 = vpop.permute.xlu0 %1868
        %1870 = vrot.lane.b32.xlu0 %v1863, 127
        %v1871 = vpop.permute.xlu0 %1870
        %1872 = vrot.lane.b32.xlu0 %v1865, 127
        %v1873 = vpop.permute.xlu0 %1872
        %v1874 = vsel %vm378, %v1867, %v1869
        %v1875 = vsel %vm378, %v1871, %v1873
        %v1880 = vsub.f32 %v263, %v1874
        %v1881 = vsub.f32 %v264, %v1869
        %v1882 = vsub.f32 %v266, %v1875
        %v1883 = vsub.f32 %v267, %v1873
        %v1884 = vand.u32 2147483647, %v1880
        %v1885 = vand.u32 2147483647, %v1881
        %v1886 = vand.u32 2147483647, %v1882
        %v1887 = vand.u32 2147483647, %v1883
        %1892 = vrot.lane.b32.xlu0 %v1884, 2
        %v1893 = vpop.permute.xlu0 %1892
        %1894 = vrot.lane.b32.xlu0 %v1885, 2
        %v1895 = vpop.permute.xlu0 %1894
        %1896 = vrot.lane.b32.xlu0 %v1886, 2
        %v1897 = vpop.permute.xlu0 %1896
        %1898 = vrot.lane.b32.xlu0 %v1887, 2
        %v1899 = vpop.permute.xlu0 %1898
        %v1900 = vsel %vm425, %v1893, %v1895
        %v1901 = vsel %vm425, %v1897, %v1899
        %v1904 = vmul.f32 %v315, %v1900
        %v1905 = vmul.f32 %v316, %v1901
        %v1906 = vadd.f32 %v1904, 0.0
        %v1907 = vadd.f32 %v1905, 0.0
        %v1908 = vsub.f32 %v263, %v1869
        %v1909 = vsub.f32 %v266, %v1873
        %v1910 = vand.u32 2147483647, %v1908
        %v1911 = vand.u32 2147483647, %v1909
        %1914 = vrot.lane.b32.xlu0 %v1910, 1
        %v1915 = vpop.permute.xlu0 %1914
        %1916 = vrot.lane.b32.xlu0 %v1885, 1
        %v1917 = vpop.permute.xlu0 %1916
        %1918 = vrot.lane.b32.xlu0 %v1911, 1
        %v1919 = vpop.permute.xlu0 %1918
        %1920 = vrot.lane.b32.xlu0 %v1887, 1
        %v1921 = vpop.permute.xlu0 %1920
        %v1922 = vsel %vm456, %v1915, %v1917
        %v1923 = vsel %vm456, %v1919, %v1921
        %v1926 = vmul.f32 %v319, %v1922
        %v1927 = vmul.f32 %v320, %v1923
        %v1928 = vadd.f32 %v1906, %v1926
        %v1929 = vadd.f32 %v1907, %v1927
        %v1930 = vrot.slane %v226, 7
        %v1931 = vrot.slane %v229, 7
        %v1932 = vsel %vm518, %v1930, %v1931
        %v1933 = vrot.slane %v232, 7
        %v1934 = vsel %vm518, %v1931, %v1933
        %1935 = vrot.lane.b32.xlu0 %v1932, 127
        %v1936 = vpop.permute.xlu0 %1935
        %1937 = vrot.lane.b32.xlu0 %v1934, 127
        %v1938 = vpop.permute.xlu0 %1937
        %v1939 = vsel %vm378, %v1869, %v1936
        %v1940 = vsel %vm378, %v1873, %v1938
        %v1943 = vsub.f32 %v264, %v1939
        %v1944 = vsub.f32 %v267, %v1940
        %v1945 = vand.u32 2147483647, %v1943
        %v1946 = vand.u32 2147483647, %v1944
        %v1947 = vmul.f32 %v323, %v1945
        %v1948 = vmul.f32 %v324, %v1946
        %v1949 = vadd.f32 %v1928, %v1947
        %v1950 = vadd.f32 %v1929, %v1948
        %1951 = vrot.lane.b32.xlu0 %v1857, 127
        %v1952 = vpop.permute.xlu0 %1951
        %1953 = vrot.lane.b32.xlu0 %v1860, 127
        %v1954 = vpop.permute.xlu0 %1953
        %1955 = vrot.lane.b32.xlu0 %v1862, 127
        %v1956 = vpop.permute.xlu0 %1955
        %1957 = vrot.lane.b32.xlu0 %v1864, 127
        %v1958 = vpop.permute.xlu0 %1957
        %v1959 = vsel %vm378, %v1952, %v1954
        %v1960 = vsel %vm378, %v1956, %v1958
        %v1965 = vsub.f32 %v263, %v1959
        %v1966 = vsub.f32 %v264, %v1954
        %v1967 = vsub.f32 %v269, %v1960
        %v1968 = vsub.f32 %v270, %v1958
        %v1969 = vand.u32 2147483647, %v1965
        %v1970 = vand.u32 2147483647, %v1966
        %v1971 = vand.u32 2147483647, %v1967
        %v1972 = vand.u32 2147483647, %v1968
        %v1977 = vrot.slane %v1969, 1
        %v1978 = vrot.slane %v1886, 1
        %v1979 = vsel %vm355, %v1977, %v1978
        %v1980 = vrot.slane %v1970, 1
        %v1981 = vrot.slane %v1887, 1
        %v1982 = vsel %vm355, %v1980, %v1981
        %v1983 = vrot.slane %v1971, 1
        %v1984 = vsel %vm355, %v1978, %v1983
        %v1985 = vrot.slane %v1972, 1
        %v1986 = vsel %vm355, %v1981, %v1985
        %1987 = vrot.lane.b32.xlu0 %v1979, 2
        %v1988 = vpop.permute.xlu0 %1987
        %1989 = vrot.lane.b32.xlu0 %v1982, 2
        %v1990 = vpop.permute.xlu0 %1989
        %1991 = vrot.lane.b32.xlu0 %v1984, 2
        %v1992 = vpop.permute.xlu0 %1991
        %1993 = vrot.lane.b32.xlu0 %v1986, 2
        %v1994 = vpop.permute.xlu0 %1993
        %v1995 = vsel %vm425, %v1988, %v1990
        %v1996 = vsel %vm425, %v1992, %v1994
        %v1999 = vmul.f32 %v327, %v1995
        %v2000 = vmul.f32 %v328, %v1996
        %v2001 = vadd.f32 %v1949, %v1999
        %v2002 = vadd.f32 %v1950, %v2000
        %v2003 = vsub.f32 %v263, %v1954
        %v2004 = vsub.f32 %v269, %v1958
        %v2005 = vand.u32 2147483647, %v2003
        %v2006 = vand.u32 2147483647, %v2004
        %v2009 = vrot.slane %v2005, 1
        %v2010 = vrot.slane %v1911, 1
        %v2011 = vsel %vm355, %v2009, %v2010
        %v2012 = vrot.slane %v2006, 1
        %v2013 = vsel %vm355, %v2010, %v2012
        %2014 = vrot.lane.b32.xlu0 %v2011, 1
        %v2015 = vpop.permute.xlu0 %2014
        %2016 = vrot.lane.b32.xlu0 %v1982, 1
        %v2017 = vpop.permute.xlu0 %2016
        %2018 = vrot.lane.b32.xlu0 %v2013, 1
        %v2019 = vpop.permute.xlu0 %2018
        %2020 = vrot.lane.b32.xlu0 %v1986, 1
        %v2021 = vpop.permute.xlu0 %2020
        %v2022 = vsel %vm456, %v2015, %v2017
        %v2023 = vsel %vm456, %v2019, %v2021
        %v2026 = vmul.f32 %v331, %v2022
        %v2027 = vmul.f32 %v332, %v2023
        %v2028 = vadd.f32 %v2001, %v2026
        %v2029 = vadd.f32 %v2002, %v2027
        %2030 = vrot.lane.b32.xlu0 %v1931, 127
        %v2031 = vpop.permute.xlu0 %2030
        %2032 = vrot.lane.b32.xlu0 %v1933, 127
        %v2033 = vpop.permute.xlu0 %2032
        %v2034 = vsel %vm378, %v1954, %v2031
        %v2035 = vsel %vm378, %v1958, %v2033
        %v2038 = vsub.f32 %v264, %v2034
        %v2039 = vsub.f32 %v270, %v2035
        %v2040 = vand.u32 2147483647, %v2038
        %v2041 = vand.u32 2147483647, %v2039
        %v2045 = vrot.slane %v2040, 1
        %v2046 = vrot.slane %v1946, 1
        %v2047 = vsel %vm355, %v2045, %v2046
        %v2048 = vrot.slane %v2041, 1
        %v2049 = vsel %vm355, %v2046, %v2048
        %v2052 = vmul.f32 %v335, %v2047
        %v2053 = vmul.f32 %v336, %v2049
        %v2054 = vadd.f32 %v2028, %v2052
        %v2055 = vadd.f32 %v2029, %v2053
        %v2056 = vrot.slane %v233, 7
        %v2057 = vsel %vm518, %v1862, %v2056
        %v2058 = vrot.slane %v234, 7
        %v2059 = vsel %vm518, %v1864, %v2058
        %2060 = vrot.lane.b32.xlu0 %v2057, 127
        %v2061 = vpop.permute.xlu0 %2060
        %2062 = vrot.lane.b32.xlu0 %v2059, 127
        %v2063 = vpop.permute.xlu0 %2062
        %v2064 = vsel %vm378, %v2061, %v2063
        %v2067 = vsub.f32 %v269, %v2064
        %v2068 = vsub.f32 %v270, %v2063
        %v2069 = vand.u32 2147483647, %v2067
        %v2070 = vand.u32 2147483647, %v2068
        %vm2073 = vcmask 1045504
        %v2074 = vrot.slane %v1969, 2
        %v2075 = vrot.slane %v1886, 2
        %v2076 = vsel %vm2073, %v2074, %v2075
        %v2077 = vrot.slane %v1970, 2
        %v2078 = vrot.slane %v1887, 2
        %v2079 = vsel %vm2073, %v2077, %v2078
        %v2080 = vrot.slane %v2069, 2
        %v2081 = vsel %vm2073, %v2075, %v2080
        %v2082 = vrot.slane %v2070, 2
        %v2083 = vsel %vm2073, %v2078, %v2082
        %2084 = vrot.lane.b32.xlu0 %v2076, 2
        %v2085 = vpop.permute.xlu0 %2084
        %2086 = vrot.lane.b32.xlu0 %v2079, 2
        %v2087 = vpop.permute.xlu0 %2086
        %2088 = vrot.lane.b32.xlu0 %v2081, 2
        %v2089 = vpop.permute.xlu0 %2088
        %2090 = vrot.lane.b32.xlu0 %v2083, 2
        %v2091 = vpop.permute.xlu0 %2090
        %v2092 = vsel %vm425, %v2085, %v2087
        %v2093 = vsel %vm425, %v2089, %v2091
        %v2096 = vmul.f32 %v339, %v2092
        %v2097 = vmul.f32 %v340, %v2093
        %v2098 = vadd.f32 %v2054, %v2096
        %v2099 = vadd.f32 %v2055, %v2097
        %v2100 = vsub.f32 %v269, %v2063
        %v2101 = vand.u32 2147483647, %v2100
        %v2103 = vrot.slane %v2005, 2
        %v2104 = vrot.slane %v1911, 2
        %v2105 = vsel %vm2073, %v2103, %v2104
        %v2106 = vrot.slane %v2101, 2
        %v2107 = vsel %vm2073, %v2104, %v2106
        %2108 = vrot.lane.b32.xlu0 %v2105, 1
        %v2109 = vpop.permute.xlu0 %2108
        %2110 = vrot.lane.b32.xlu0 %v2079, 1
        %v2111 = vpop.permute.xlu0 %2110
        %2112 = vrot.lane.b32.xlu0 %v2107, 1
        %v2113 = vpop.permute.xlu0 %2112
        %2114 = vrot.lane.b32.xlu0 %v2083, 1
        %v2115 = vpop.permute.xlu0 %2114
        %v2116 = vsel %vm456, %v2109, %v2111
        %v2117 = vsel %vm456, %v2113, %v2115
        %v2120 = vmul.f32 %v343, %v2116
        %v2121 = vmul.f32 %v344, %v2117
        %v2122 = vadd.f32 %v2098, %v2120
        %v2123 = vadd.f32 %v2099, %v2121
        %v2124 = vrot.slane %v235, 7
        %v2125 = vsel %vm518, %v1933, %v2124
        %2126 = vrot.lane.b32.xlu0 %v2125, 127
        %v2127 = vpop.permute.xlu0 %2126
        %v2128 = vsel %vm378, %v2063, %v2127
        %v2130 = vsub.f32 %v270, %v2128
        %v2131 = vand.u32 2147483647, %v2130
        %v2133 = vrot.slane %v2040, 2
        %v2134 = vrot.slane %v1946, 2
        %v2135 = vsel %vm2073, %v2133, %v2134
        %v2136 = vrot.slane %v2131, 2
        %v2137 = vsel %vm2073, %v2134, %v2136
        %v2140 = vmul.f32 %v347, %v2135
        %v2141 = vmul.f32 %v348, %v2137
        %v2142 = vadd.f32 %v2122, %v2140
        %v2143 = vadd.f32 %v2123, %v2141
        %s2144 = scalar_lea.vmem [#allocation2], 96
        %2145 = vst [vmem:[%s2144] sm:$0xff] %v2142
        %2146 = vst [vmem:[%s2144 + $0x8] sm:$0xff] %v2143
        %2147 = vrot.lane.b32.xlu0 %v245, 1
        %v2148 = vpop.permute.xlu0 %2147
        %2149 = vrot.lane.b32.xlu0 %v246, 1
        %v2150 = vpop.permute.xlu0 %2149
        %v2151 = vsel %vm456, %v2148, %v2150
        %s2152 = scalar_lea.vmem [#allocation3], 96
        %2153 = vst [vmem:[%s2152 - $0x1] sm:$0xfe] %v669
        %2154 = vst [vmem:[%s2152 + $0x7] sm:$0xff] %v670
        %2155 = vst [vmem:[%s2152 + $0xf] sm:$0x1] %v2151
        %v2160 = vsub.f32 %v263, %v1858
        %v2161 = vsub.f32 %v264, %v1861
        %v2162 = vsub.f32 %v266, %v1863
        %v2163 = vsub.f32 %v267, %v1865
        %v2164 = vand.u32 2147483647, %v2160
        %v2165 = vand.u32 2147483647, %v2161
        %v2166 = vand.u32 2147483647, %v2162
        %v2167 = vand.u32 2147483647, %v2163
        %2172 = vrot.lane.b32.xlu0 %v2164, 1
        %v2173 = vpop.permute.xlu0 %2172
        %2174 = vrot.lane.b32.xlu0 %v2165, 1
        %v2175 = vpop.permute.xlu0 %2174
        %2176 = vrot.lane.b32.xlu0 %v2166, 1
        %v2177 = vpop.permute.xlu0 %2176
        %2178 = vrot.lane.b32.xlu0 %v2167, 1
        %v2179 = vpop.permute.xlu0 %2178
        %v2180 = vsel %vm456, %v2173, %v2175
        %v2181 = vsel %vm456, %v2177, %v2179
        %v2184 = vmul.f32 %v315, %v2180
        %v2185 = vmul.f32 %v316, %v2181
        %v2186 = vadd.f32 %v2184, 0.0
        %v2187 = vadd.f32 %v2185, 0.0
        %v2188 = vmul.f32 %v319, %v2165
        %v2189 = vmul.f32 %v320, %v2167
        %v2190 = vadd.f32 %v2186, %v2188
        %v2191 = vadd.f32 %v2187, %v2189
        %v2194 = vsub.f32 %v265, %v1932
        %v2195 = vsub.f32 %v268, %v1934
        %v2196 = vand.u32 2147483647, %v2194
        %v2197 = vand.u32 2147483647, %v2195
        %2200 = vrot.lane.b32.xlu0 %v2165, 127
        %v2201 = vpop.permute.xlu0 %2200
        %2202 = vrot.lane.b32.xlu0 %v2196, 127
        %v2203 = vpop.permute.xlu0 %2202
        %2204 = vrot.lane.b32.xlu0 %v2167, 127
        %v2205 = vpop.permute.xlu0 %2204
        %2206 = vrot.lane.b32.xlu0 %v2197, 127
        %v2207 = vpop.permute.xlu0 %2206
        %v2208 = vsel %vm378, %v2201, %v2203
        %v2209 = vsel %vm378, %v2205, %v2207
        %v2212 = vmul.f32 %v323, %v2208
        %v2213 = vmul.f32 %v324, %v2209
        %v2214 = vadd.f32 %v2190, %v2212
        %v2215 = vadd.f32 %v2191, %v2213
        %v2220 = vsub.f32 %v263, %v1857
        %v2221 = vsub.f32 %v264, %v1860
        %v2222 = vsub.f32 %v269, %v1862
        %v2223 = vsub.f32 %v270, %v1864
        %v2224 = vand.u32 2147483647, %v2220
        %v2225 = vand.u32 2147483647, %v2221
        %v2226 = vand.u32 2147483647, %v2222
        %v2227 = vand.u32 2147483647, %v2223
        %v2232 = vrot.slane %v2224, 1
        %v2233 = vrot.slane %v2166, 1
        %v2234 = vsel %vm355, %v2232, %v2233
        %v2235 = vrot.slane %v2225, 1
        %v2236 = vrot.slane %v2167, 1
        %v2237 = vsel %vm355, %v2235, %v2236
        %v2238 = vrot.slane %v2226, 1
        %v2239 = vsel %vm355, %v2233, %v2238
        %v2240 = vrot.slane %v2227, 1
        %v2241 = vsel %vm355, %v2236, %v2240
        %2242 = vrot.lane.b32.xlu0 %v2234, 1
        %v2243 = vpop.permute.xlu0 %2242
        %2244 = vrot.lane.b32.xlu0 %v2237, 1
        %v2245 = vpop.permute.xlu0 %2244
        %2246 = vrot.lane.b32.xlu0 %v2239, 1
        %v2247 = vpop.permute.xlu0 %2246
        %2248 = vrot.lane.b32.xlu0 %v2241, 1
        %v2249 = vpop.permute.xlu0 %2248
        %v2250 = vsel %vm456, %v2243, %v2245
        %v2251 = vsel %vm456, %v2247, %v2249
        %v2254 = vmul.f32 %v327, %v2250
        %v2255 = vmul.f32 %v328, %v2251
        %v2256 = vadd.f32 %v2214, %v2254
        %v2257 = vadd.f32 %v2215, %v2255
        %v2260 = vmul.f32 %v331, %v2237
        %v2261 = vmul.f32 %v332, %v2241
        %v2262 = vadd.f32 %v2256, %v2260
        %v2263 = vadd.f32 %v2257, %v2261
        %v2266 = vsub.f32 %v265, %v1931
        %v2267 = vsub.f32 %v271, %v1933
        %v2268 = vand.u32 2147483647, %v2266
        %v2269 = vand.u32 2147483647, %v2267
        %v2272 = vrot.slane %v2268, 1
        %v2273 = vrot.slane %v2197, 1
        %v2274 = vsel %vm355, %v2272, %v2273
        %v2275 = vrot.slane %v2269, 1
        %v2276 = vsel %vm355, %v2273, %v2275
        %2277 = vrot.lane.b32.xlu0 %v2237, 127
        %v2278 = vpop.permute.xlu0 %2277
        %2279 = vrot.lane.b32.xlu0 %v2274, 127
        %v2280 = vpop.permute.xlu0 %2279
        %2281 = vrot.lane.b32.xlu0 %v2241, 127
        %v2282 = vpop.permute.xlu0 %2281
        %2283 = vrot.lane.b32.xlu0 %v2276, 127
        %v2284 = vpop.permute.xlu0 %2283
        %v2285 = vsel %vm378, %v2278, %v2280
        %v2286 = vsel %vm378, %v2282, %v2284
        %v2289 = vmul.f32 %v335, %v2285
        %v2290 = vmul.f32 %v336, %v2286
        %v2291 = vadd.f32 %v2262, %v2289
        %v2292 = vadd.f32 %v2263, %v2290
        %v2295 = vsub.f32 %v269, %v2057
        %v2296 = vsub.f32 %v270, %v2059
        %v2297 = vand.u32 2147483647, %v2295
        %v2298 = vand.u32 2147483647, %v2296
        %v2301 = vrot.slane %v2224, 2
        %v2302 = vrot.slane %v2166, 2
        %v2303 = vsel %vm2073, %v2301, %v2302
        %v2304 = vrot.slane %v2225, 2
        %v2305 = vrot.slane %v2167, 2
        %v2306 = vsel %vm2073, %v2304, %v2305
        %v2307 = vrot.slane %v2297, 2
        %v2308 = vsel %vm2073, %v2302, %v2307
        %v2309 = vrot.slane %v2298, 2
        %v2310 = vsel %vm2073, %v2305, %v2309
        %2311 = vrot.lane.b32.xlu0 %v2303, 1
        %v2312 = vpop.permute.xlu0 %2311
        %2313 = vrot.lane.b32.xlu0 %v2306, 1
        %v2314 = vpop.permute.xlu0 %2313
        %2315 = vrot.lane.b32.xlu0 %v2308, 1
        %v2316 = vpop.permute.xlu0 %2315
        %2317 = vrot.lane.b32.xlu0 %v2310, 1
        %v2318 = vpop.permute.xlu0 %2317
        %v2319 = vsel %vm456, %v2312, %v2314
        %v2320 = vsel %vm456, %v2316, %v2318
        %v2323 = vmul.f32 %v339, %v2319
        %v2324 = vmul.f32 %v340, %v2320
        %v2325 = vadd.f32 %v2291, %v2323
        %v2326 = vadd.f32 %v2292, %v2324
        %v2329 = vmul.f32 %v343, %v2306
        %v2330 = vmul.f32 %v344, %v2310
        %v2331 = vadd.f32 %v2325, %v2329
        %v2332 = vadd.f32 %v2326, %v2330
        %v2334 = vsub.f32 %v271, %v2125
        %v2335 = vand.u32 2147483647, %v2334
        %v2337 = vrot.slane %v2268, 2
        %v2338 = vrot.slane %v2197, 2
        %v2339 = vsel %vm2073, %v2337, %v2338
        %v2340 = vrot.slane %v2335, 2
        %v2341 = vsel %vm2073, %v2338, %v2340
        %2342 = vrot.lane.b32.xlu0 %v2306, 127
        %v2343 = vpop.permute.xlu0 %2342
        %2344 = vrot.lane.b32.xlu0 %v2339, 127
        %v2345 = vpop.permute.xlu0 %2344
        %2346 = vrot.lane.b32.xlu0 %v2310, 127
        %v2347 = vpop.permute.xlu0 %2346
        %2348 = vrot.lane.b32.xlu0 %v2341, 127
        %v2349 = vpop.permute.xlu0 %2348
        %v2350 = vsel %vm378, %v2343, %v2345
        %v2351 = vsel %vm378, %v2347, %v2349
        %v2354 = vmul.f32 %v347, %v2350
        %v2355 = vmul.f32 %v348, %v2351
        %v2356 = vadd.f32 %v2331, %v2354
        %v2357 = vadd.f32 %v2332, %v2355
        %s2358 = scalar_lea.vmem [#allocation2], 112
        %2359 = vst [vmem:[%s2358] sm:$0xff] %v2356
        %2360 = vst [vmem:[%s2358 + $0x8] sm:$0xff] %v2357
        %s2361 = scalar_lea.vmem [#allocation3], 112
        %2362 = vst [vmem:[%s2361 - $0x1] sm:$0xfe] %v240
        %2363 = vst [vmem:[%s2361 + $0x7] sm:$0xff] %v243
        %2364 = vst [vmem:[%s2361 + $0xf] sm:$0x1] %v246
        %2365 = vrot.lane.b32.xlu0 %v1858, 1
        %v2366 = vpop.permute.xlu0 %2365
        %2367 = vrot.lane.b32.xlu0 %v1861, 1
        %v2368 = vpop.permute.xlu0 %2367
        %2369 = vrot.lane.b32.xlu0 %v1863, 1
        %v2370 = vpop.permute.xlu0 %2369
        %2371 = vrot.lane.b32.xlu0 %v1865, 1
        %v2372 = vpop.permute.xlu0 %2371
        %v2373 = vsel %vm456, %v2366, %v2368
        %v2374 = vsel %vm456, %v2370, %v2372
        %v2377 = vsub.f32 %v264, %v2373
        %v2378 = vsub.f32 %v267, %v2374
        %v2379 = vand.u32 2147483647, %v2377
        %v2380 = vand.u32 2147483647, %v2378
        %v2381 = vmul.f32 %v315, %v2379
        %v2382 = vmul.f32 %v316, %v2380
        %v2383 = vadd.f32 %v2381, 0.0
        %v2384 = vadd.f32 %v2382, 0.0
        %v2387 = vsub.f32 %v264, %v2368
        %v2388 = vsub.f32 %v265, %v2368
        %v2389 = vsub.f32 %v267, %v2372
        %v2390 = vsub.f32 %v268, %v2372
        %v2391 = vand.u32 2147483647, %v2387
        %v2392 = vand.u32 2147483647, %v2388
        %v2393 = vand.u32 2147483647, %v2389
        %v2394 = vand.u32 2147483647, %v2390
        %2399 = vrot.lane.b32.xlu0 %v2391, 127
        %v2400 = vpop.permute.xlu0 %2399
        %2401 = vrot.lane.b32.xlu0 %v2392, 127
        %v2402 = vpop.permute.xlu0 %2401
        %2403 = vrot.lane.b32.xlu0 %v2393, 127
        %v2404 = vpop.permute.xlu0 %2403
        %2405 = vrot.lane.b32.xlu0 %v2394, 127
        %v2406 = vpop.permute.xlu0 %2405
        %v2407 = vsel %vm378, %v2400, %v2402
        %v2408 = vsel %vm378, %v2404, %v2406
        %v2411 = vmul.f32 %v319, %v2407
        %v2412 = vmul.f32 %v320, %v2408
        %v2413 = vadd.f32 %v2383, %v2411
        %v2414 = vadd.f32 %v2384, %v2412
        %2415 = vrot.lane.b32.xlu0 %v1932, 1
        %v2416 = vpop.permute.xlu0 %2415
        %2417 = vrot.lane.b32.xlu0 %v1934, 1
        %v2418 = vpop.permute.xlu0 %2417
        %v2419 = vsel %vm456, %v2368, %v2416
        %v2420 = vsel %vm456, %v2372, %v2418
        %v2423 = vsub.f32 %v265, %v2419
        %v2424 = vsub.f32 %v268, %v2420
        %v2425 = vand.u32 2147483647, %v2423
        %v2426 = vand.u32 2147483647, %v2424
        %2429 = vrot.lane.b32.xlu0 %v2391, 126
        %v2430 = vpop.permute.xlu0 %2429
        %2431 = vrot.lane.b32.xlu0 %v2425, 126
        %v2432 = vpop.permute.xlu0 %2431
        %2433 = vrot.lane.b32.xlu0 %v2393, 126
        %v2434 = vpop.permute.xlu0 %2433
        %2435 = vrot.lane.b32.xlu0 %v2426, 126
        %v2436 = vpop.permute.xlu0 %2435
        %v2437 = vsel %vm1002, %v2430, %v2432
        %v2438 = vsel %vm1002, %v2434, %v2436
        %v2441 = vmul.f32 %v323, %v2437
        %v2442 = vmul.f32 %v324, %v2438
        %v2443 = vadd.f32 %v2413, %v2441
        %v2444 = vadd.f32 %v2414, %v2442
        %2445 = vrot.lane.b32.xlu0 %v1857, 1
        %v2446 = vpop.permute.xlu0 %2445
        %2447 = vrot.lane.b32.xlu0 %v1860, 1
        %v2448 = vpop.permute.xlu0 %2447
        %2449 = vrot.lane.b32.xlu0 %v1862, 1
        %v2450 = vpop.permute.xlu0 %2449
        %2451 = vrot.lane.b32.xlu0 %v1864, 1
        %v2452 = vpop.permute.xlu0 %2451
        %v2453 = vsel %vm456, %v2446, %v2448
        %v2454 = vsel %vm456, %v2450, %v2452
        %v2457 = vsub.f32 %v264, %v2453
        %v2458 = vsub.f32 %v270, %v2454
        %v2459 = vand.u32 2147483647, %v2457
        %v2460 = vand.u32 2147483647, %v2458
        %v2464 = vrot.slane %v2459, 1
        %v2465 = vrot.slane %v2380, 1
        %v2466 = vsel %vm355, %v2464, %v2465
        %v2467 = vrot.slane %v2460, 1
        %v2468 = vsel %vm355, %v2465, %v2467
        %v2471 = vmul.f32 %v327, %v2466
        %v2472 = vmul.f32 %v328, %v2468
        %v2473 = vadd.f32 %v2443, %v2471
        %v2474 = vadd.f32 %v2444, %v2472
        %v2477 = vsub.f32 %v264, %v2448
        %v2478 = vsub.f32 %v265, %v2448
        %v2479 = vsub.f32 %v270, %v2452
        %v2480 = vsub.f32 %v271, %v2452
        %v2481 = vand.u32 2147483647, %v2477
        %v2482 = vand.u32 2147483647, %v2478
        %v2483 = vand.u32 2147483647, %v2479
        %v2484 = vand.u32 2147483647, %v2480
        %v2489 = vrot.slane %v2481, 1
        %v2490 = vrot.slane %v2393, 1
        %v2491 = vsel %vm355, %v2489, %v2490
        %v2492 = vrot.slane %v2482, 1
        %v2493 = vrot.slane %v2394, 1
        %v2494 = vsel %vm355, %v2492, %v2493
        %v2495 = vrot.slane %v2483, 1
        %v2496 = vsel %vm355, %v2490, %v2495
        %v2497 = vrot.slane %v2484, 1
        %v2498 = vsel %vm355, %v2493, %v2497
        %2499 = vrot.lane.b32.xlu0 %v2491, 127
        %v2500 = vpop.permute.xlu0 %2499
        %2501 = vrot.lane.b32.xlu0 %v2494, 127
        %v2502 = vpop.permute.xlu0 %2501
        %2503 = vrot.lane.b32.xlu0 %v2496, 127
        %v2504 = vpop.permute.xlu0 %2503
        %2505 = vrot.lane.b32.xlu0 %v2498, 127
        %v2506 = vpop.permute.xlu0 %2505
        %v2507 = vsel %vm378, %v2500, %v2502
        %v2508 = vsel %vm378, %v2504, %v2506
        %v2511 = vmul.f32 %v331, %v2507
        %v2512 = vmul.f32 %v332, %v2508
        %v2513 = vadd.f32 %v2473, %v2511
        %v2514 = vadd.f32 %v2474, %v2512
        %2515 = vrot.lane.b32.xlu0 %v1931, 1
        %v2516 = vpop.permute.xlu0 %2515
        %2517 = vrot.lane.b32.xlu0 %v1933, 1
        %v2518 = vpop.permute.xlu0 %2517
        %v2519 = vsel %vm456, %v2448, %v2516
        %v2520 = vsel %vm456, %v2452, %v2518
        %v2523 = vsub.f32 %v265, %v2519
        %v2524 = vsub.f32 %v271, %v2520
        %v2525 = vand.u32 2147483647, %v2523
        %v2526 = vand.u32 2147483647, %v2524
        %v2529 = vrot.slane %v2525, 1
        %v2530 = vrot.slane %v2426, 1
        %v2531 = vsel %vm355, %v2529, %v2530
        %v2532 = vrot.slane %v2526, 1
        %v2533 = vsel %vm355, %v2530, %v2532
        %2534 = vrot.lane.b32.xlu0 %v2491, 126
        %v2535 = vpop.permute.xlu0 %2534
        %2536 = vrot.lane.b32.xlu0 %v2531, 126
        %v2537 = vpop.permute.xlu0 %2536
        %2538 = vrot.lane.b32.xlu0 %v2496, 126
        %v2539 = vpop.permute.xlu0 %2538
        %2540 = vrot.lane.b32.xlu0 %v2533, 126
        %v2541 = vpop.permute.xlu0 %2540
        %v2542 = vsel %vm1002, %v2535, %v2537
        %v2543 = vsel %vm1002, %v2539, %v2541
        %v2546 = vmul.f32 %v335, %v2542
        %v2547 = vmul.f32 %v336, %v2543
        %v2548 = vadd.f32 %v2513, %v2546
        %v2549 = vadd.f32 %v2514, %v2547
        %2550 = vrot.lane.b32.xlu0 %v2057, 1
        %v2551 = vpop.permute.xlu0 %2550
        %2552 = vrot.lane.b32.xlu0 %v2059, 1
        %v2553 = vpop.permute.xlu0 %2552
        %v2554 = vsel %vm456, %v2551, %v2553
        %v2556 = vsub.f32 %v270, %v2554
        %v2557 = vand.u32 2147483647, %v2556
        %v2559 = vrot.slane %v2459, 2
        %v2560 = vrot.slane %v2380, 2
        %v2561 = vsel %vm2073, %v2559, %v2560
        %v2562 = vrot.slane %v2557, 2
        %v2563 = vsel %vm2073, %v2560, %v2562
        %v2566 = vmul.f32 %v339, %v2561
        %v2567 = vmul.f32 %v340, %v2563
        %v2568 = vadd.f32 %v2548, %v2566
        %v2569 = vadd.f32 %v2549, %v2567
        %v2571 = vsub.f32 %v270, %v2553
        %v2572 = vsub.f32 %v271, %v2553
        %v2573 = vand.u32 2147483647, %v2571
        %v2574 = vand.u32 2147483647, %v2572
        %v2577 = vrot.slane %v2481, 2
        %v2578 = vrot.slane %v2393, 2
        %v2579 = vsel %vm2073, %v2577, %v2578
        %v2580 = vrot.slane %v2482, 2
        %v2581 = vrot.slane %v2394, 2
        %v2582 = vsel %vm2073, %v2580, %v2581
        %v2583 = vrot.slane %v2573, 2
        %v2584 = vsel %vm2073, %v2578, %v2583
        %v2585 = vrot.slane %v2574, 2
        %v2586 = vsel %vm2073, %v2581, %v2585
        %2587 = vrot.lane.b32.xlu0 %v2579, 127
        %v2588 = vpop.permute.xlu0 %2587
        %2589 = vrot.lane.b32.xlu0 %v2582, 127
        %v2590 = vpop.permute.xlu0 %2589
        %2591 = vrot.lane.b32.xlu0 %v2584, 127
        %v2592 = vpop.permute.xlu0 %2591
        %2593 = vrot.lane.b32.xlu0 %v2586, 127
        %v2594 = vpop.permute.xlu0 %2593
        %v2595 = vsel %vm378, %v2588, %v2590
        %v2596 = vsel %vm378, %v2592, %v2594
        %v2599 = vmul.f32 %v343, %v2595
        %v2600 = vmul.f32 %v344, %v2596
        %v2601 = vadd.f32 %v2568, %v2599
        %v2602 = vadd.f32 %v2569, %v2600
        %2603 = vrot.lane.b32.xlu0 %v2125, 1
        %v2604 = vpop.permute.xlu0 %2603
        %v2605 = vsel %vm456, %v2553, %v2604
        %v2607 = vsub.f32 %v271, %v2605
        %v2608 = vand.u32 2147483647, %v2607
        %v2610 = vrot.slane %v2525, 2
        %v2611 = vrot.slane %v2426, 2
        %v2612 = vsel %vm2073, %v2610, %v2611
        %v2613 = vrot.slane %v2608, 2
        %v2614 = vsel %vm2073, %v2611, %v2613
        %2615 = vrot.lane.b32.xlu0 %v2579, 126
        %v2616 = vpop.permute.xlu0 %2615
        %2617 = vrot.lane.b32.xlu0 %v2612, 126
        %v2618 = vpop.permute.xlu0 %2617
        %2619 = vrot.lane.b32.xlu0 %v2584, 126
        %v2620 = vpop.permute.xlu0 %2619
        %2621 = vrot.lane.b32.xlu0 %v2614, 126
        %v2622 = vpop.permute.xlu0 %2621
        %v2623 = vsel %vm1002, %v2616, %v2618
        %v2624 = vsel %vm1002, %v2620, %v2622
        %v2627 = vmul.f32 %v347, %v2623
        %v2628 = vmul.f32 %v348, %v2624
        %v2629 = vadd.f32 %v2601, %v2627
        %v2630 = vadd.f32 %v2602, %v2628
        %s2631 = scalar_lea.vmem [#allocation2], 128
        %2632 = vst [vmem:[%s2631] sm:$0xff] %v2629
        %2633 = vst [vmem:[%s2631 + $0x8] sm:$0xff] %v2630
        %2634 = vrot.lane.b32.xlu0 %v246, 127
        %v2635 = vpop.permute.xlu0 %2634
        %2636 = vrot.lane.b32.xlu0 %v247, 127
        %v2637 = vpop.permute.xlu0 %2636
        %v2638 = vsel %vm378, %v2635, %v2637
        %s2639 = scalar_lea.vmem [#allocation3], 128
        %2640 = vst [vmem:[%s2639 - $0x1] sm:$0xfe] %v1166
        %2641 = vst [vmem:[%s2639 + $0x7] sm:$0xff] %v1167
        %2642 = vst [vmem:[%s2639 + $0xf] sm:$0x1] %v2638
        %v2643 = vld [vmem:[#allocation2] sm:$0xff]
        %v2644 = vld [vmem:[#allocation2 + $0x8] sm:$0xff]
        %v2645 = vld [vmem:[#allocation3] sm:$0xff]
        %v2646 = vld [vmem:[#allocation3 + $0x8] sm:$0xff]
        %vm2647 = vcmp.gt.f32.partialorder %v2643, -1.0
        %vm2648 = vcmp.gt.f32.partialorder %v2644, -1.0
        %vm2649 = vcmp.eq.f32.partialorder %v2643, -1.0
        %vm2650 = vcmp.eq.f32.partialorder %v2644, -1.0
        %vm2651 = vmor %vm2647, %vm2649
        %vm2652 = vmor %vm2648, %vm2650
        %vm2653 = vcmp.lt.f32.partialorder %v2643, 3e+38
        %vm2654 = vcmp.lt.f32.partialorder %v2644, 3e+38
        %vm2655 = vmand %vm2651, %vm2653
        %vm2656 = vmand %vm2652, %vm2654
        %v2657 = vsel %vm2655, %v2643, 3e+38
        %v2658 = vsel %vm2656, %v2644, 3e+38
        %v2659 = vsel %vm2655, %v2645, 0
        %v2660 = vsel %vm2656, %v2646, 0
        %v2661 = vld [vmem:[%s876] sm:$0xff]
        %v2662 = vld [vmem:[%s876 + $0x8] sm:$0xff]
        %v2663 = vld [vmem:[%s879] sm:$0xff]
        %v2664 = vld [vmem:[%s879 + $0x8] sm:$0xff]
        %vm2665 = vcmp.gt.f32.partialorder %v2661, -1.0
        %vm2666 = vcmp.gt.f32.partialorder %v2662, -1.0
        %vm2667 = vcmp.eq.f32.partialorder %v2661, -1.0
        %vm2668 = vcmp.eq.f32.partialorder %v2662, -1.0
        %vm2669 = vmor %vm2665, %vm2667
        %vm2670 = vmor %vm2666, %vm2668
        %vm2671 = vcmp.lt.f32.partialorder %v2661, %v2657
        %vm2672 = vcmp.lt.f32.partialorder %v2662, %v2658
        %vm2673 = vmand %vm2669, %vm2671
        %vm2674 = vmand %vm2670, %vm2672
        %v2675 = vsel %vm2673, %v2661, %v2657
        %v2676 = vsel %vm2674, %v2662, %v2658
        %v2677 = vsel %vm2673, 1, 0
        %v2678 = vsel %vm2674, 1, 0
        %v2679 = vsel %vm2673, %v2663, %v2659
        %v2680 = vsel %vm2674, %v2664, %v2660
        %v2681 = vld [vmem:[%s1150] sm:$0xff]
        %v2682 = vld [vmem:[%s1150 + $0x8] sm:$0xff]
        %v2683 = vld [vmem:[%s1168] sm:$0xff]
        %v2684 = vld [vmem:[%s1168 + $0x8] sm:$0xff]
        %vm2685 = vcmp.gt.f32.partialorder %v2681, -1.0
        %vm2686 = vcmp.gt.f32.partialorder %v2682, -1.0
        %vm2687 = vcmp.eq.f32.partialorder %v2681, -1.0
        %vm2688 = vcmp.eq.f32.partialorder %v2682, -1.0
        %vm2689 = vmor %vm2685, %vm2687
        %vm2690 = vmor %vm2686, %vm2688
        %vm2691 = vcmp.lt.f32.partialorder %v2681, %v2675
        %vm2692 = vcmp.lt.f32.partialorder %v2682, %v2676
        %vm2693 = vmand %vm2689, %vm2691
        %vm2694 = vmand %vm2690, %vm2692
        %v2695 = vsel %vm2693, %v2681, %v2675
        %v2696 = vsel %vm2694, %v2682, %v2676
        %v2697 = vsel %vm2693, 2, %v2677
        %v2698 = vsel %vm2694, 2, %v2678
        %v2699 = vsel %vm2693, %v2683, %v2679
        %v2700 = vsel %vm2694, %v2684, %v2680
        %v2701 = vld [vmem:[%s1416] sm:$0xff]
        %v2702 = vld [vmem:[%s1416 + $0x8] sm:$0xff]
        %v2703 = vld [vmem:[%s1419] sm:$0xff]
        %v2704 = vld [vmem:[%s1419 + $0x8] sm:$0xff]
        %vm2705 = vcmp.gt.f32.partialorder %v2701, -1.0
        %vm2706 = vcmp.gt.f32.partialorder %v2702, -1.0
        %vm2707 = vcmp.eq.f32.partialorder %v2701, -1.0
        %vm2708 = vcmp.eq.f32.partialorder %v2702, -1.0
        %vm2709 = vmor %vm2705, %vm2707
        %vm2710 = vmor %vm2706, %vm2708
        %vm2711 = vcmp.lt.f32.partialorder %v2701, %v2695
        %vm2712 = vcmp.lt.f32.partialorder %v2702, %v2696
        %vm2713 = vmand %vm2709, %vm2711
        %vm2714 = vmand %vm2710, %vm2712
        %v2715 = vsel %vm2713, %v2701, %v2695
        %v2716 = vsel %vm2714, %v2702, %v2696
        %v2717 = vsel %vm2713, 3, %v2697
        %v2718 = vsel %vm2714, 3, %v2698
        %v2719 = vsel %vm2713, %v2703, %v2699
        %v2720 = vsel %vm2714, %v2704, %v2700
        %v2721 = vld [vmem:[%s1600] sm:$0xff]
        %v2722 = vld [vmem:[%s1600 + $0x8] sm:$0xff]
        %v2723 = vld [vmem:[%s1603] sm:$0xff]
        %v2724 = vld [vmem:[%s1603 + $0x8] sm:$0xff]
        %vm2725 = vcmp.gt.f32.partialorder %v2721, -1.0
        %vm2726 = vcmp.gt.f32.partialorder %v2722, -1.0
        %vm2727 = vcmp.eq.f32.partialorder %v2721, -1.0
        %vm2728 = vcmp.eq.f32.partialorder %v2722, -1.0
        %vm2729 = vmor %vm2725, %vm2727
        %vm2730 = vmor %vm2726, %vm2728
        %vm2731 = vcmp.lt.f32.partialorder %v2721, %v2715
        %vm2732 = vcmp.lt.f32.partialorder %v2722, %v2716
        %vm2733 = vmand %vm2729, %vm2731
        %vm2734 = vmand %vm2730, %vm2732
        %v2735 = vsel %vm2733, %v2721, %v2715
        %v2736 = vsel %vm2734, %v2722, %v2716
        %v2737 = vsel %vm2733, 4, %v2717
        %v2738 = vsel %vm2734, 4, %v2718
        %v2739 = vsel %vm2733, %v2723, %v2719
        %v2740 = vsel %vm2734, %v2724, %v2720
        %v2741 = vld [vmem:[%s1850] sm:$0xff]
        %v2742 = vld [vmem:[%s1850 + $0x8] sm:$0xff]
        %v2743 = vld [vmem:[%s1853] sm:$0xff]
        %v2744 = vld [vmem:[%s1853 + $0x8] sm:$0xff]
        %vm2745 = vcmp.gt.f32.partialorder %v2741, -1.0
        %vm2746 = vcmp.gt.f32.partialorder %v2742, -1.0
        %vm2747 = vcmp.eq.f32.partialorder %v2741, -1.0
        %vm2748 = vcmp.eq.f32.partialorder %v2742, -1.0
        %vm2749 = vmor %vm2745, %vm2747
        %vm2750 = vmor %vm2746, %vm2748
        %vm2751 = vcmp.lt.f32.partialorder %v2741, %v2735
        %vm2752 = vcmp.lt.f32.partialorder %v2742, %v2736
        %vm2753 = vmand %vm2749, %vm2751
        %vm2754 = vmand %vm2750, %vm2752
        %v2755 = vsel %vm2753, %v2741, %v2735
        %v2756 = vsel %vm2754, %v2742, %v2736
        %v2757 = vsel %vm2753, 5, %v2737
        %v2758 = vsel %vm2754, 5, %v2738
        %v2759 = vsel %vm2753, %v2743, %v2739
        %v2760 = vsel %vm2754, %v2744, %v2740
        %v2761 = vld [vmem:[%s2144] sm:$0xff]
        %v2762 = vld [vmem:[%s2144 + $0x8] sm:$0xff]
        %v2763 = vld [vmem:[%s2152] sm:$0xff]
        %v2764 = vld [vmem:[%s2152 + $0x8] sm:$0xff]
        %vm2765 = vcmp.gt.f32.partialorder %v2761, -1.0
        %vm2766 = vcmp.gt.f32.partialorder %v2762, -1.0
        %vm2767 = vcmp.eq.f32.partialorder %v2761, -1.0
        %vm2768 = vcmp.eq.f32.partialorder %v2762, -1.0
        %vm2769 = vmor %vm2765, %vm2767
        %vm2770 = vmor %vm2766, %vm2768
        %vm2771 = vcmp.lt.f32.partialorder %v2761, %v2755
        %vm2772 = vcmp.lt.f32.partialorder %v2762, %v2756
        %vm2773 = vmand %vm2769, %vm2771
        %vm2774 = vmand %vm2770, %vm2772
        %v2775 = vsel %vm2773, %v2761, %v2755
        %v2776 = vsel %vm2774, %v2762, %v2756
        %v2777 = vsel %vm2773, 6, %v2757
        %v2778 = vsel %vm2774, 6, %v2758
        %v2779 = vsel %vm2773, %v2763, %v2759
        %v2780 = vsel %vm2774, %v2764, %v2760
        %v2781 = vld [vmem:[%s2358] sm:$0xff]
        %v2782 = vld [vmem:[%s2358 + $0x8] sm:$0xff]
        %v2783 = vld [vmem:[%s2361] sm:$0xff]
        %v2784 = vld [vmem:[%s2361 + $0x8] sm:$0xff]
        %vm2785 = vcmp.gt.f32.partialorder %v2781, -1.0
        %vm2786 = vcmp.gt.f32.partialorder %v2782, -1.0
        %vm2787 = vcmp.eq.f32.partialorder %v2781, -1.0
        %vm2788 = vcmp.eq.f32.partialorder %v2782, -1.0
        %vm2789 = vmor %vm2785, %vm2787
        %vm2790 = vmor %vm2786, %vm2788
        %vm2791 = vcmp.lt.f32.partialorder %v2781, %v2775
        %vm2792 = vcmp.lt.f32.partialorder %v2782, %v2776
        %vm2793 = vmand %vm2789, %vm2791
        %vm2794 = vmand %vm2790, %vm2792
        %v2795 = vsel %vm2793, %v2781, %v2775
        %v2796 = vsel %vm2794, %v2782, %v2776
        %v2797 = vsel %vm2793, 7, %v2777
        %v2798 = vsel %vm2794, 7, %v2778
        %v2799 = vsel %vm2793, %v2783, %v2779
        %v2800 = vsel %vm2794, %v2784, %v2780
        %v2801 = vld [vmem:[%s2631] sm:$0xff]
        %v2802 = vld [vmem:[%s2631 + $0x8] sm:$0xff]
        %v2803 = vld [vmem:[%s2639] sm:$0xff]
        %v2804 = vld [vmem:[%s2639 + $0x8] sm:$0xff]
        %vm2805 = vcmp.gt.f32.partialorder %v2801, -1.0
        %vm2806 = vcmp.gt.f32.partialorder %v2802, -1.0
        %vm2807 = vcmp.eq.f32.partialorder %v2801, -1.0
        %vm2808 = vcmp.eq.f32.partialorder %v2802, -1.0
        %vm2809 = vmor %vm2805, %vm2807
        %vm2810 = vmor %vm2806, %vm2808
        %vm2811 = vcmp.lt.f32.partialorder %v2801, %v2795
        %vm2812 = vcmp.lt.f32.partialorder %v2802, %v2796
        %vm2813 = vmand %vm2809, %vm2811
        %vm2814 = vmand %vm2810, %vm2812
        %v2815 = vsel %vm2813, %v2801, %v2795
        %v2816 = vsel %vm2814, %v2802, %v2796
        %v2817 = vsel %vm2813, 8, %v2797
        %v2818 = vsel %vm2814, 8, %v2798
        %v2819 = vsel %vm2813, %v2803, %v2799
        %v2820 = vsel %vm2814, %v2804, %v2800
        %vm2821 = vcmp.le.f32.partialorder %v2815, 1.0
        %vm2822 = vcmp.le.f32.partialorder %v2816, 1.0
        %vm2823 = vcmp.gt.f32.partialorder %v2643, %v2815
        %vm2824 = vcmp.gt.f32.partialorder %v2644, %v2816
        %vm2825 = vcmp.eq.f32.partialorder %v2643, %v2815
        %vm2826 = vcmp.eq.f32.partialorder %v2644, %v2816
        %vm2827 = vcmp.lt.s32.totalorder %v2817, 0
        %vm2828 = vcmp.lt.s32.totalorder %v2818, 0
        %vm2829 = vmand %vm2825, %vm2827
        %vm2830 = vmand %vm2826, %vm2828
        %vm2831 = vmor %vm2823, %vm2829
        %vm2832 = vmor %vm2824, %vm2830
        %vm2833 = vmand %vm2831, %vm2653
        %vm2834 = vmand %vm2832, %vm2654
        %v2835 = vsel %vm2833, %v2643, 3e+38
        %v2836 = vsel %vm2834, %v2644, 3e+38
        %v2837 = vsel %vm2833, %v2645, 0
        %v2838 = vsel %vm2834, %v2646, 0
        %vm2839 = vcmp.gt.f32.partialorder %v2661, %v2815
        %vm2840 = vcmp.gt.f32.partialorder %v2662, %v2816
        %vm2841 = vcmp.eq.f32.partialorder %v2661, %v2815
        %vm2842 = vcmp.eq.f32.partialorder %v2662, %v2816
        %vm2843 = vcmp.lt.s32.totalorder %v2817, 1
        %vm2844 = vcmp.lt.s32.totalorder %v2818, 1
        %vm2845 = vmand %vm2841, %vm2843
        %vm2846 = vmand %vm2842, %vm2844
        %vm2847 = vmor %vm2839, %vm2845
        %vm2848 = vmor %vm2840, %vm2846
        %vm2849 = vcmp.lt.f32.partialorder %v2661, %v2835
        %vm2850 = vcmp.lt.f32.partialorder %v2662, %v2836
        %vm2851 = vmand %vm2847, %vm2849
        %vm2852 = vmand %vm2848, %vm2850
        %v2853 = vsel %vm2851, %v2661, %v2835
        %v2854 = vsel %vm2852, %v2662, %v2836
        %v2855 = vsel %vm2851, 1, 0
        %v2856 = vsel %vm2852, 1, 0
        %v2857 = vsel %vm2851, %v2663, %v2837
        %v2858 = vsel %vm2852, %v2664, %v2838
        %vm2859 = vcmp.gt.f32.partialorder %v2681, %v2815
        %vm2860 = vcmp.gt.f32.partialorder %v2682, %v2816
        %vm2861 = vcmp.eq.f32.partialorder %v2681, %v2815
        %vm2862 = vcmp.eq.f32.partialorder %v2682, %v2816
        %vm2863 = vcmp.lt.s32.totalorder %v2817, 2
        %vm2864 = vcmp.lt.s32.totalorder %v2818, 2
        %vm2865 = vmand %vm2861, %vm2863
        %vm2866 = vmand %vm2862, %vm2864
        %vm2867 = vmor %vm2859, %vm2865
        %vm2868 = vmor %vm2860, %vm2866
        %vm2869 = vcmp.lt.f32.partialorder %v2681, %v2853
        %vm2870 = vcmp.lt.f32.partialorder %v2682, %v2854
        %vm2871 = vmand %vm2867, %vm2869
        %vm2872 = vmand %vm2868, %vm2870
        %v2873 = vsel %vm2871, %v2681, %v2853
        %v2874 = vsel %vm2872, %v2682, %v2854
        %v2875 = vsel %vm2871, 2, %v2855
        %v2876 = vsel %vm2872, 2, %v2856
        %v2877 = vsel %vm2871, %v2683, %v2857
        %v2878 = vsel %vm2872, %v2684, %v2858
        %vm2879 = vcmp.gt.f32.partialorder %v2701, %v2815
        %vm2880 = vcmp.gt.f32.partialorder %v2702, %v2816
        %vm2881 = vcmp.eq.f32.partialorder %v2701, %v2815
        %vm2882 = vcmp.eq.f32.partialorder %v2702, %v2816
        %vm2883 = vcmp.lt.s32.totalorder %v2817, 3
        %vm2884 = vcmp.lt.s32.totalorder %v2818, 3
        %vm2885 = vmand %vm2881, %vm2883
        %vm2886 = vmand %vm2882, %vm2884
        %vm2887 = vmor %vm2879, %vm2885
        %vm2888 = vmor %vm2880, %vm2886
        %vm2889 = vcmp.lt.f32.partialorder %v2701, %v2873
        %vm2890 = vcmp.lt.f32.partialorder %v2702, %v2874
        %vm2891 = vmand %vm2887, %vm2889
        %vm2892 = vmand %vm2888, %vm2890
        %v2893 = vsel %vm2891, %v2701, %v2873
        %v2894 = vsel %vm2892, %v2702, %v2874
        %v2895 = vsel %vm2891, 3, %v2875
        %v2896 = vsel %vm2892, 3, %v2876
        %v2897 = vsel %vm2891, %v2703, %v2877
        %v2898 = vsel %vm2892, %v2704, %v2878
        %vm2899 = vcmp.gt.f32.partialorder %v2721, %v2815
        %vm2900 = vcmp.gt.f32.partialorder %v2722, %v2816
        %vm2901 = vcmp.eq.f32.partialorder %v2721, %v2815
        %vm2902 = vcmp.eq.f32.partialorder %v2722, %v2816
        %vm2903 = vcmp.lt.s32.totalorder %v2817, 4
        %vm2904 = vcmp.lt.s32.totalorder %v2818, 4
        %vm2905 = vmand %vm2901, %vm2903
        %vm2906 = vmand %vm2902, %vm2904
        %vm2907 = vmor %vm2899, %vm2905
        %vm2908 = vmor %vm2900, %vm2906
        %vm2909 = vcmp.lt.f32.partialorder %v2721, %v2893
        %vm2910 = vcmp.lt.f32.partialorder %v2722, %v2894
        %vm2911 = vmand %vm2907, %vm2909
        %vm2912 = vmand %vm2908, %vm2910
        %v2913 = vsel %vm2911, %v2721, %v2893
        %v2914 = vsel %vm2912, %v2722, %v2894
        %v2915 = vsel %vm2911, 4, %v2895
        %v2916 = vsel %vm2912, 4, %v2896
        %v2917 = vsel %vm2911, %v2723, %v2897
        %v2918 = vsel %vm2912, %v2724, %v2898
        %vm2919 = vcmp.gt.f32.partialorder %v2741, %v2815
        %vm2920 = vcmp.gt.f32.partialorder %v2742, %v2816
        %vm2921 = vcmp.eq.f32.partialorder %v2741, %v2815
        %vm2922 = vcmp.eq.f32.partialorder %v2742, %v2816
        %vm2923 = vcmp.lt.s32.totalorder %v2817, 5
        %vm2924 = vcmp.lt.s32.totalorder %v2818, 5
        %vm2925 = vmand %vm2921, %vm2923
        %vm2926 = vmand %vm2922, %vm2924
        %vm2927 = vmor %vm2919, %vm2925
        %vm2928 = vmor %vm2920, %vm2926
        %vm2929 = vcmp.lt.f32.partialorder %v2741, %v2913
        %vm2930 = vcmp.lt.f32.partialorder %v2742, %v2914
        %vm2931 = vmand %vm2927, %vm2929
        %vm2932 = vmand %vm2928, %vm2930
        %v2933 = vsel %vm2931, %v2741, %v2913
        %v2934 = vsel %vm2932, %v2742, %v2914
        %v2935 = vsel %vm2931, 5, %v2915
        %v2936 = vsel %vm2932, 5, %v2916
        %v2937 = vsel %vm2931, %v2743, %v2917
        %v2938 = vsel %vm2932, %v2744, %v2918
        %vm2939 = vcmp.gt.f32.partialorder %v2761, %v2815
        %vm2940 = vcmp.gt.f32.partialorder %v2762, %v2816
        %vm2941 = vcmp.eq.f32.partialorder %v2761, %v2815
        %vm2942 = vcmp.eq.f32.partialorder %v2762, %v2816
        %vm2943 = vcmp.lt.s32.totalorder %v2817, 6
        %vm2944 = vcmp.lt.s32.totalorder %v2818, 6
        %vm2945 = vmand %vm2941, %vm2943
        %vm2946 = vmand %vm2942, %vm2944
        %vm2947 = vmor %vm2939, %vm2945
        %vm2948 = vmor %vm2940, %vm2946
        %vm2949 = vcmp.lt.f32.partialorder %v2761, %v2933
        %vm2950 = vcmp.lt.f32.partialorder %v2762, %v2934
        %vm2951 = vmand %vm2947, %vm2949
        %vm2952 = vmand %vm2948, %vm2950
        %v2953 = vsel %vm2951, %v2761, %v2933
        %v2954 = vsel %vm2952, %v2762, %v2934
        %v2955 = vsel %vm2951, 6, %v2935
        %v2956 = vsel %vm2952, 6, %v2936
        %v2957 = vsel %vm2951, %v2763, %v2937
        %v2958 = vsel %vm2952, %v2764, %v2938
        %vm2959 = vcmp.gt.f32.partialorder %v2781, %v2815
        %vm2960 = vcmp.gt.f32.partialorder %v2782, %v2816
        %vm2961 = vcmp.eq.f32.partialorder %v2781, %v2815
        %vm2962 = vcmp.eq.f32.partialorder %v2782, %v2816
        %vm2963 = vcmp.lt.s32.totalorder %v2817, 7
        %vm2964 = vcmp.lt.s32.totalorder %v2818, 7
        %vm2965 = vmand %vm2961, %vm2963
        %vm2966 = vmand %vm2962, %vm2964
        %vm2967 = vmor %vm2959, %vm2965
        %vm2968 = vmor %vm2960, %vm2966
        %vm2969 = vcmp.lt.f32.partialorder %v2781, %v2953
        %vm2970 = vcmp.lt.f32.partialorder %v2782, %v2954
        %vm2971 = vmand %vm2967, %vm2969
        %vm2972 = vmand %vm2968, %vm2970
        %v2973 = vsel %vm2971, %v2781, %v2953
        %v2974 = vsel %vm2972, %v2782, %v2954
        %v2975 = vsel %vm2971, 7, %v2955
        %v2976 = vsel %vm2972, 7, %v2956
        %v2977 = vsel %vm2971, %v2783, %v2957
        %v2978 = vsel %vm2972, %v2784, %v2958
        %vm2979 = vcmp.gt.f32.partialorder %v2801, %v2815
        %vm2980 = vcmp.gt.f32.partialorder %v2802, %v2816
        %vm2981 = vcmp.eq.f32.partialorder %v2801, %v2815
        %vm2982 = vcmp.eq.f32.partialorder %v2802, %v2816
        %vm2983 = vcmp.lt.s32.totalorder %v2817, 8
        %vm2984 = vcmp.lt.s32.totalorder %v2818, 8
        %vm2985 = vmand %vm2981, %vm2983
        %vm2986 = vmand %vm2982, %vm2984
        %vm2987 = vmor %vm2979, %vm2985
        %vm2988 = vmor %vm2980, %vm2986
        %vm2989 = vcmp.lt.f32.partialorder %v2801, %v2973
        %vm2990 = vcmp.lt.f32.partialorder %v2802, %v2974
        %vm2991 = vmand %vm2987, %vm2989
        %vm2992 = vmand %vm2988, %vm2990
        %v2993 = vsel %vm2991, %v2801, %v2973
        %v2994 = vsel %vm2992, %v2802, %v2974
        %v2995 = vsel %vm2991, 8, %v2975
        %v2996 = vsel %vm2992, 8, %v2976
        %v2997 = vsel %vm2991, %v2803, %v2977
        %v2998 = vsel %vm2992, %v2804, %v2978
        %vm2999 = vcmp.le.f32.partialorder %v2993, 1.0
        %vm3000 = vcmp.le.f32.partialorder %v2994, 1.0
        %vm3001 = vcmp.gt.f32.partialorder %v2643, %v2993
        %vm3002 = vcmp.gt.f32.partialorder %v2644, %v2994
        %vm3003 = vcmp.eq.f32.partialorder %v2643, %v2993
        %vm3004 = vcmp.eq.f32.partialorder %v2644, %v2994
        %vm3005 = vcmp.lt.s32.totalorder %v2995, 0
        %vm3006 = vcmp.lt.s32.totalorder %v2996, 0
        %vm3007 = vmand %vm3003, %vm3005
        %vm3008 = vmand %vm3004, %vm3006
        %vm3009 = vmor %vm3001, %vm3007
        %vm3010 = vmor %vm3002, %vm3008
        %vm3011 = vmand %vm3009, %vm2653
        %vm3012 = vmand %vm3010, %vm2654
        %v3013 = vsel %vm3011, %v2643, 3e+38
        %v3014 = vsel %vm3012, %v2644, 3e+38
        %v3015 = vsel %vm3011, %v2645, 0
        %v3016 = vsel %vm3012, %v2646, 0
        %vm3017 = vcmp.gt.f32.partialorder %v2661, %v2993
        %vm3018 = vcmp.gt.f32.partialorder %v2662, %v2994
        %vm3019 = vcmp.eq.f32.partialorder %v2661, %v2993
        %vm3020 = vcmp.eq.f32.partialorder %v2662, %v2994
        %vm3021 = vcmp.lt.s32.totalorder %v2995, 1
        %vm3022 = vcmp.lt.s32.totalorder %v2996, 1
        %vm3023 = vmand %vm3019, %vm3021
        %vm3024 = vmand %vm3020, %vm3022
        %vm3025 = vmor %vm3017, %vm3023
        %vm3026 = vmor %vm3018, %vm3024
        %vm3027 = vcmp.lt.f32.partialorder %v2661, %v3013
        %vm3028 = vcmp.lt.f32.partialorder %v2662, %v3014
        %vm3029 = vmand %vm3025, %vm3027
        %vm3030 = vmand %vm3026, %vm3028
        %v3031 = vsel %vm3029, %v2661, %v3013
        %v3032 = vsel %vm3030, %v2662, %v3014
        %v3033 = vsel %vm3029, %v2663, %v3015
        %v3034 = vsel %vm3030, %v2664, %v3016
        %vm3035 = vcmp.gt.f32.partialorder %v2681, %v2993
        %vm3036 = vcmp.gt.f32.partialorder %v2682, %v2994
        %vm3037 = vcmp.eq.f32.partialorder %v2681, %v2993
        %vm3038 = vcmp.eq.f32.partialorder %v2682, %v2994
        %vm3039 = vcmp.lt.s32.totalorder %v2995, 2
        %vm3040 = vcmp.lt.s32.totalorder %v2996, 2
        %vm3041 = vmand %vm3037, %vm3039
        %vm3042 = vmand %vm3038, %vm3040
        %vm3043 = vmor %vm3035, %vm3041
        %vm3044 = vmor %vm3036, %vm3042
        %vm3045 = vcmp.lt.f32.partialorder %v2681, %v3031
        %vm3046 = vcmp.lt.f32.partialorder %v2682, %v3032
        %vm3047 = vmand %vm3043, %vm3045
        %vm3048 = vmand %vm3044, %vm3046
        %v3049 = vsel %vm3047, %v2681, %v3031
        %v3050 = vsel %vm3048, %v2682, %v3032
        %v3051 = vsel %vm3047, %v2683, %v3033
        %v3052 = vsel %vm3048, %v2684, %v3034
        %vm3053 = vcmp.gt.f32.partialorder %v2701, %v2993
        %vm3054 = vcmp.gt.f32.partialorder %v2702, %v2994
        %vm3055 = vcmp.eq.f32.partialorder %v2701, %v2993
        %vm3056 = vcmp.eq.f32.partialorder %v2702, %v2994
        %vm3057 = vcmp.lt.s32.totalorder %v2995, 3
        %vm3058 = vcmp.lt.s32.totalorder %v2996, 3
        %vm3059 = vmand %vm3055, %vm3057
        %vm3060 = vmand %vm3056, %vm3058
        %vm3061 = vmor %vm3053, %vm3059
        %vm3062 = vmor %vm3054, %vm3060
        %vm3063 = vcmp.lt.f32.partialorder %v2701, %v3049
        %vm3064 = vcmp.lt.f32.partialorder %v2702, %v3050
        %vm3065 = vmand %vm3061, %vm3063
        %vm3066 = vmand %vm3062, %vm3064
        %v3067 = vsel %vm3065, %v2701, %v3049
        %v3068 = vsel %vm3066, %v2702, %v3050
        %v3069 = vsel %vm3065, %v2703, %v3051
        %v3070 = vsel %vm3066, %v2704, %v3052
        %vm3071 = vcmp.gt.f32.partialorder %v2721, %v2993
        %vm3072 = vcmp.gt.f32.partialorder %v2722, %v2994
        %vm3073 = vcmp.eq.f32.partialorder %v2721, %v2993
        %vm3074 = vcmp.eq.f32.partialorder %v2722, %v2994
        %vm3075 = vcmp.lt.s32.totalorder %v2995, 4
        %vm3076 = vcmp.lt.s32.totalorder %v2996, 4
        %vm3077 = vmand %vm3073, %vm3075
        %vm3078 = vmand %vm3074, %vm3076
        %vm3079 = vmor %vm3071, %vm3077
        %vm3080 = vmor %vm3072, %vm3078
        %vm3081 = vcmp.lt.f32.partialorder %v2721, %v3067
        %vm3082 = vcmp.lt.f32.partialorder %v2722, %v3068
        %vm3083 = vmand %vm3079, %vm3081
        %vm3084 = vmand %vm3080, %vm3082
        %v3085 = vsel %vm3083, %v2721, %v3067
        %v3086 = vsel %vm3084, %v2722, %v3068
        %v3087 = vsel %vm3083, %v2723, %v3069
        %v3088 = vsel %vm3084, %v2724, %v3070
        %vm3089 = vcmp.gt.f32.partialorder %v2741, %v2993
        %vm3090 = vcmp.gt.f32.partialorder %v2742, %v2994
        %vm3091 = vcmp.eq.f32.partialorder %v2741, %v2993
        %vm3092 = vcmp.eq.f32.partialorder %v2742, %v2994
        %vm3093 = vcmp.lt.s32.totalorder %v2995, 5
        %vm3094 = vcmp.lt.s32.totalorder %v2996, 5
        %vm3095 = vmand %vm3091, %vm3093
        %vm3096 = vmand %vm3092, %vm3094
        %vm3097 = vmor %vm3089, %vm3095
        %vm3098 = vmor %vm3090, %vm3096
        %vm3099 = vcmp.lt.f32.partialorder %v2741, %v3085
        %vm3100 = vcmp.lt.f32.partialorder %v2742, %v3086
        %vm3101 = vmand %vm3097, %vm3099
        %vm3102 = vmand %vm3098, %vm3100
        %v3103 = vsel %vm3101, %v2741, %v3085
        %v3104 = vsel %vm3102, %v2742, %v3086
        %v3105 = vsel %vm3101, %v2743, %v3087
        %v3106 = vsel %vm3102, %v2744, %v3088
        %vm3107 = vcmp.gt.f32.partialorder %v2761, %v2993
        %vm3108 = vcmp.gt.f32.partialorder %v2762, %v2994
        %vm3109 = vcmp.eq.f32.partialorder %v2761, %v2993
        %vm3110 = vcmp.eq.f32.partialorder %v2762, %v2994
        %vm3111 = vcmp.lt.s32.totalorder %v2995, 6
        %vm3112 = vcmp.lt.s32.totalorder %v2996, 6
        %vm3113 = vmand %vm3109, %vm3111
        %vm3114 = vmand %vm3110, %vm3112
        %vm3115 = vmor %vm3107, %vm3113
        %vm3116 = vmor %vm3108, %vm3114
        %vm3117 = vcmp.lt.f32.partialorder %v2761, %v3103
        %vm3118 = vcmp.lt.f32.partialorder %v2762, %v3104
        %vm3119 = vmand %vm3115, %vm3117
        %vm3120 = vmand %vm3116, %vm3118
        %v3121 = vsel %vm3119, %v2761, %v3103
        %v3122 = vsel %vm3120, %v2762, %v3104
        %v3123 = vsel %vm3119, %v2763, %v3105
        %v3124 = vsel %vm3120, %v2764, %v3106
        %vm3125 = vcmp.gt.f32.partialorder %v2781, %v2993
        %vm3126 = vcmp.gt.f32.partialorder %v2782, %v2994
        %vm3127 = vcmp.eq.f32.partialorder %v2781, %v2993
        %vm3128 = vcmp.eq.f32.partialorder %v2782, %v2994
        %vm3129 = vcmp.lt.s32.totalorder %v2995, 7
        %vm3130 = vcmp.lt.s32.totalorder %v2996, 7
        %vm3131 = vmand %vm3127, %vm3129
        %vm3132 = vmand %vm3128, %vm3130
        %vm3133 = vmor %vm3125, %vm3131
        %vm3134 = vmor %vm3126, %vm3132
        %vm3135 = vcmp.lt.f32.partialorder %v2781, %v3121
        %vm3136 = vcmp.lt.f32.partialorder %v2782, %v3122
        %vm3137 = vmand %vm3133, %vm3135
        %vm3138 = vmand %vm3134, %vm3136
        %v3139 = vsel %vm3137, %v2781, %v3121
        %v3140 = vsel %vm3138, %v2782, %v3122
        %v3141 = vsel %vm3137, %v2783, %v3123
        %v3142 = vsel %vm3138, %v2784, %v3124
        %vm3143 = vcmp.gt.f32.partialorder %v2801, %v2993
        %vm3144 = vcmp.gt.f32.partialorder %v2802, %v2994
        %vm3145 = vcmp.eq.f32.partialorder %v2801, %v2993
        %vm3146 = vcmp.eq.f32.partialorder %v2802, %v2994
        %vm3147 = vcmp.lt.s32.totalorder %v2995, 8
        %vm3148 = vcmp.lt.s32.totalorder %v2996, 8
        %vm3149 = vmand %vm3145, %vm3147
        %vm3150 = vmand %vm3146, %vm3148
        %vm3151 = vmor %vm3143, %vm3149
        %vm3152 = vmor %vm3144, %vm3150
        %vm3153 = vcmp.lt.f32.partialorder %v2801, %v3139
        %vm3154 = vcmp.lt.f32.partialorder %v2802, %v3140
        %vm3155 = vmand %vm3151, %vm3153
        %vm3156 = vmand %vm3152, %vm3154
        %v3157 = vsel %vm3155, %v2801, %v3139
        %v3158 = vsel %vm3156, %v2802, %v3140
        %v3159 = vsel %vm3155, %v2803, %v3141
        %v3160 = vsel %vm3156, %v2804, %v3142
        %vm3161 = vcmp.le.f32.partialorder %v3157, 1.0
        %vm3162 = vcmp.le.f32.partialorder %v3158, 1.0
        %v3163 = vsel %vm2821, 1, 0
        %v3164 = vsel %vm2822, 1, 0
        %vm3165 = vcmp.eq.s32.totalorder %v2997, %v2819
        %vm3166 = vcmp.eq.s32.totalorder %v2998, %v2820
        %vm3167 = vmand %vm3165, %vm2999
        %vm3168 = vmand %vm3166, %vm3000
        %v3169 = vsel %vm3167, 1, 0
        %v3170 = vsel %vm3168, 1, 0
        %v3171 = vadd.s32 %v3163, %v3169
        %v3172 = vadd.s32 %v3164, %v3170
        %vm3173 = vcmp.eq.s32.totalorder %v3159, %v2819
        %vm3174 = vcmp.eq.s32.totalorder %v3160, %v2820
        %vm3175 = vmand %vm3173, %vm3161
        %vm3176 = vmand %vm3174, %vm3162
        %v3177 = vsel %vm3175, 1, 0
        %v3178 = vsel %vm3176, 1, 0
        %v3179 = vadd.s32 %v3171, %v3177
        %v3180 = vadd.s32 %v3172, %v3178
        %v3181 = vsel %vm2821, %v3179, 0
        %v3182 = vsel %vm2822, %v3180, 0
        %vm3183 = vcmp.gt.s32.totalorder %v3181, 0
        %vm3184 = vcmp.gt.s32.totalorder %v3182, 0
        %vm3185 = vcmp.eq.s32.totalorder %v3181, 0
        %vm3186 = vcmp.eq.s32.totalorder %v3182, 0
        %vm3187 = vcmp.lt.s32.totalorder %v2819, 0
        %vm3188 = vcmp.lt.s32.totalorder %v2820, 0
        %vm3189 = vmand %vm3185, %vm3187
        %vm3190 = vmand %vm3186, %vm3188
        %vm3191 = vmor %vm3183, %vm3189
        %vm3192 = vmor %vm3184, %vm3190
        %v3193 = vsel %vm3191, %v3181, 0
        %v3194 = vsel %vm3192, %v3182, 0
        %v3195 = vsel %vm3191, %v2819, 0
        %v3196 = vsel %vm3192, %v2820, 0
        %vm3197 = vcmp.eq.s32.totalorder %v2819, %v2997
        %vm3198 = vcmp.eq.s32.totalorder %v2820, %v2998
        %vm3199 = vmand %vm3197, %vm2821
        %vm3200 = vmand %vm3198, %vm2822
        %v3201 = vsel %vm3199, 1, 0
        %v3202 = vsel %vm3200, 1, 0
        %v3203 = vsel %vm2999, 1, 0
        %v3204 = vsel %vm3000, 1, 0
        %v3205 = vadd.s32 %v3201, %v3203
        %v3206 = vadd.s32 %v3202, %v3204
        %vm3207 = vcmp.eq.s32.totalorder %v3159, %v2997
        %vm3208 = vcmp.eq.s32.totalorder %v3160, %v2998
        %vm3209 = vmand %vm3207, %vm3161
        %vm3210 = vmand %vm3208, %vm3162
        %v3211 = vsel %vm3209, 1, 0
        %v3212 = vsel %vm3210, 1, 0
        %v3213 = vadd.s32 %v3205, %v3211
        %v3214 = vadd.s32 %v3206, %v3212
        %v3215 = vsel %vm2999, %v3213, 0
        %v3216 = vsel %vm3000, %v3214, 0
        %vm3217 = vcmp.gt.s32.totalorder %v3215, %v3193
        %vm3218 = vcmp.gt.s32.totalorder %v3216, %v3194
        %vm3219 = vcmp.eq.s32.totalorder %v3215, %v3193
        %vm3220 = vcmp.eq.s32.totalorder %v3216, %v3194
        %vm3221 = vcmp.lt.s32.totalorder %v2997, %v3195
        %vm3222 = vcmp.lt.s32.totalorder %v2998, %v3196
        %vm3223 = vmand %vm3219, %vm3221
        %vm3224 = vmand %vm3220, %vm3222
        %vm3225 = vmor %vm3217, %vm3223
        %vm3226 = vmor %vm3218, %vm3224
        %v3227 = vsel %vm3225, %v3215, %v3193
        %v3228 = vsel %vm3226, %v3216, %v3194
        %v3229 = vsel %vm3225, %v2997, %v3195
        %v3230 = vsel %vm3226, %v2998, %v3196
        %vm3231 = vcmp.eq.s32.totalorder %v2819, %v3159
        %vm3232 = vcmp.eq.s32.totalorder %v2820, %v3160
        %vm3233 = vmand %vm3231, %vm2821
        %vm3234 = vmand %vm3232, %vm2822
        %v3235 = vsel %vm3233, 1, 0
        %v3236 = vsel %vm3234, 1, 0
        %vm3237 = vcmp.eq.s32.totalorder %v2997, %v3159
        %vm3238 = vcmp.eq.s32.totalorder %v2998, %v3160
        %vm3239 = vmand %vm3237, %vm2999
        %vm3240 = vmand %vm3238, %vm3000
        %v3241 = vsel %vm3239, 1, 0
        %v3242 = vsel %vm3240, 1, 0
        %v3243 = vadd.s32 %v3235, %v3241
        %v3244 = vadd.s32 %v3236, %v3242
        %v3245 = vsel %vm3161, 1, 0
        %v3246 = vsel %vm3162, 1, 0
        %v3247 = vadd.s32 %v3243, %v3245
        %v3248 = vadd.s32 %v3244, %v3246
        %v3249 = vsel %vm3161, %v3247, 0
        %v3250 = vsel %vm3162, %v3248, 0
        %vm3251 = vcmp.gt.s32.totalorder %v3249, %v3227
        %vm3252 = vcmp.gt.s32.totalorder %v3250, %v3228
        %vm3253 = vcmp.eq.s32.totalorder %v3249, %v3227
        %vm3254 = vcmp.eq.s32.totalorder %v3250, %v3228
        %vm3255 = vcmp.lt.s32.totalorder %v3159, %v3229
        %vm3256 = vcmp.lt.s32.totalorder %v3160, %v3230
        %vm3257 = vmand %vm3253, %vm3255
        %vm3258 = vmand %vm3254, %vm3256
        %vm3259 = vmor %vm3251, %vm3257
        %vm3260 = vmor %vm3252, %vm3258
        %v3261 = vsel %vm3259, %v3159, %v3229
        %v3262 = vsel %vm3260, %v3160, %v3230
        %3263 = vst [vmem:[%s223] sm:$0xff] %v3261
        %3264 = vst [vmem:[%s223 + $0x8] sm:$0xff] %v3262
        %s3265 = sand.u32 %s100, 1
        %s3266 = scalar_lea.sflag [#allocation6], %s3265
        %s3267 = sand.u32 %s100, 1
        %s3268 = smul.addr %s3267, 16
        %s3269 = scalar_lea.vmem [#allocation9], %s3268
        // Predicated region
        $region37: #{tpu_custom_call.1} parent=27 // pred_check
          %p3270 = pneg %p110
        $region38: #{tpu_custom_call.1} parent=27 // pred_check_branch
          %3272 = sbr.rel (%p3270) target = $region40
        $region39: #{tpu_custom_call.1} parent=27 // pred_region
          %s3274 = ssub.s32 256, 256
          %3275 = vsyncadd %s3266, %s3274
          %s3276 = smul.addr %s26, 2
          %s3277 = sadd.s32 %s27, %s3276
          %s3278 = smul.addr %s3277, 128
          %s3279 = scalar_lea.hbm %s2, %s3278
          %s3280 = sshll.u32 %s3269, 4
          %s3281 = int_to_ptr.vmem [resolvable:$true] %s3280
          %3286 = dma.vmem_to_hbm [thread:$0]  %s3281, 256, %s3279, %s3266, 128, 128, 8
        $region40: #{tpu_custom_call.1} parent=27 // pred_fallthru
          _
      $region28: #{tpu_custom_call.1} parent=5 // pred_fallthru
        _
      %p3287 = scmp.le.s32.totalorder 2, %s17
      // Predicated region
      $region41: #{tpu_custom_call.1} parent=5 // pred_check
        %p3288 = pneg %p3287
      $region42: #{tpu_custom_call.1} parent=5 // pred_check_branch
        %3290 = sbr.rel (%p3288) target = $region44
      $region43: #{tpu_custom_call.1} parent=5 // pred_region
        %s3291 = ssub.s32 %s17, 2
        // Predicated region
        $region45: #{tpu_custom_call.1} parent=43 // pred_check
          %p3292 = pneg %p116
        $region46: #{tpu_custom_call.1} parent=43 // pred_check_branch
          %3294 = sbr.rel (%p3292) target = $region48
        $region47: #{tpu_custom_call.1} parent=43 // pred_region
          %s3295 = sand.u32 %s101, 1
          %s3296 = scalar_lea.sflag [#allocation6], %s3295
          %s3297 = sand.u32 %s101, 1
          %s3298 = smul.addr %s3297, 16
          %s3299 = scalar_lea.vmem [#allocation9], %s3298
          %3300 = dma.done %s3296, 256
        $region48: #{tpu_custom_call.1} parent=43 // pred_fallthru
          _
      $region44: #{tpu_custom_call.1} parent=5 // pred_fallthru
        _
    $region6: #{tpu_custom_call.1} parent=1 // loop_footer
      %s21 = sadd.s32 1, %s17
    $region7: #{tpu_custom_call.1} parent=1 // loop_footer_branch
      %16 = sbr.rel target = $region3
    $region8: #{tpu_custom_call.1} parent=1 // loop_exit
      _
    %3301 = vsyncpa [#allocation5], 1
    %s3302 = scalar_lea.sflag [#allocation5], 1
    %3303 = vsyncpa %s3302, 1
    %3304 = vsyncpa [#allocation8], 1
    %s3305 = scalar_lea.sflag [#allocation8], 1
    %3306 = vsyncpa %s3305, 1
    %3307 = vsyncpa [#allocation6], 1
    %s3308 = scalar_lea.sflag [#allocation6], 1
    %3309 = vsyncpa %s3308, 1

</llo_original>
